<compile_context>
chip_gen: v7x
topology: tpu7x:2x2x1
jax: 0.10.0
libtpu: 0.0.40
codegen_flags: <defaults>
</compile_context>

<pallas_src>
import jax
import jax.numpy as jnp
from jax import lax
from jax.experimental import pallas as pl
from jax.experimental.pallas import tpu as pltpu


# Set to jnp.bfloat16 on v6e/v7x for ~2x MXU throughput and half the DMA bytes
# (accumulation stays f32 via preferred_element_type).  Default f32 so the
# strict 2e-3 check against the XLA reference passes on every generation.
COMPUTE_DTYPE = jnp.float32

# (kind, Cin, Cout, stride, padding, output_padding, activation) -- exactly the
# layer list of ReverseVGG16.forward.
LAYERS = [
    ("convt", 512, 512, 2, 0, 0, "relu"),
    ("convt", 512, 512, 2, 1, 1, "relu"),
    ("convt", 512, 512, 2, 0, 0, "relu"),
    ("conv",  512, 512, 1, 1, 0, "relu"),
    ("convt", 512, 512, 2, 1, 1, "relu"),
    ("conv",  512, 256, 1, 1, 0, "relu"),
    ("convt", 256, 256, 2, 0, 0, "relu"),
    ("conv",  256, 128, 1, 1, 0, "relu"),
    ("convt", 128, 128, 2, 1, 1, "relu"),
    ("conv",  128,  64, 1, 1, 0, "relu"),
    ("convt",  64,  64, 2, 1, 1, "relu"),
    ("conv",   64,  64, 1, 1, 0, "relu"),
    ("conv",   64,   3, 1, 1, 0, "tanh"),
]


def _cdiv(a, b):
    return -(-a // b)


def _round_up(a, b):
    return _cdiv(a, b) * b


def _make_multitap_kernel(TH, Wp8, win_rows, offsets, act):
    """Kernel over a tile of TH output rows (flattened to M = TH*Wp8 matmul rows).

    Refs:
      x_hbm : (N, need_rows*Wp8, Cin)  raw HBM (memory_space=pl.ANY), flat rows
      w_ref : (T, Cin, Cout)           VMEM, one (Cin,Cout) slab per tap
      b_ref : (1, Cout)                VMEM
      o_ref : (1, TH*Wp8, Cout)        VMEM output block (flat rows)
      xwin  : (2, win_rows*Wp8, Cin)   VMEM double-buffered input window
      sem   : DMA semaphores (2,)
    """
    M = TH * Wp8            # merged matmul M per tile
    WIN = win_rows * Wp8    # flat rows per window
    ROWS = TH * Wp8         # flat-row stride between consecutive tiles

    def _dma(x_hbm, n, start_row, buf, s):
        return pltpu.make_async_copy(x_hbm.at[n, pl.ds(start_row, WIN)], buf, s)

    def kernel(x_hbm, w_ref, b_ref, o_ref, xwin, sem):
        n = pl.program_id(0)
        t = pl.program_id(1)
        n_t = pl.num_programs(1)
        slot = lax.rem(t, 2)

        # Bootstrap: the first tile of every image issues its own window DMA.
        @pl.when(t == 0)
        def _():
            _dma(x_hbm, n, 0, xwin.at[0], sem.at[0]).start()

        # Prefetch the next tile's window into the other buffer (same image),
        # before blocking on the current one.
        @pl.when(t + 1 < n_t)
        def _():
            nslot = 1 - slot
            _dma(x_hbm, n, (t + 1) * ROWS, xwin.at[nslot], sem.at[nslot]).start()

        # Wait for this tile's window (src slice in the descriptor is shape-only).
        _dma(x_hbm, n, 0, xwin.at[slot], sem.at[slot]).wait()

        xw = xwin.at[slot]                      # (WIN, Cin) ref view
        acc = None
        for i, off in enumerate(offsets):       # one merged MXU matmul per tap
            lhs = xw[pl.ds(off, M), :]          # (M, Cin)
            c = jnp.dot(lhs, w_ref[i], preferred_element_type=jnp.float32)
            acc = c if acc is None else acc + c

        y = acc + b_ref[...]                    # bias applied once per tile
        if act == "relu":
            y = jnp.maximum(y, 0.0)
        elif act == "tanh":
            y = jnp.tanh(y)
        o_ref[0] = y.astype(o_ref.dtype)

    return kernel


def multitap_conv(x, taps, w_taps, b, act, pad_top, pad_left, Ho, Wo):
    """out[n,ho,wo,:] = act( sum_i xpad[n, ho+dy_i, wo+dx_i, :] @ w_taps[i] + b )

    xpad is x zero-padded by (pad_top, pad_left) at the top/left (and by as much
    as needed at the bottom/right for the taps and the row-tiling)."""
    N, H, W, Cin = x.shape
    T, _, Cout = w_taps.shape
    max_dy = max(d for d, _ in taps)
    max_dx = max(d for _, d in taps)

    Wp8 = _round_up(Wo + max_dx, 8)      # stored width, multiple of 8 (sublane-aligned)
    TH = max(1, min(Ho, 32))             # output rows per grid step
    n_t = _cdiv(Ho, TH)
    win_rows = TH + max_dy + 1           # +1 row so the dx overhang stays in-window
    need_rows = (n_t - 1) * TH + win_rows

    pad_bottom = need_rows - pad_top - H
    pad_right = Wp8 - pad_left - W
    assert pad_bottom >= 0 and pad_right >= 0

    # single pad per layer: semantic zeros + tiling/alignment zeros together
    xp = jnp.pad(x, ((0, 0), (pad_top, pad_bottom), (pad_left, pad_right), (0, 0)))
    x_flat = xp.reshape(N, need_rows * Wp8, Cin).astype(COMPUTE_DTYPE)
    w_taps = w_taps.astype(COMPUTE_DTYPE)
    b2 = b.reshape(1, Cout).astype(jnp.float32)

    offsets = tuple(dy * Wp8 + dx for dy, dx in taps)
    kernel = _make_multitap_kernel(TH, Wp8, win_rows, offsets, act)

    out_flat = pl.pallas_call(
        kernel,
        out_shape=jax.ShapeDtypeStruct((N, n_t * TH * Wp8, Cout), jnp.float32),
        grid=(N, n_t),
        in_specs=[
            pl.BlockSpec(memory_space=pl.ANY),                       # x stays in HBM
            pl.BlockSpec((T, Cin, Cout), lambda n, t: (0, 0, 0)),    # all taps' weights
            pl.BlockSpec((1, Cout), lambda n, t: (0, 0)),            # bias
        ],
        out_specs=pl.BlockSpec((1, TH * Wp8, Cout), lambda n, t: (n, t, 0)),
        scratch_shapes=[
            pltpu.VMEM((2, win_rows * Wp8, Cin), COMPUTE_DTYPE),     # dbl-buffered window
            pltpu.SemaphoreType.DMA((2,)),
        ],
        compiler_params=pltpu.CompilerParams(
            dimension_semantics=("parallel", "arbitrary"),
            vmem_limit_bytes=48 * 1024 * 1024,                       # < v7x 64 MiB
        ),
    )(x_flat, w_taps, b2)

    # drop the tiling tail rows and the Wp8-Wo junk columns
    out = out_flat.reshape(N, n_t * TH, Wp8, Cout)[:, :Ho, :Wo, :]
    return out


def conv2d_pallas(x, w_oihw, b, padding, act):
    """nn.Conv2d(k=3, s=1, p=padding) + activation."""
    N, H, W, Cin = x.shape
    Cout = w_oihw.shape[0]
    w_hwio = jnp.transpose(w_oihw, (2, 3, 1, 0))          # (3,3,Cin,Cout)
    w_taps = w_hwio.reshape(9, Cin, Cout)
    taps = [(kh, kw) for kh in range(3) for kw in range(3)]
    Ho = H + 2 * padding - 2
    Wo = W + 2 * padding - 2
    return multitap_conv(x, taps, w_taps, b, act, padding, padding, Ho, Wo)


def conv_transpose2d_pallas(x, w_iohw, b, stride, padding, output_padding, act):
    """nn.ConvTranspose2d(k=3, stride, padding, output_padding) + activation,
    via sub-pixel (phase) decomposition: each of the s*s output phases is a small
    valid conv on the *un-dilated* input (no zero-dilation => ~s^2 fewer flops)."""
    N, H, W, Cin = x.shape
    Cout = w_iohw.shape[1]
    s, k = stride, 3
    lo = k - 1 - padding
    Hout = (H - 1) * s - 2 * padding + k + output_padding
    Wout = (W - 1) * s - 2 * padding + k + output_padding

    # correlation weights of the equivalent dilated conv: wf[kh,kw,ci,co]
    wf = jnp.transpose(w_iohw, (2, 3, 0, 1))[::-1, ::-1]   # (3,3,Cin,Cout)

    # per-phase taps: output row oy = s*qy + r uses kernel rows kh with
    # (r + kh - lo) % s == 0, reading input row qy + (r + kh - lo)//s.
    phase, all_e = [], []
    for r in range(s):
        ks = [kk for kk in range(k) if (r + kk - lo) % s == 0]
        es = [(r + kk - lo) // s for kk in ks]
        phase.append(list(zip(ks, es)))
        all_e += es
    pad0 = max(0, -min(all_e))        # shared top/left zero padding of x

    out = jnp.zeros((N, Hout, Wout, Cout), jnp.float32)
    for ry in range(s):
        Hq = _cdiv(Hout - ry, s)
        for rx in range(s):
            Wq = _cdiv(Wout - rx, s)
            taps, w_list = [], []
            for kh, ey in phase[ry]:
                for kw, ex in phase[rx]:
                    taps.append((ey + pad0, ex + pad0))
                    w_list.append(wf[kh, kw])
            w_taps = jnp.stack(w_list, axis=0)              # (T, Cin, Cout), T<=4
            yph = multitap_conv(x, taps, w_taps, b, act, pad0, pad0, Hq, Wq)
            out = out.at[:, ry::s, rx::s, :].set(yph)
    return out


def reverse_vgg16_forward(x_nchw, params):
    """Pallas implementation of ReverseVGG16.forward (input/output are NCHW)."""
    x = jnp.transpose(x_nchw, (0, 2, 3, 1)).astype(jnp.float32)   # NCHW -> NHWC
    for (kind, cin, cout, s, p, op, act), (w, bvec) in zip(LAYERS, params):
        if kind == "conv":
            x = conv2d_pallas(x, w, bvec, p, act)
        else:
            x = conv_transpose2d_pallas(x, w, bvec, s, p, op, act)
    return jnp.transpose(x, (0, 3, 1, 2))                         # NHWC -> NCHW


def reference_forward(x_nchw, params):
    """Pure-JAX (XLA conv) reference for numerical validation."""
    x = x_nchw.astype(jnp.float32)
    for (kind, cin, cout, s, p, op, act), (w, bvec) in zip(LAYERS, params):
        if kind == "conv":
            y = lax.conv_general_dilated(
                x, w, window_strides=(1, 1), padding=((p, p), (p, p)),
                dimension_numbers=("NCHW", "OIHW", "NCHW"),
                precision=lax.Precision.HIGHEST)
        else:
            wf = jnp.transpose(w, (1, 0, 2, 3))[:, :, ::-1, ::-1]
            y = lax.conv_general_dilated(
                x, wf, window_strides=(1, 1),
                padding=((2 - p, 2 - p + op), (2 - p, 2 - p + op)),
                lhs_dilation=(s, s),
                dimension_numbers=("NCHW", "OIHW", "NCHW"),
                precision=lax.Precision.HIGHEST)
        y = y + bvec.reshape(1, -1, 1, 1)
        x = jnp.maximum(y, 0.0) if act == "relu" else jnp.tanh(y)
    return x


def init_params(key):
    params = []
    for (kind, cin, cout, s, p, op, act) in LAYERS:
        key, kw_, kb_ = jax.random.split(key, 3)
        if kind == "conv":
            wshape = (cout, cin, 3, 3)               # PyTorch Conv2d: (O, I, kH, kW)
            std = (2.0 / (9 * cin)) ** 0.5
        else:
            wshape = (cin, cout, 3, 3)               # PyTorch ConvTranspose2d: (I, O, kH, kW)
            std = s * (2.0 / (9 * cin)) ** 0.5       # keep activation scale roughly stable
        w = std * jax.random.normal(kw_, wshape, dtype=jnp.float32)
        bvec = 0.01 * jax.random.normal(kb_, (cout,), dtype=jnp.float32)
        params.append((w, bvec))
    return params


if __name__ == "__main__":
    key = jax.random.PRNGKey(0)
    params = init_params(key)
    key, kx = jax.random.split(key)
    # VGG16 feature map of a small (32x32) image: (N, 512, 1, 1), NCHW like PyTorch.
    x = jax.random.normal(kx, (2, 512, 1, 1), dtype=jnp.float32)

    out = reverse_vgg16_forward(x, params)
    out = jax.block_until_ready(out)
    assert out.shape == (2, 3, 212, 212), out.shape

    ref = jax.block_until_ready(reference_forward(x, params))
    max_diff = float(jnp.max(jnp.abs(out - ref)))
    assert jnp.allclose(out, ref, atol=2e-3, rtol=2e-3), f"max diff {max_diff}"

    print("KERNEL_OK")
</pallas_src>

<mosaic_0001>
module attributes {stable_mosaic.version = 11 : i64} {
  func.func @kernel(%arg0: i32, %arg1: i32, %arg2: memref<2x32x512xf32, #tpu.memory_space<any>>, %arg3: memref<4x512x512xf32, #tpu.memory_space<vmem>>, %arg4: memref<1x512xf32, #tpu.memory_space<vmem>>, %arg5: memref<1x16x512xf32, #tpu.memory_space<vmem>>, %arg6: memref<2x32x512xf32, #tpu.memory_space<vmem>>, %arg7: memref<2x!tpu.dma_semaphore, #tpu.memory_space<semaphore_mem>>) attributes {dimension_semantics = [#tpu.dimension_semantics<parallel>, #tpu.dimension_semantics<arbitrary>], iteration_bounds = array<i64: 2, 1>, scalar_prefetch = 0 : i64, scratch_operands = 2 : i64, tpu.core_type = #tpu.core_type<tc>, window_params = [{}, {pipeline_mode = #tpu.pipeline_mode<synchronous>, transform_indices = @transform_1, window_bounds = array<i64: 4, 512, 512>}, {pipeline_mode = #tpu.pipeline_mode<synchronous>, transform_indices = @transform_2, window_bounds = array<i64: 1, 512>}, {transform_indices = @transform_3, window_bounds = array<i64: 1, 16, 512>}]} {
    %c2_i32 = arith.constant 2 : i32
    %0 = arith.remsi %arg1, %c2_i32 : i32
    %c0_i32 = arith.constant 0 : i32
    %1 = arith.cmpi eq, %arg1, %c0_i32 : i32
    %2 = arith.extui %1 : i1 to i32
    %c0_i32_0 = arith.constant 0 : i32
    %3 = arith.cmpi ne, %2, %c0_i32_0 : i32
    scf.if %3 {
      %c0_i32_38 = arith.constant 0 : i32
      %c0_i32_39 = arith.constant 0 : i32
      %c0_i32_40 = arith.constant 0 : i32
      %c0_i32_41 = arith.constant 0 : i32
      %49 = tpu.memref_slice %arg2[%arg0, %c0_i32_40, %c0_i32_41] : memref<2x32x512xf32, #tpu.memory_space<any>> -> memref<1x32x512xf32, #tpu.memory_space<any>>
      %50 = tpu.memref_squeeze %49 : memref<1x32x512xf32, #tpu.memory_space<any>> -> memref<32x512xf32, #tpu.memory_space<any>>
      %c0_i32_42 = arith.constant 0 : i32
      %c0_i32_43 = arith.constant 0 : i32
      %51 = tpu.memref_slice %arg6[%c0_i32_38, %c0_i32_42, %c0_i32_43] : memref<2x32x512xf32, #tpu.memory_space<vmem>> -> memref<1x32x512xf32, #tpu.memory_space<vmem>>
      %52 = tpu.memref_squeeze %51 : memref<1x32x512xf32, #tpu.memory_space<vmem>> -> memref<32x512xf32, #tpu.memory_space<vmem>>
      %53 = tpu.memref_slice %arg7[%c0_i32_39] : memref<2x!tpu.dma_semaphore, #tpu.memory_space<semaphore_mem>> -> memref<1x!tpu.dma_semaphore, #tpu.memory_space<semaphore_mem>>
      %54 = tpu.memref_squeeze %53 : memref<1x!tpu.dma_semaphore, #tpu.memory_space<semaphore_mem>> -> memref<!tpu.dma_semaphore, #tpu.memory_space<semaphore_mem>>
      tpu.enqueue_dma source(%50 : memref<32x512xf32, #tpu.memory_space<any>>) target(%52 : memref<32x512xf32, #tpu.memory_space<vmem>>) target_semaphore(%54 : memref<!tpu.dma_semaphore, #tpu.memory_space<semaphore_mem>>)
    } else {
    }
    %c1_i32 = arith.constant 1 : i32
    %4 = arith.addi %arg1, %c1_i32 : i32
    %c1_i32_1 = arith.constant 1 : i32
    %5 = arith.cmpi slt, %4, %c1_i32_1 : i32
    %6 = arith.extui %5 : i1 to i32
    %c0_i32_2 = arith.constant 0 : i32
    %7 = arith.cmpi ne, %6, %c0_i32_2 : i32
    scf.if %7 {
      %c1_i32_38 = arith.constant 1 : i32
      %49 = arith.subi %c1_i32_38, %0 : i32
      %c1_i32_39 = arith.constant 1 : i32
      %50 = arith.addi %arg1, %c1_i32_39 : i32
      %c16_i32 = arith.constant 16 : i32
      %51 = arith.muli %50, %c16_i32 : i32
      %c0_i32_40 = arith.constant 0 : i32
      %52 = tpu.memref_slice %arg2[%arg0, %51, %c0_i32_40] : memref<2x32x512xf32, #tpu.memory_space<any>> -> memref<1x32x512xf32, #tpu.memory_space<any>>
      %53 = tpu.memref_squeeze %52 : memref<1x32x512xf32, #tpu.memory_space<any>> -> memref<32x512xf32, #tpu.memory_space<any>>
      %c0_i32_41 = arith.constant 0 : i32
      %c0_i32_42 = arith.constant 0 : i32
      %54 = tpu.memref_slice %arg6[%49, %c0_i32_41, %c0_i32_42] : memref<2x32x512xf32, #tpu.memory_space<vmem>> -> memref<1x32x512xf32, #tpu.memory_space<vmem>>
      %55 = tpu.memref_squeeze %54 : memref<1x32x512xf32, #tpu.memory_space<vmem>> -> memref<32x512xf32, #tpu.memory_space<vmem>>
      %56 = tpu.memref_slice %arg7[%49] : memref<2x!tpu.dma_semaphore, #tpu.memory_space<semaphore_mem>> -> memref<1x!tpu.dma_semaphore, #tpu.memory_space<semaphore_mem>>
      %57 = tpu.memref_squeeze %56 : memref<1x!tpu.dma_semaphore, #tpu.memory_space<semaphore_mem>> -> memref<!tpu.dma_semaphore, #tpu.memory_space<semaphore_mem>>
      tpu.enqueue_dma source(%53 : memref<32x512xf32, #tpu.memory_space<any>>) target(%55 : memref<32x512xf32, #tpu.memory_space<vmem>>) target_semaphore(%57 : memref<!tpu.dma_semaphore, #tpu.memory_space<semaphore_mem>>)
    } else {
    }
    %c0_i32_3 = arith.constant 0 : i32
    %c0_i32_4 = arith.constant 0 : i32
    %8 = tpu.memref_slice %arg2[%arg0, %c0_i32_3, %c0_i32_4] : memref<2x32x512xf32, #tpu.memory_space<any>> -> memref<1x32x512xf32, #tpu.memory_space<any>>
    %9 = tpu.memref_squeeze %8 : memref<1x32x512xf32, #tpu.memory_space<any>> -> memref<32x512xf32, #tpu.memory_space<any>>
    %c0_i32_5 = arith.constant 0 : i32
    %c0_i32_6 = arith.constant 0 : i32
    %10 = tpu.memref_slice %arg6[%0, %c0_i32_5, %c0_i32_6] : memref<2x32x512xf32, #tpu.memory_space<vmem>> -> memref<1x32x512xf32, #tpu.memory_space<vmem>>
    %11 = tpu.memref_squeeze %10 : memref<1x32x512xf32, #tpu.memory_space<vmem>> -> memref<32x512xf32, #tpu.memory_space<vmem>>
    %12 = tpu.memref_slice %arg7[%0] : memref<2x!tpu.dma_semaphore, #tpu.memory_space<semaphore_mem>> -> memref<1x!tpu.dma_semaphore, #tpu.memory_space<semaphore_mem>>
    %13 = tpu.memref_squeeze %12 : memref<1x!tpu.dma_semaphore, #tpu.memory_space<semaphore_mem>> -> memref<!tpu.dma_semaphore, #tpu.memory_space<semaphore_mem>>
    tpu.wait_dma2 semaphore(%13 : memref<!tpu.dma_semaphore, #tpu.memory_space<semaphore_mem>>) src(%9 : memref<32x512xf32, #tpu.memory_space<any>>) dst(%11 : memref<32x512xf32, #tpu.memory_space<vmem>>)
    %c0_i32_7 = arith.constant 0 : i32
    %c0_i32_8 = arith.constant 0 : i32
    %14 = tpu.memref_slice %arg6[%0, %c0_i32_7, %c0_i32_8] : memref<2x32x512xf32, #tpu.memory_space<vmem>> -> memref<1x32x512xf32, #tpu.memory_space<vmem>>
    %15 = tpu.memref_squeeze %14 : memref<1x32x512xf32, #tpu.memory_space<vmem>> -> memref<32x512xf32, #tpu.memory_space<vmem>>
    %c0 = arith.constant 0 : index
    %c0_9 = arith.constant 0 : index
    %16 = vector.load %15[%c0, %c0_9] : memref<32x512xf32, #tpu.memory_space<vmem>>, vector<16x512xf32>
    %c0_10 = arith.constant 0 : index
    %c0_11 = arith.constant 0 : index
    %c0_12 = arith.constant 0 : index
    %17 = vector.load %arg3[%c0_10, %c0_11, %c0_12] : memref<4x512x512xf32, #tpu.memory_space<vmem>>, vector<1x512x512xf32>
    %18 = vector.shape_cast %17 : vector<1x512x512xf32> to vector<512x512xf32>
    %cst = arith.constant dense<0.000000e+00> : vector<16x512xf32>
    %19 = tpu.matmul %16, %18, %cst {dimension_numbers = #tpu.dot_dimension_numbers<[1], [0], [0], [1], [0, 0, 1, 1], [], []>} : vector<16x512xf32>, vector<512x512xf32>, vector<16x512xf32> -> vector<16x512xf32>
    %c0_i32_13 = arith.constant 0 : i32
    %c0_i32_14 = arith.constant 0 : i32
    %20 = tpu.memref_slice %arg6[%0, %c0_i32_13, %c0_i32_14] : memref<2x32x512xf32, #tpu.memory_space<vmem>> -> memref<1x32x512xf32, #tpu.memory_space<vmem>>
    %21 = tpu.memref_squeeze %20 : memref<1x32x512xf32, #tpu.memory_space<vmem>> -> memref<32x512xf32, #tpu.memory_space<vmem>>
    %c1 = arith.constant 1 : index
    %c0_15 = arith.constant 0 : index
    %22 = vector.load %21[%c1, %c0_15] : memref<32x512xf32, #tpu.memory_space<vmem>>, vector<16x512xf32>
    %c1_16 = arith.constant 1 : index
    %c0_17 = arith.constant 0 : index
    %c0_18 = arith.constant 0 : index
    %23 = vector.load %arg3[%c1_16, %c0_17, %c0_18] : memref<4x512x512xf32, #tpu.memory_space<vmem>>, vector<1x512x512xf32>
    %24 = vector.shape_cast %23 : vector<1x512x512xf32> to vector<512x512xf32>
    %cst_19 = arith.constant dense<0.000000e+00> : vector<16x512xf32>
    %25 = tpu.matmul %22, %24, %cst_19 {dimension_numbers = #tpu.dot_dimension_numbers<[1], [0], [0], [1], [0, 0, 1, 1], [], []>} : vector<16x512xf32>, vector<512x512xf32>, vector<16x512xf32> -> vector<16x512xf32>
    %26 = arith.addf %19, %25 : vector<16x512xf32>
    %c0_i32_20 = arith.constant 0 : i32
    %c0_i32_21 = arith.constant 0 : i32
    %27 = tpu.memref_slice %arg6[%0, %c0_i32_20, %c0_i32_21] : memref<2x32x512xf32, #tpu.memory_space<vmem>> -> memref<1x32x512xf32, #tpu.memory_space<vmem>>
    %28 = tpu.memref_squeeze %27 : memref<1x32x512xf32, #tpu.memory_space<vmem>> -> memref<32x512xf32, #tpu.memory_space<vmem>>
    %c8 = arith.constant 8 : index
    %c0_22 = arith.constant 0 : index
    %29 = vector.load %28[%c8, %c0_22] : memref<32x512xf32, #tpu.memory_space<vmem>>, vector<16x512xf32>
    %c2 = arith.constant 2 : index
    %c0_23 = arith.constant 0 : index
    %c0_24 = arith.constant 0 : index
    %30 = vector.load %arg3[%c2, %c0_23, %c0_24] : memref<4x512x512xf32, #tpu.memory_space<vmem>>, vector<1x512x512xf32>
    %31 = vector.shape_cast %30 : vector<1x512x512xf32> to vector<512x512xf32>
    %cst_25 = arith.constant dense<0.000000e+00> : vector<16x512xf32>
    %32 = tpu.matmul %29, %31, %cst_25 {dimension_numbers = #tpu.dot_dimension_numbers<[1], [0], [0], [1], [0, 0, 1, 1], [], []>} : vector<16x512xf32>, vector<512x512xf32>, vector<16x512xf32> -> vector<16x512xf32>
    %33 = arith.addf %26, %32 : vector<16x512xf32>
    %c0_i32_26 = arith.constant 0 : i32
    %c0_i32_27 = arith.constant 0 : i32
    %34 = tpu.memref_slice %arg6[%0, %c0_i32_26, %c0_i32_27] : memref<2x32x512xf32, #tpu.memory_space<vmem>> -> memref<1x32x512xf32, #tpu.memory_space<vmem>>
    %35 = tpu.memref_squeeze %34 : memref<1x32x512xf32, #tpu.memory_space<vmem>> -> memref<32x512xf32, #tpu.memory_space<vmem>>
    %c9 = arith.constant 9 : index
    %c0_28 = arith.constant 0 : index
    %36 = vector.load %35[%c9, %c0_28] : memref<32x512xf32, #tpu.memory_space<vmem>>, vector<16x512xf32>
    %c3 = arith.constant 3 : index
    %c0_29 = arith.constant 0 : index
    %c0_30 = arith.constant 0 : index
    %37 = vector.load %arg3[%c3, %c0_29, %c0_30] : memref<4x512x512xf32, #tpu.memory_space<vmem>>, vector<1x512x512xf32>
    %38 = vector.shape_cast %37 : vector<1x512x512xf32> to vector<512x512xf32>
    %cst_31 = arith.constant dense<0.000000e+00> : vector<16x512xf32>
    %39 = tpu.matmul %36, %38, %cst_31 {dimension_numbers = #tpu.dot_dimension_numbers<[1], [0], [0], [1], [0, 0, 1, 1], [], []>} : vector<16x512xf32>, vector<512x512xf32>, vector<16x512xf32> -> vector<16x512xf32>
    %40 = arith.addf %33, %39 : vector<16x512xf32>
    %c0_32 = arith.constant 0 : index
    %c0_33 = arith.constant 0 : index
    %41 = vector.load %arg4[%c0_32, %c0_33] : memref<1x512xf32, #tpu.memory_space<vmem>>, vector<1x512xf32>
    %42 = vector.broadcast %41 : vector<1x512xf32> to vector<16x512xf32>
    %43 = arith.addf %40, %42 : vector<16x512xf32>
    %cst_34 = arith.constant 0.000000e+00 : f32
    %44 = vector.broadcast %cst_34 : f32 to vector<16x512xf32>
    %45 = arith.maximumf %43, %44 : vector<16x512xf32>
    %c0_35 = arith.constant 0 : index
    %c0_36 = arith.constant 0 : index
    %c0_37 = arith.constant 0 : index
    %46 = vector.load %arg5[%c0_35, %c0_36, %c0_37] : memref<1x16x512xf32, #tpu.memory_space<vmem>>, vector<1x16x512xf32>
    %47 = vector.shape_cast %46 : vector<1x16x512xf32> to vector<16x512xf32>
    %48 = vector.shape_cast %45 : vector<16x512xf32> to vector<1x16x512xf32>
    tpu.vector_store %arg5[%c0_35, %c0_36, %c0_37], %48 {strides = array<i32>} : memref<1x16x512xf32, #tpu.memory_space<vmem>>, vector<1x16x512xf32>,
    return
  }
  func.func @transform_1(%arg0: i32, %arg1: i32) -> (i32, i32, i32) {
    %c0_i32 = arith.constant 0 : i32
    %c0_i32_0 = arith.constant 0 : i32
    %c0_i32_1 = arith.constant 0 : i32
    %c0_i32_2 = arith.constant 0 : i32
    return %c0_i32, %c0_i32_0, %c0_i32_1 : i32, i32, i32
  }
  func.func @transform_2(%arg0: i32, %arg1: i32) -> (i32, i32) {
    %c0_i32 = arith.constant 0 : i32
    %c0_i32_0 = arith.constant 0 : i32
    %c0_i32_1 = arith.constant 0 : i32
    return %c0_i32, %c0_i32_0 : i32, i32
  }
  func.func @transform_3(%arg0: i32, %arg1: i32) -> (i32, i32, i32) {
    %c0_i32 = arith.constant 0 : i32
    %c0_i32_0 = arith.constant 0 : i32
    return %arg0, %arg1, %c0_i32 : i32, i32, i32
  }
}

</mosaic_0001>

<llo_original>
// kernel: tpu_custom_call.1
$region0: #{tpu_custom_call.1}
  #allocation0 [shape = 'u32[]', space=smem, size = 0x4, offset = 0x4, fixed_abs, tag = 'smem constant byte address 0x4 - core index']
  #allocation1 [shape = 'u32[144,128]{1,0:T(1,128)}', space=vmem, size = 0x12000, scoped, tag = 'internal scratch']
  #allocation2 [shape = 'f32[2,32,512]{2,1,0:T(8,128)}', space=vmem, size = 0x20000, scoped, tag = 'scratch operand']
  #allocation3 [shape = 's32[2]{0}', space=sflag, size = 0x8, scoped, tag = 'scratch operand']
  #allocation10 [shape = 's32[]', space=sflag, size = 0x4, offset = 0, fixed_abs, tag = 'sflag constant byte address 0x0 - dummy sync flag']
  #allocation11 [shape = 's32[]', space=sflag, size = 0x4, offset = 0, fixed_abs, tag = 'sflag constant byte address 0x0 - dummy sync flag']
  #allocation12 [shape = 'u32[]', space=smem, size = 0x4, offset = 0x44, fixed_abs, tag = 'smem constant byte address 0x44 - assertion arg 0']
  #allocation13 [shape = 'u32[]', space=smem, size = 0x4, offset = 0x48, fixed_abs, tag = 'smem constant byte address 0x48 - assertion arg 1']
  #allocation14 [shape = 's32[]', space=sflag, size = 0x4, offset = 0, fixed_abs, tag = 'sflag constant byte address 0x0 - dummy sync flag']
  #allocation15 [shape = 's32[]', space=sflag, size = 0x4, offset = 0, fixed_abs, tag = 'sflag constant byte address 0x0 - dummy sync flag']
  %s0 = inlined_call_operand.hbm [shape: f32[2,32,512], index: 0, kind: input, shape index: {}]
  %s1 = inlined_call_operand.hbm [shape: f32[4,512,512], index: 1, kind: input, shape index: {}]
  %s2 = inlined_call_operand.hbm [shape: f32[1,512], index: 2, kind: input, shape index: {}]
  %s3 = inlined_call_operand.hbm [shape: f32[2,16,512], index: 3, kind: output, shape index: {}]
  %s4 = sld [smem:[#allocation0]]
  $region65: #{tpu_custom_call.1} parent=0
    _
  %s6 = ssub.s32 1, %s4
  %s7 = scalar_select 0, %s6, %s4
  $region1: #{tpu_custom_call.1} parent=0
    #allocation4 [shape = 'u8[4194304]{0}', space=vmem, size = 0x400000, scoped, tag = 'input window, operand 1, single buffered']
    #allocation5 [shape = 's32[2]{0}', space=sflag, size = 0x8, scoped, tag = 'scoped memory for tpu_custom_call.1']
    #allocation6 [shape = 's32[2]{0}', space=sflag, size = 0x8, scoped, tag = 'scoped memory for tpu_custom_call.1']
    #allocation7 [shape = 'u8[2048]{0}', space=vmem, size = 0x800, scoped, tag = 'input window, operand 2, single buffered']
    #allocation8 [shape = 's32[1]{0}', space=sflag, size = 0x4, scoped, tag = 'scoped memory for tpu_custom_call.1']
    #allocation9 [shape = 'u8[65536]{0}', space=vmem, size = 0x10000, scoped, tag = 'output window, operand 0']
    %8 = vsyncpa [#allocation5], 0
    %9 = vsyncpa [#allocation8], 0
    %10 = vsyncpa [#allocation6], 0
    %s11 = scalar_lea.sflag [#allocation6], 1
    %12 = vsyncpa %s11, 0
    loop: start=0, step=1, limit=4
    $region2: #{tpu_custom_call.1} parent=1 // loop_pre_header
      _
    $region3: #{tpu_custom_call.1} parent=1 // loop_header
      %s14 = sphi 0, %s18
      %p15 = scmp.ge.s32.totalorder %s14, 4
      %s21 = sphi 0, %s33
      %s22 = sphi 0, %s29
      %s23 = sphi 0, %s21
      %s24 = sphi 0, %s22
      %s25 = sphi 0, %s23
      %s26 = sphi 0, %s24
      %s34 = sphi 0, %s34
      %s36 = sphi 0, %s34
      %s37 = sphi 0, %s36
      %s51 = sphi 0, %s37
      %s55 = sphi 0, %s55
      %s57 = sphi 0, %s55
      %s58 = sphi 0, %s57
      %s72 = sphi 0, %s58
      %s80 = sphi 0, %s82
      %s83 = sphi 0, %s80
      %s84 = sphi 0, %s83
      %s100 = sphi 0, %s84
    $region4: #{tpu_custom_call.1} parent=1 // loop_header_branch
      %17 = sbr.rel (%p15) target = $region8
    $region5: #{tpu_custom_call.1} parent=1 // loop_body
      %s19 = ssub.s32 %s14, 1
      %s20 = ssub.s32 %s14, 2
      %s27 = sadd.s32 1, %s22
      %p28 = scmp.ge.s32.totalorder %s27, 1
      %s29 = scalar_select %p28, 0, %s27
      %s30 = sadd.s32 1, %s21
      %s31 = scalar_select %p28, %s30, %s21
      %p32 = scmp.ge.s32.totalorder %s31, 2
      %s33 = scalar_select %p32, 0, %s31
      %s35 = sadd.s32 %s34, 1
      %p38 = scmp.eq.s32.totalorder %s14, 1
      %p39 = scmp.ne.s32.totalorder %s34, %s36
      %p40 = scmp.eq.s32.totalorder %s14, 0
      %p41 = por %p39, %p40
      %p42 = scmp.ne.s32.totalorder %s34, %s36
      %p43 = scmp.eq.s32.totalorder %s19, 1
      %p44 = por %p42, %p43
      %p45 = scmp.ne.s32.totalorder %s36, %s37
      %p46 = scmp.eq.s32.totalorder %s19, 0
      %p47 = por %p45, %p46
      %p48 = scmp.ne.s32.totalorder %s36, %s37
      %p49 = scmp.eq.s32.totalorder %s20, 1
      %p50 = por %p48, %p49
      %p52 = scmp.ne.s32.totalorder %s37, %s51
      %p53 = scmp.eq.s32.totalorder %s20, 0
      %p54 = por %p52, %p53
      %s56 = sadd.s32 %s55, 1
      %p59 = scmp.eq.s32.totalorder %s14, 1
      %p60 = scmp.ne.s32.totalorder %s55, %s57
      %p61 = scmp.eq.s32.totalorder %s14, 0
      %p62 = por %p60, %p61
      %p63 = scmp.ne.s32.totalorder %s55, %s57
      %p64 = scmp.eq.s32.totalorder %s19, 1
      %p65 = por %p63, %p64
      %p66 = scmp.ne.s32.totalorder %s57, %s58
      %p67 = scmp.eq.s32.totalorder %s19, 0
      %p68 = por %p66, %p67
      %p69 = scmp.ne.s32.totalorder %s57, %s58
      %p70 = scmp.eq.s32.totalorder %s20, 1
      %p71 = por %p69, %p70
      %p73 = scmp.ne.s32.totalorder %s58, %s72
      %p74 = scmp.eq.s32.totalorder %s20, 0
      %p75 = por %p73, %p74
      %s76 = ssub.s32 %s21, %s33
      %s77 = ssub.s32 %s22, %s29
      %s78 = sor.u32 %s76, %s77
      %p79 = scmp.eq.s32.totalorder %s78, 0
      %s81 = sadd.s32 %s80, 1
      %s82 = scalar_select %p79, %s80, %s81
      %p85 = pneg %p79
      %p86 = scmp.eq.s32.totalorder %s14, 1
      %p87 = por %p85, %p86
      %p88 = scmp.ne.s32.totalorder %s80, %s83
      %p89 = scmp.eq.s32.totalorder %s14, 0
      %p90 = por %p88, %p89
      %p91 = scmp.ne.s32.totalorder %s80, %s83
      %p92 = scmp.eq.s32.totalorder %s19, 1
      %p93 = por %p91, %p92
      %p94 = scmp.ne.s32.totalorder %s83, %s84
      %p95 = scmp.eq.s32.totalorder %s19, 0
      %p96 = por %p94, %p95
      %p97 = scmp.ne.s32.totalorder %s83, %s84
      %p98 = scmp.eq.s32.totalorder %s20, 1
      %p99 = por %p97, %p98
      %p101 = scmp.ne.s32.totalorder %s84, %s100
      %p102 = scmp.eq.s32.totalorder %s20, 0
      %p103 = por %p101, %p102
      %p104 = scmp.le.s32.totalorder 1, %s14
      %p105 = scmp.lt.s32.totalorder %s14, 3
      %p106 = pnand %p104, %p105
      %p107 = pneg %p106
      // Predicated region
      $region9: #{tpu_custom_call.1} parent=5 // pred_check
        _
      $region10: #{tpu_custom_call.1} parent=5 // pred_check_branch
        %109 = sbr.rel (%p106) target = $region12
      $region11: #{tpu_custom_call.1} parent=5 // pred_region
        %s110 = ssub.s32 %s14, 1
        // Predicated region
        $region13: #{tpu_custom_call.1} parent=11 // pred_check
          %p111 = pneg %p47
        $region14: #{tpu_custom_call.1} parent=11 // pred_check_branch
          %113 = sbr.rel (%p111) target = $region16
        $region15: #{tpu_custom_call.1} parent=11 // pred_region
          %s115 = ssub.s32 131072, 131072
          %116 = vsyncadd [#allocation5], %s115
          %s117 = sshll.u32 [#allocation4], 4
          %s118 = int_to_ptr.vmem [resolvable:$true] %s117
          %123 = dma.hbm_to_vmem [thread:$0]  %s1, 131072, %s118, [#allocation5], 512, 512, 32
        $region16: #{tpu_custom_call.1} parent=11 // pred_fallthru
          _
        // Predicated region
        $region17: #{tpu_custom_call.1} parent=11 // pred_check
          %p124 = pneg %p68
        $region18: #{tpu_custom_call.1} parent=11 // pred_check_branch
          %126 = sbr.rel (%p124) target = $region20
        $region19: #{tpu_custom_call.1} parent=11 // pred_region
          %s128 = ssub.s32 64, 64
          %129 = vsyncadd [#allocation8], %s128
          %s131 = sshll.u32 [#allocation7], 4
          %s132 = int_to_ptr.vmem [resolvable:$true] %s131
          %134 = dma.hbm_to_vmem [thread:$0]  %s2, 64, %s132, [#allocation8]
        $region20: #{tpu_custom_call.1} parent=11 // pred_fallthru
          _
      $region12: #{tpu_custom_call.1} parent=5 // pred_fallthru
        _
      %p135 = scmp.lt.s32.totalorder %s14, 2
      // Predicated region
      $region21: #{tpu_custom_call.1} parent=5 // pred_check
        %p136 = pneg %p135
      $region22: #{tpu_custom_call.1} parent=5 // pred_check_branch
        %138 = sbr.rel (%p136) target = $region24
      $region23: #{tpu_custom_call.1} parent=5 // pred_region
        _
      $region24: #{tpu_custom_call.1} parent=5 // pred_fallthru
        _
      %p139 = scmp.le.s32.totalorder 1, %s14
      %p140 = scmp.lt.s32.totalorder %s14, 3
      %p141 = pnand %p139, %p140
      %p142 = pneg %p141
      // Predicated region
      $region25: #{tpu_custom_call.1} parent=5 // pred_check
        _
      $region26: #{tpu_custom_call.1} parent=5 // pred_check_branch
        %144 = sbr.rel (%p141) target = $region28
      $region27: #{tpu_custom_call.1} parent=5 // pred_region
        %s145 = ssub.s32 %s14, 1
        // Predicated region
        $region29: #{tpu_custom_call.1} parent=27 // pred_check
          %p146 = pneg %p47
        $region30: #{tpu_custom_call.1} parent=27 // pred_check_branch
          %148 = sbr.rel (%p146) target = $region32
        $region31: #{tpu_custom_call.1} parent=27 // pred_region
          %149 = dma.done [#allocation5], 131072
        $region32: #{tpu_custom_call.1} parent=27 // pred_fallthru
          _
        // Predicated region
        $region33: #{tpu_custom_call.1} parent=27 // pred_check
          %p150 = pneg %p68
        $region34: #{tpu_custom_call.1} parent=27 // pred_check_branch
          %152 = sbr.rel (%p150) target = $region36
        $region35: #{tpu_custom_call.1} parent=27 // pred_region
          %153 = dma.done [#allocation8], 64
        $region36: #{tpu_custom_call.1} parent=27 // pred_fallthru
          _
        %p154 = pneg %p47
        %p155 = pneg %p44
        %p156 = pneg %p68
        %p157 = pneg %p65
        %p158 = pneg %p96
        %p159 = pneg %p93
        %s160 = sand.u32 %s83, 1
        %s161 = scalar_lea.sflag [#allocation6], %s160
        %s162 = sand.u32 %s83, 1
        %s163 = smul.addr %s162, 64
        %s164 = scalar_lea.vmem [#allocation9], %s163
        %s165 = smul.u32 2, %s24
        %p166 = scmp.lt.s32.totalorder %s24, 0
        %s167 = ssub.s32 0, %s24
        %s168 = scalar_select %p166, %s167, %s24
        %s169 = sand.u32 %s168, 1
        %s170 = ssub.s32 0, %s169
        %s171 = scalar_select %p166, %s170, %s169
        %p172 = scmp.eq.s32.totalorder %s24, 0
        // Predicated region
        $region37: #{tpu_custom_call.1} parent=27 // pred_check
          %p173 = pneg %p172
        $region38: #{tpu_custom_call.1} parent=27 // pred_check_branch
          %175 = sbr.rel (%p173) target = $region40
        $region39: #{tpu_custom_call.1} parent=27 // pred_region
          %s176 = smul.u32 %s23, 16
          %s177 = smul.addr %s176, 128
          %s178 = scalar_lea.hbm %s0, %s177
          // Predicated region
          $region41: #{tpu_custom_call.1} parent=39 // pred_check
            _
          $region42: #{tpu_custom_call.1} parent=39 // pred_check_branch
            %180 = sbr.rel target = $region44
          $region43: #{tpu_custom_call.1} parent=39 // pred_region
            %181 = sst [smem:[#allocation12]] [#allocation11]
            %182 = sst [smem:[#allocation13]] [#allocation10]
          $region44: #{tpu_custom_call.1} parent=39 // pred_fallthru
            _
          %184 = shalt.err (0)
          %s186 = sshll.u32 [#allocation2], 4
          %s187 = int_to_ptr.vmem [resolvable:$true] %s186
          %189 = dma.hbm_to_vmem [thread:$0]  %s178, 2048, %s187, [#allocation3]
        $region40: #{tpu_custom_call.1} parent=27 // pred_fallthru
          _
        %s190 = sadd.s32 %s24, 1
        %p191 = scmp.lt.s32.totalorder %s190, 1
        // Predicated region
        $region45: #{tpu_custom_call.1} parent=27 // pred_check
          %p192 = pneg %p191
        $region46: #{tpu_custom_call.1} parent=27 // pred_check_branch
          %194 = sbr.rel (%p192) target = $region48
        $region47: #{tpu_custom_call.1} parent=27 // pred_region
          %s195 = ssub.s32 1, %s171
          %s196 = smul.u32 %s190, 16
          %s197 = sshra.s32 %s196, 3
          %s198 = sand.u32 %s196, 7
          %s199 = smul.u32 %s197, 4
          %s200 = smul.u32 %s23, 16
          %s201 = sadd.s32 %s199, %s200
          %s202 = smul.addr %s201, 128
          %s203 = scalar_lea.hbm %s0, %s202
          %s204 = smul.u32 %s195, 16
          %s205 = smul.addr %s204, 8
          %s206 = scalar_lea.vmem [#allocation2], %s205
          %s207 = scalar_lea.sflag [#allocation3], %s195
          // Predicated region
          $region49: #{tpu_custom_call.1} parent=47 // pred_check
            _
          $region50: #{tpu_custom_call.1} parent=47 // pred_check_branch
            %209 = sbr.rel target = $region52
          $region51: #{tpu_custom_call.1} parent=47 // pred_region
            %210 = sst [smem:[#allocation12]] [#allocation15]
            %211 = sst [smem:[#allocation13]] [#allocation14]
          $region52: #{tpu_custom_call.1} parent=47 // pred_fallthru
            _
          %213 = shalt.err (0)
          %s215 = sshll.u32 %s206, 4
          %s216 = int_to_ptr.vmem [resolvable:$true] %s215
          %218 = dma.hbm_to_vmem [thread:$0]  %s203, 2048, %s216, %s207
        $region48: #{tpu_custom_call.1} parent=27 // pred_fallthru
          _
        %s219 = smul.u32 %s171, 16
        %s220 = smul.addr %s219, 8
        %s221 = scalar_lea.vmem [#allocation2], %s220
        %s222 = scalar_lea.sflag [#allocation3], %s171
        %s223 = smul.u32 8, 4
        %s224 = smul.u32 %s223, 4
        %s225 = sshll.u32 %s224, 4
        %226 = dma.done %s222, %s225
        %v227 = vld [vmem:[%s221] sm:$0xff]
        %v228 = vld [vmem:[%s221 + $0x8] sm:$0xff]
        %v229 = vld [vmem:[%s221 + $0x10] sm:$0xff]
        %v230 = vld [vmem:[%s221 + $0x18] sm:$0xff]
        %v231 = vld [vmem:[%s221 + $0x20] sm:$0xff]
        %v232 = vld [vmem:[%s221 + $0x28] sm:$0xff]
        %v233 = vld [vmem:[%s221 + $0x30] sm:$0xff]
        %v234 = vld [vmem:[%s221 + $0x38] sm:$0xff]
        %v235 = vld [vmem:[#allocation4] sm:$0xff]
        %v236 = vld [vmem:[#allocation4 + $0x8] sm:$0xff]
        %v237 = vld [vmem:[#allocation4 + $0x10] sm:$0xff]
        %v238 = vld [vmem:[#allocation4 + $0x18] sm:$0xff]
        %v239 = vld [vmem:[#allocation4 + $0x20] sm:$0xff]
        %v240 = vld [vmem:[#allocation4 + $0x28] sm:$0xff]
        %v241 = vld [vmem:[#allocation4 + $0x30] sm:$0xff]
        %v242 = vld [vmem:[#allocation4 + $0x38] sm:$0xff]
        %v243 = vld [vmem:[#allocation4 + $0x40] sm:$0xff]
        %v244 = vld [vmem:[#allocation4 + $0x48] sm:$0xff]
        %v245 = vld [vmem:[#allocation4 + $0x50] sm:$0xff]
        %v246 = vld [vmem:[#allocation4 + $0x58] sm:$0xff]
        %v247 = vld [vmem:[#allocation4 + $0x60] sm:$0xff]
        %v248 = vld [vmem:[#allocation4 + $0x68] sm:$0xff]
        %v249 = vld [vmem:[#allocation4 + $0x70] sm:$0xff]
        %v250 = vld [vmem:[#allocation4 + $0x78] sm:$0xff]
        %v251 = vld [vmem:[#allocation4 + $0x80] sm:$0xff]
        %v252 = vld [vmem:[#allocation4 + $0x88] sm:$0xff]
        %v253 = vld [vmem:[#allocation4 + $0x90] sm:$0xff]
        %v254 = vld [vmem:[#allocation4 + $0x98] sm:$0xff]
        %v255 = vld [vmem:[#allocation4 + $0xa0] sm:$0xff]
        %v256 = vld [vmem:[#allocation4 + $0xa8] sm:$0xff]
        %v257 = vld [vmem:[#allocation4 + $0xb0] sm:$0xff]
        %v258 = vld [vmem:[#allocation4 + $0xb8] sm:$0xff]
        %v259 = vld [vmem:[#allocation4 + $0xc0] sm:$0xff]
        %v260 = vld [vmem:[#allocation4 + $0xc8] sm:$0xff]
        %v261 = vld [vmem:[#allocation4 + $0xd0] sm:$0xff]
        %v262 = vld [vmem:[#allocation4 + $0xd8] sm:$0xff]
        %v263 = vld [vmem:[#allocation4 + $0xe0] sm:$0xff]
        %v264 = vld [vmem:[#allocation4 + $0xe8] sm:$0xff]
        %v265 = vld [vmem:[#allocation4 + $0xf0] sm:$0xff]
        %v266 = vld [vmem:[#allocation4 + $0xf8] sm:$0xff]
        %v267 = vld [vmem:[#allocation4 + $0x100] sm:$0xff]
        %v268 = vld [vmem:[#allocation4 + $0x108] sm:$0xff]
        %v269 = vld [vmem:[#allocation4 + $0x110] sm:$0xff]
        %v270 = vld [vmem:[#allocation4 + $0x118] sm:$0xff]
        %v271 = vld [vmem:[#allocation4 + $0x120] sm:$0xff]
        %v272 = vld [vmem:[#allocation4 + $0x128] sm:$0xff]
        %v273 = vld [vmem:[#allocation4 + $0x130] sm:$0xff]
        %v274 = vld [vmem:[#allocation4 + $0x138] sm:$0xff]
        %v275 = vld [vmem:[#allocation4 + $0x140] sm:$0xff]
        %v276 = vld [vmem:[#allocation4 + $0x148] sm:$0xff]
        %v277 = vld [vmem:[#allocation4 + $0x150] sm:$0xff]
        %v278 = vld [vmem:[#allocation4 + $0x158] sm:$0xff]
        %v279 = vld [vmem:[#allocation4 + $0x160] sm:$0xff]
        %v280 = vld [vmem:[#allocation4 + $0x168] sm:$0xff]
        %v281 = vld [vmem:[#allocation4 + $0x170] sm:$0xff]
        %v282 = vld [vmem:[#allocation4 + $0x178] sm:$0xff]
        %v283 = vld [vmem:[#allocation4 + $0x180] sm:$0xff]
        %v284 = vld [vmem:[#allocation4 + $0x188] sm:$0xff]
        %v285 = vld [vmem:[#allocation4 + $0x190] sm:$0xff]
        %v286 = vld [vmem:[#allocation4 + $0x198] sm:$0xff]
        %v287 = vld [vmem:[#allocation4 + $0x1a0] sm:$0xff]
        %v288 = vld [vmem:[#allocation4 + $0x1a8] sm:$0xff]
        %v289 = vld [vmem:[#allocation4 + $0x1b0] sm:$0xff]
        %v290 = vld [vmem:[#allocation4 + $0x1b8] sm:$0xff]
        %v291 = vld [vmem:[#allocation4 + $0x1c0] sm:$0xff]
        %v292 = vld [vmem:[#allocation4 + $0x1c8] sm:$0xff]
        %v293 = vld [vmem:[#allocation4 + $0x1d0] sm:$0xff]
        %v294 = vld [vmem:[#allocation4 + $0x1d8] sm:$0xff]
        %v295 = vld [vmem:[#allocation4 + $0x1e0] sm:$0xff]
        %v296 = vld [vmem:[#allocation4 + $0x1e8] sm:$0xff]
        %v297 = vld [vmem:[#allocation4 + $0x1f0] sm:$0xff]
        %v298 = vld [vmem:[#allocation4 + $0x1f8] sm:$0xff]
        %v299 = vld [vmem:[#allocation4 + $0x200] sm:$0xff]
        %v300 = vld [vmem:[#allocation4 + $0x208] sm:$0xff]
        %v301 = vld [vmem:[#allocation4 + $0x210] sm:$0xff]
        %v302 = vld [vmem:[#allocation4 + $0x218] sm:$0xff]
        %v303 = vld [vmem:[#allocation4 + $0x220] sm:$0xff]
        %v304 = vld [vmem:[#allocation4 + $0x228] sm:$0xff]
        %v305 = vld [vmem:[#allocation4 + $0x230] sm:$0xff]
        %v306 = vld [vmem:[#allocation4 + $0x238] sm:$0xff]
        %v307 = vld [vmem:[#allocation4 + $0x240] sm:$0xff]
        %v308 = vld [vmem:[#allocation4 + $0x248] sm:$0xff]
        %v309 = vld [vmem:[#allocation4 + $0x250] sm:$0xff]
        %v310 = vld [vmem:[#allocation4 + $0x258] sm:$0xff]
        %v311 = vld [vmem:[#allocation4 + $0x260] sm:$0xff]
        %v312 = vld [vmem:[#allocation4 + $0x268] sm:$0xff]
        %v313 = vld [vmem:[#allocation4 + $0x270] sm:$0xff]
        %v314 = vld [vmem:[#allocation4 + $0x278] sm:$0xff]
        %v315 = vld [vmem:[#allocation4 + $0x280] sm:$0xff]
        %v316 = vld [vmem:[#allocation4 + $0x288] sm:$0xff]
        %v317 = vld [vmem:[#allocation4 + $0x290] sm:$0xff]
        %v318 = vld [vmem:[#allocation4 + $0x298] sm:$0xff]
        %v319 = vld [vmem:[#allocation4 + $0x2a0] sm:$0xff]
        %v320 = vld [vmem:[#allocation4 + $0x2a8] sm:$0xff]
        %v321 = vld [vmem:[#allocation4 + $0x2b0] sm:$0xff]
        %v322 = vld [vmem:[#allocation4 + $0x2b8] sm:$0xff]
        %v323 = vld [vmem:[#allocation4 + $0x2c0] sm:$0xff]
        %v324 = vld [vmem:[#allocation4 + $0x2c8] sm:$0xff]
        %v325 = vld [vmem:[#allocation4 + $0x2d0] sm:$0xff]
        %v326 = vld [vmem:[#allocation4 + $0x2d8] sm:$0xff]
        %v327 = vld [vmem:[#allocation4 + $0x2e0] sm:$0xff]
        %v328 = vld [vmem:[#allocation4 + $0x2e8] sm:$0xff]
        %v329 = vld [vmem:[#allocation4 + $0x2f0] sm:$0xff]
        %v330 = vld [vmem:[#allocation4 + $0x2f8] sm:$0xff]
        %v331 = vld [vmem:[#allocation4 + $0x300] sm:$0xff]
        %v332 = vld [vmem:[#allocation4 + $0x308] sm:$0xff]
        %v333 = vld [vmem:[#allocation4 + $0x310] sm:$0xff]
        %v334 = vld [vmem:[#allocation4 + $0x318] sm:$0xff]
        %v335 = vld [vmem:[#allocation4 + $0x320] sm:$0xff]
        %v336 = vld [vmem:[#allocation4 + $0x328] sm:$0xff]
        %v337 = vld [vmem:[#allocation4 + $0x330] sm:$0xff]
        %v338 = vld [vmem:[#allocation4 + $0x338] sm:$0xff]
        %v339 = vld [vmem:[#allocation4 + $0x340] sm:$0xff]
        %v340 = vld [vmem:[#allocation4 + $0x348] sm:$0xff]
        %v341 = vld [vmem:[#allocation4 + $0x350] sm:$0xff]
        %v342 = vld [vmem:[#allocation4 + $0x358] sm:$0xff]
        %v343 = vld [vmem:[#allocation4 + $0x360] sm:$0xff]
        %v344 = vld [vmem:[#allocation4 + $0x368] sm:$0xff]
        %v345 = vld [vmem:[#allocation4 + $0x370] sm:$0xff]
        %v346 = vld [vmem:[#allocation4 + $0x378] sm:$0xff]
        %v347 = vld [vmem:[#allocation4 + $0x380] sm:$0xff]
        %v348 = vld [vmem:[#allocation4 + $0x388] sm:$0xff]
        %v349 = vld [vmem:[#allocation4 + $0x390] sm:$0xff]
        %v350 = vld [vmem:[#allocation4 + $0x398] sm:$0xff]
        %v351 = vld [vmem:[#allocation4 + $0x3a0] sm:$0xff]
        %v352 = vld [vmem:[#allocation4 + $0x3a8] sm:$0xff]
        %v353 = vld [vmem:[#allocation4 + $0x3b0] sm:$0xff]
        %v354 = vld [vmem:[#allocation4 + $0x3b8] sm:$0xff]
        %v355 = vld [vmem:[#allocation4 + $0x3c0] sm:$0xff]
        %v356 = vld [vmem:[#allocation4 + $0x3c8] sm:$0xff]
        %v357 = vld [vmem:[#allocation4 + $0x3d0] sm:$0xff]
        %v358 = vld [vmem:[#allocation4 + $0x3d8] sm:$0xff]
        %v359 = vld [vmem:[#allocation4 + $0x3e0] sm:$0xff]
        %v360 = vld [vmem:[#allocation4 + $0x3e8] sm:$0xff]
        %v361 = vld [vmem:[#allocation4 + $0x3f0] sm:$0xff]
        %v362 = vld [vmem:[#allocation4 + $0x3f8] sm:$0xff]
        %v363 = vld [vmem:[#allocation4 + $0x400] sm:$0xff]
        %v364 = vld [vmem:[#allocation4 + $0x408] sm:$0xff]
        %v365 = vld [vmem:[#allocation4 + $0x410] sm:$0xff]
        %v366 = vld [vmem:[#allocation4 + $0x418] sm:$0xff]
        %v367 = vld [vmem:[#allocation4 + $0x420] sm:$0xff]
        %v368 = vld [vmem:[#allocation4 + $0x428] sm:$0xff]
        %v369 = vld [vmem:[#allocation4 + $0x430] sm:$0xff]
        %v370 = vld [vmem:[#allocation4 + $0x438] sm:$0xff]
        %v371 = vld [vmem:[#allocation4 + $0x440] sm:$0xff]
        %v372 = vld [vmem:[#allocation4 + $0x448] sm:$0xff]
        %v373 = vld [vmem:[#allocation4 + $0x450] sm:$0xff]
        %v374 = vld [vmem:[#allocation4 + $0x458] sm:$0xff]
        %v375 = vld [vmem:[#allocation4 + $0x460] sm:$0xff]
        %v376 = vld [vmem:[#allocation4 + $0x468] sm:$0xff]
        %v377 = vld [vmem:[#allocation4 + $0x470] sm:$0xff]
        %v378 = vld [vmem:[#allocation4 + $0x478] sm:$0xff]
        %v379 = vld [vmem:[#allocation4 + $0x480] sm:$0xff]
        %v380 = vld [vmem:[#allocation4 + $0x488] sm:$0xff]
        %v381 = vld [vmem:[#allocation4 + $0x490] sm:$0xff]
        %v382 = vld [vmem:[#allocation4 + $0x498] sm:$0xff]
        %v383 = vld [vmem:[#allocation4 + $0x4a0] sm:$0xff]
        %v384 = vld [vmem:[#allocation4 + $0x4a8] sm:$0xff]
        %v385 = vld [vmem:[#allocation4 + $0x4b0] sm:$0xff]
        %v386 = vld [vmem:[#allocation4 + $0x4b8] sm:$0xff]
        %v387 = vld [vmem:[#allocation4 + $0x4c0] sm:$0xff]
        %v388 = vld [vmem:[#allocation4 + $0x4c8] sm:$0xff]
        %v389 = vld [vmem:[#allocation4 + $0x4d0] sm:$0xff]
        %v390 = vld [vmem:[#allocation4 + $0x4d8] sm:$0xff]
        %v391 = vld [vmem:[#allocation4 + $0x4e0] sm:$0xff]
        %v392 = vld [vmem:[#allocation4 + $0x4e8] sm:$0xff]
        %v393 = vld [vmem:[#allocation4 + $0x4f0] sm:$0xff]
        %v394 = vld [vmem:[#allocation4 + $0x4f8] sm:$0xff]
        %v395 = vld [vmem:[#allocation4 + $0x500] sm:$0xff]
        %v396 = vld [vmem:[#allocation4 + $0x508] sm:$0xff]
        %v397 = vld [vmem:[#allocation4 + $0x510] sm:$0xff]
        %v398 = vld [vmem:[#allocation4 + $0x518] sm:$0xff]
        %v399 = vld [vmem:[#allocation4 + $0x520] sm:$0xff]
        %v400 = vld [vmem:[#allocation4 + $0x528] sm:$0xff]
        %v401 = vld [vmem:[#allocation4 + $0x530] sm:$0xff]
        %v402 = vld [vmem:[#allocation4 + $0x538] sm:$0xff]
        %v403 = vld [vmem:[#allocation4 + $0x540] sm:$0xff]
        %v404 = vld [vmem:[#allocation4 + $0x548] sm:$0xff]
        %v405 = vld [vmem:[#allocation4 + $0x550] sm:$0xff]
        %v406 = vld [vmem:[#allocation4 + $0x558] sm:$0xff]
        %v407 = vld [vmem:[#allocation4 + $0x560] sm:$0xff]
        %v408 = vld [vmem:[#allocation4 + $0x568] sm:$0xff]
        %v409 = vld [vmem:[#allocation4 + $0x570] sm:$0xff]
        %v410 = vld [vmem:[#allocation4 + $0x578] sm:$0xff]
        %v411 = vld [vmem:[#allocation4 + $0x580] sm:$0xff]
        %v412 = vld [vmem:[#allocation4 + $0x588] sm:$0xff]
        %v413 = vld [vmem:[#allocation4 + $0x590] sm:$0xff]
        %v414 = vld [vmem:[#allocation4 + $0x598] sm:$0xff]
        %v415 = vld [vmem:[#allocation4 + $0x5a0] sm:$0xff]
        %v416 = vld [vmem:[#allocation4 + $0x5a8] sm:$0xff]
        %v417 = vld [vmem:[#allocation4 + $0x5b0] sm:$0xff]
        %v418 = vld [vmem:[#allocation4 + $0x5b8] sm:$0xff]
        %v419 = vld [vmem:[#allocation4 + $0x5c0] sm:$0xff]
        %v420 = vld [vmem:[#allocation4 + $0x5c8] sm:$0xff]
        %v421 = vld [vmem:[#allocation4 + $0x5d0] sm:$0xff]
        %v422 = vld [vmem:[#allocation4 + $0x5d8] sm:$0xff]
        %v423 = vld [vmem:[#allocation4 + $0x5e0] sm:$0xff]
        %v424 = vld [vmem:[#allocation4 + $0x5e8] sm:$0xff]
        %v425 = vld [vmem:[#allocation4 + $0x5f0] sm:$0xff]
        %v426 = vld [vmem:[#allocation4 + $0x5f8] sm:$0xff]
        %v427 = vld [vmem:[#allocation4 + $0x600] sm:$0xff]
        %v428 = vld [vmem:[#allocation4 + $0x608] sm:$0xff]
        %v429 = vld [vmem:[#allocation4 + $0x610] sm:$0xff]
        %v430 = vld [vmem:[#allocation4 + $0x618] sm:$0xff]
        %v431 = vld [vmem:[#allocation4 + $0x620] sm:$0xff]
        %v432 = vld [vmem:[#allocation4 + $0x628] sm:$0xff]
        %v433 = vld [vmem:[#allocation4 + $0x630] sm:$0xff]
        %v434 = vld [vmem:[#allocation4 + $0x638] sm:$0xff]
        %v435 = vld [vmem:[#allocation4 + $0x640] sm:$0xff]
        %v436 = vld [vmem:[#allocation4 + $0x648] sm:$0xff]
        %v437 = vld [vmem:[#allocation4 + $0x650] sm:$0xff]
        %v438 = vld [vmem:[#allocation4 + $0x658] sm:$0xff]
        %v439 = vld [vmem:[#allocation4 + $0x660] sm:$0xff]
        %v440 = vld [vmem:[#allocation4 + $0x668] sm:$0xff]
        %v441 = vld [vmem:[#allocation4 + $0x670] sm:$0xff]
        %v442 = vld [vmem:[#allocation4 + $0x678] sm:$0xff]
        %v443 = vld [vmem:[#allocation4 + $0x680] sm:$0xff]
        %v444 = vld [vmem:[#allocation4 + $0x688] sm:$0xff]
        %v445 = vld [vmem:[#allocation4 + $0x690] sm:$0xff]
        %v446 = vld [vmem:[#allocation4 + $0x698] sm:$0xff]
        %v447 = vld [vmem:[#allocation4 + $0x6a0] sm:$0xff]
        %v448 = vld [vmem:[#allocation4 + $0x6a8] sm:$0xff]
        %v449 = vld [vmem:[#allocation4 + $0x6b0] sm:$0xff]
        %v450 = vld [vmem:[#allocation4 + $0x6b8] sm:$0xff]
        %v451 = vld [vmem:[#allocation4 + $0x6c0] sm:$0xff]
        %v452 = vld [vmem:[#allocation4 + $0x6c8] sm:$0xff]
        %v453 = vld [vmem:[#allocation4 + $0x6d0] sm:$0xff]
        %v454 = vld [vmem:[#allocation4 + $0x6d8] sm:$0xff]
        %v455 = vld [vmem:[#allocation4 + $0x6e0] sm:$0xff]
        %v456 = vld [vmem:[#allocation4 + $0x6e8] sm:$0xff]
        %v457 = vld [vmem:[#allocation4 + $0x6f0] sm:$0xff]
        %v458 = vld [vmem:[#allocation4 + $0x6f8] sm:$0xff]
        %v459 = vld [vmem:[#allocation4 + $0x700] sm:$0xff]
        %v460 = vld [vmem:[#allocation4 + $0x708] sm:$0xff]
        %v461 = vld [vmem:[#allocation4 + $0x710] sm:$0xff]
        %v462 = vld [vmem:[#allocation4 + $0x718] sm:$0xff]
        %v463 = vld [vmem:[#allocation4 + $0x720] sm:$0xff]
        %v464 = vld [vmem:[#allocation4 + $0x728] sm:$0xff]
        %v465 = vld [vmem:[#allocation4 + $0x730] sm:$0xff]
        %v466 = vld [vmem:[#allocation4 + $0x738] sm:$0xff]
        %v467 = vld [vmem:[#allocation4 + $0x740] sm:$0xff]
        %v468 = vld [vmem:[#allocation4 + $0x748] sm:$0xff]
        %v469 = vld [vmem:[#allocation4 + $0x750] sm:$0xff]
        %v470 = vld [vmem:[#allocation4 + $0x758] sm:$0xff]
        %v471 = vld [vmem:[#allocation4 + $0x760] sm:$0xff]
        %v472 = vld [vmem:[#allocation4 + $0x768] sm:$0xff]
        %v473 = vld [vmem:[#allocation4 + $0x770] sm:$0xff]
        %v474 = vld [vmem:[#allocation4 + $0x778] sm:$0xff]
        %v475 = vld [vmem:[#allocation4 + $0x780] sm:$0xff]
        %v476 = vld [vmem:[#allocation4 + $0x788] sm:$0xff]
        %v477 = vld [vmem:[#allocation4 + $0x790] sm:$0xff]
        %v478 = vld [vmem:[#allocation4 + $0x798] sm:$0xff]
        %v479 = vld [vmem:[#allocation4 + $0x7a0] sm:$0xff]
        %v480 = vld [vmem:[#allocation4 + $0x7a8] sm:$0xff]
        %v481 = vld [vmem:[#allocation4 + $0x7b0] sm:$0xff]
        %v482 = vld [vmem:[#allocation4 + $0x7b8] sm:$0xff]
        %v483 = vld [vmem:[#allocation4 + $0x7c0] sm:$0xff]
        %v484 = vld [vmem:[#allocation4 + $0x7c8] sm:$0xff]
        %v485 = vld [vmem:[#allocation4 + $0x7d0] sm:$0xff]
        %v486 = vld [vmem:[#allocation4 + $0x7d8] sm:$0xff]
        %v487 = vld [vmem:[#allocation4 + $0x7e0] sm:$0xff]
        %v488 = vld [vmem:[#allocation4 + $0x7e8] sm:$0xff]
        %v489 = vld [vmem:[#allocation4 + $0x7f0] sm:$0xff]
        %v490 = vld [vmem:[#allocation4 + $0x7f8] sm:$0xff]
        %v491 = vld [vmem:[%s221] sm:$0xfe]
        %v492 = vld [vmem:[%s221 + $0x8] sm:$0xfe]
        %v493 = vld [vmem:[%s221 + $0x10] sm:$0xfe]
        %v494 = vld [vmem:[%s221 + $0x18] sm:$0xfe]
        %v495 = vld [vmem:[%s221 + $0x40] sm:$0x1]
        %v496 = vld [vmem:[%s221 + $0x48] sm:$0x1]
        %v497 = vld [vmem:[%s221 + $0x50] sm:$0x1]
        %v498 = vld [vmem:[%s221 + $0x58] sm:$0x1]
        %s499 = scalar_lea.vmem [#allocation4], 2048
        %v500 = vld [vmem:[%s499] sm:$0xff]
        %v501 = vld [vmem:[%s499 + $0x8] sm:$0xff]
        %v502 = vld [vmem:[%s499 + $0x10] sm:$0xff]
        %v503 = vld [vmem:[%s499 + $0x18] sm:$0xff]
        %v504 = vld [vmem:[%s499 + $0x20] sm:$0xff]
        %v505 = vld [vmem:[%s499 + $0x28] sm:$0xff]
        %v506 = vld [vmem:[%s499 + $0x30] sm:$0xff]
        %v507 = vld [vmem:[%s499 + $0x38] sm:$0xff]
        %v508 = vld [vmem:[%s499 + $0x40] sm:$0xff]
        %v509 = vld [vmem:[%s499 + $0x48] sm:$0xff]
        %v510 = vld [vmem:[%s499 + $0x50] sm:$0xff]
        %v511 = vld [vmem:[%s499 + $0x58] sm:$0xff]
        %v512 = vld [vmem:[%s499 + $0x60] sm:$0xff]
        %v513 = vld [vmem:[%s499 + $0x68] sm:$0xff]
        %v514 = vld [vmem:[%s499 + $0x70] sm:$0xff]
        %v515 = vld [vmem:[%s499 + $0x78] sm:$0xff]
        %v516 = vld [vmem:[%s499 + $0x80] sm:$0xff]
        %v517 = vld [vmem:[%s499 + $0x88] sm:$0xff]
        %v518 = vld [vmem:[%s499 + $0x90] sm:$0xff]
        %v519 = vld [vmem:[%s499 + $0x98] sm:$0xff]
        %v520 = vld [vmem:[%s499 + $0xa0] sm:$0xff]
        %v521 = vld [vmem:[%s499 + $0xa8] sm:$0xff]
        %v522 = vld [vmem:[%s499 + $0xb0] sm:$0xff]
        %v523 = vld [vmem:[%s499 + $0xb8] sm:$0xff]
        %v524 = vld [vmem:[%s499 + $0xc0] sm:$0xff]
        %v525 = vld [vmem:[%s499 + $0xc8] sm:$0xff]
        %v526 = vld [vmem:[%s499 + $0xd0] sm:$0xff]
        %v527 = vld [vmem:[%s499 + $0xd8] sm:$0xff]
        %v528 = vld [vmem:[%s499 + $0xe0] sm:$0xff]
        %v529 = vld [vmem:[%s499 + $0xe8] sm:$0xff]
        %v530 = vld [vmem:[%s499 + $0xf0] sm:$0xff]
        %v531 = vld [vmem:[%s499 + $0xf8] sm:$0xff]
        %v532 = vld [vmem:[%s499 + $0x100] sm:$0xff]
        %v533 = vld [vmem:[%s499 + $0x108] sm:$0xff]
        %v534 = vld [vmem:[%s499 + $0x110] sm:$0xff]
        %v535 = vld [vmem:[%s499 + $0x118] sm:$0xff]
        %v536 = vld [vmem:[%s499 + $0x120] sm:$0xff]
        %v537 = vld [vmem:[%s499 + $0x128] sm:$0xff]
        %v538 = vld [vmem:[%s499 + $0x130] sm:$0xff]
        %v539 = vld [vmem:[%s499 + $0x138] sm:$0xff]
        %v540 = vld [vmem:[%s499 + $0x140] sm:$0xff]
        %v541 = vld [vmem:[%s499 + $0x148] sm:$0xff]
        %v542 = vld [vmem:[%s499 + $0x150] sm:$0xff]
        %v543 = vld [vmem:[%s499 + $0x158] sm:$0xff]
        %v544 = vld [vmem:[%s499 + $0x160] sm:$0xff]
        %v545 = vld [vmem:[%s499 + $0x168] sm:$0xff]
        %v546 = vld [vmem:[%s499 + $0x170] sm:$0xff]
        %v547 = vld [vmem:[%s499 + $0x178] sm:$0xff]
        %v548 = vld [vmem:[%s499 + $0x180] sm:$0xff]
        %v549 = vld [vmem:[%s499 + $0x188] sm:$0xff]
        %v550 = vld [vmem:[%s499 + $0x190] sm:$0xff]
        %v551 = vld [vmem:[%s499 + $0x198] sm:$0xff]
        %v552 = vld [vmem:[%s499 + $0x1a0] sm:$0xff]
        %v553 = vld [vmem:[%s499 + $0x1a8] sm:$0xff]
        %v554 = vld [vmem:[%s499 + $0x1b0] sm:$0xff]
        %v555 = vld [vmem:[%s499 + $0x1b8] sm:$0xff]
        %v556 = vld [vmem:[%s499 + $0x1c0] sm:$0xff]
        %v557 = vld [vmem:[%s499 + $0x1c8] sm:$0xff]
        %v558 = vld [vmem:[%s499 + $0x1d0] sm:$0xff]
        %v559 = vld [vmem:[%s499 + $0x1d8] sm:$0xff]
        %v560 = vld [vmem:[%s499 + $0x1e0] sm:$0xff]
        %v561 = vld [vmem:[%s499 + $0x1e8] sm:$0xff]
        %v562 = vld [vmem:[%s499 + $0x1f0] sm:$0xff]
        %v563 = vld [vmem:[%s499 + $0x1f8] sm:$0xff]
        %v564 = vld [vmem:[%s499 + $0x200] sm:$0xff]
        %v565 = vld [vmem:[%s499 + $0x208] sm:$0xff]
        %v566 = vld [vmem:[%s499 + $0x210] sm:$0xff]
        %v567 = vld [vmem:[%s499 + $0x218] sm:$0xff]
        %v568 = vld [vmem:[%s499 + $0x220] sm:$0xff]
        %v569 = vld [vmem:[%s499 + $0x228] sm:$0xff]
        %v570 = vld [vmem:[%s499 + $0x230] sm:$0xff]
        %v571 = vld [vmem:[%s499 + $0x238] sm:$0xff]
        %v572 = vld [vmem:[%s499 + $0x240] sm:$0xff]
        %v573 = vld [vmem:[%s499 + $0x248] sm:$0xff]
        %v574 = vld [vmem:[%s499 + $0x250] sm:$0xff]
        %v575 = vld [vmem:[%s499 + $0x258] sm:$0xff]
        %v576 = vld [vmem:[%s499 + $0x260] sm:$0xff]
        %v577 = vld [vmem:[%s499 + $0x268] sm:$0xff]
        %v578 = vld [vmem:[%s499 + $0x270] sm:$0xff]
        %v579 = vld [vmem:[%s499 + $0x278] sm:$0xff]
        %v580 = vld [vmem:[%s499 + $0x280] sm:$0xff]
        %v581 = vld [vmem:[%s499 + $0x288] sm:$0xff]
        %v582 = vld [vmem:[%s499 + $0x290] sm:$0xff]
        %v583 = vld [vmem:[%s499 + $0x298] sm:$0xff]
        %v584 = vld [vmem:[%s499 + $0x2a0] sm:$0xff]
        %v585 = vld [vmem:[%s499 + $0x2a8] sm:$0xff]
        %v586 = vld [vmem:[%s499 + $0x2b0] sm:$0xff]
        %v587 = vld [vmem:[%s499 + $0x2b8] sm:$0xff]
        %v588 = vld [vmem:[%s499 + $0x2c0] sm:$0xff]
        %v589 = vld [vmem:[%s499 + $0x2c8] sm:$0xff]
        %v590 = vld [vmem:[%s499 + $0x2d0] sm:$0xff]
        %v591 = vld [vmem:[%s499 + $0x2d8] sm:$0xff]
        %v592 = vld [vmem:[%s499 + $0x2e0] sm:$0xff]
        %v593 = vld [vmem:[%s499 + $0x2e8] sm:$0xff]
        %v594 = vld [vmem:[%s499 + $0x2f0] sm:$0xff]
        %v595 = vld [vmem:[%s499 + $0x2f8] sm:$0xff]
        %v596 = vld [vmem:[%s499 + $0x300] sm:$0xff]
        %v597 = vld [vmem:[%s499 + $0x308] sm:$0xff]
        %v598 = vld [vmem:[%s499 + $0x310] sm:$0xff]
        %v599 = vld [vmem:[%s499 + $0x318] sm:$0xff]
        %v600 = vld [vmem:[%s499 + $0x320] sm:$0xff]
        %v601 = vld [vmem:[%s499 + $0x328] sm:$0xff]
        %v602 = vld [vmem:[%s499 + $0x330] sm:$0xff]
        %v603 = vld [vmem:[%s499 + $0x338] sm:$0xff]
        %v604 = vld [vmem:[%s499 + $0x340] sm:$0xff]
        %v605 = vld [vmem:[%s499 + $0x348] sm:$0xff]
        %v606 = vld [vmem:[%s499 + $0x350] sm:$0xff]
        %v607 = vld [vmem:[%s499 + $0x358] sm:$0xff]
        %v608 = vld [vmem:[%s499 + $0x360] sm:$0xff]
        %v609 = vld [vmem:[%s499 + $0x368] sm:$0xff]
        %v610 = vld [vmem:[%s499 + $0x370] sm:$0xff]
        %v611 = vld [vmem:[%s499 + $0x378] sm:$0xff]
        %v612 = vld [vmem:[%s499 + $0x380] sm:$0xff]
        %v613 = vld [vmem:[%s499 + $0x388] sm:$0xff]
        %v614 = vld [vmem:[%s499 + $0x390] sm:$0xff]
        %v615 = vld [vmem:[%s499 + $0x398] sm:$0xff]
        %v616 = vld [vmem:[%s499 + $0x3a0] sm:$0xff]
        %v617 = vld [vmem:[%s499 + $0x3a8] sm:$0xff]
        %v618 = vld [vmem:[%s499 + $0x3b0] sm:$0xff]
        %v619 = vld [vmem:[%s499 + $0x3b8] sm:$0xff]
        %v620 = vld [vmem:[%s499 + $0x3c0] sm:$0xff]
        %v621 = vld [vmem:[%s499 + $0x3c8] sm:$0xff]
        %v622 = vld [vmem:[%s499 + $0x3d0] sm:$0xff]
        %v623 = vld [vmem:[%s499 + $0x3d8] sm:$0xff]
        %v624 = vld [vmem:[%s499 + $0x3e0] sm:$0xff]
        %v625 = vld [vmem:[%s499 + $0x3e8] sm:$0xff]
        %v626 = vld [vmem:[%s499 + $0x3f0] sm:$0xff]
        %v627 = vld [vmem:[%s499 + $0x3f8] sm:$0xff]
        %v628 = vld [vmem:[%s499 + $0x400] sm:$0xff]
        %v629 = vld [vmem:[%s499 + $0x408] sm:$0xff]
        %v630 = vld [vmem:[%s499 + $0x410] sm:$0xff]
        %v631 = vld [vmem:[%s499 + $0x418] sm:$0xff]
        %v632 = vld [vmem:[%s499 + $0x420] sm:$0xff]
        %v633 = vld [vmem:[%s499 + $0x428] sm:$0xff]
        %v634 = vld [vmem:[%s499 + $0x430] sm:$0xff]
        %v635 = vld [vmem:[%s499 + $0x438] sm:$0xff]
        %v636 = vld [vmem:[%s499 + $0x440] sm:$0xff]
        %v637 = vld [vmem:[%s499 + $0x448] sm:$0xff]
        %v638 = vld [vmem:[%s499 + $0x450] sm:$0xff]
        %v639 = vld [vmem:[%s499 + $0x458] sm:$0xff]
        %v640 = vld [vmem:[%s499 + $0x460] sm:$0xff]
        %v641 = vld [vmem:[%s499 + $0x468] sm:$0xff]
        %v642 = vld [vmem:[%s499 + $0x470] sm:$0xff]
        %v643 = vld [vmem:[%s499 + $0x478] sm:$0xff]
        %v644 = vld [vmem:[%s499 + $0x480] sm:$0xff]
        %v645 = vld [vmem:[%s499 + $0x488] sm:$0xff]
        %v646 = vld [vmem:[%s499 + $0x490] sm:$0xff]
        %v647 = vld [vmem:[%s499 + $0x498] sm:$0xff]
        %v648 = vld [vmem:[%s499 + $0x4a0] sm:$0xff]
        %v649 = vld [vmem:[%s499 + $0x4a8] sm:$0xff]
        %v650 = vld [vmem:[%s499 + $0x4b0] sm:$0xff]
        %v651 = vld [vmem:[%s499 + $0x4b8] sm:$0xff]
        %v652 = vld [vmem:[%s499 + $0x4c0] sm:$0xff]
        %v653 = vld [vmem:[%s499 + $0x4c8] sm:$0xff]
        %v654 = vld [vmem:[%s499 + $0x4d0] sm:$0xff]
        %v655 = vld [vmem:[%s499 + $0x4d8] sm:$0xff]
        %v656 = vld [vmem:[%s499 + $0x4e0] sm:$0xff]
        %v657 = vld [vmem:[%s499 + $0x4e8] sm:$0xff]
        %v658 = vld [vmem:[%s499 + $0x4f0] sm:$0xff]
        %v659 = vld [vmem:[%s499 + $0x4f8] sm:$0xff]
        %v660 = vld [vmem:[%s499 + $0x500] sm:$0xff]
        %v661 = vld [vmem:[%s499 + $0x508] sm:$0xff]
        %v662 = vld [vmem:[%s499 + $0x510] sm:$0xff]
        %v663 = vld [vmem:[%s499 + $0x518] sm:$0xff]
        %v664 = vld [vmem:[%s499 + $0x520] sm:$0xff]
        %v665 = vld [vmem:[%s499 + $0x528] sm:$0xff]
        %v666 = vld [vmem:[%s499 + $0x530] sm:$0xff]
        %v667 = vld [vmem:[%s499 + $0x538] sm:$0xff]
        %v668 = vld [vmem:[%s499 + $0x540] sm:$0xff]
        %v669 = vld [vmem:[%s499 + $0x548] sm:$0xff]
        %v670 = vld [vmem:[%s499 + $0x550] sm:$0xff]
        %v671 = vld [vmem:[%s499 + $0x558] sm:$0xff]
        %v672 = vld [vmem:[%s499 + $0x560] sm:$0xff]
        %v673 = vld [vmem:[%s499 + $0x568] sm:$0xff]
        %v674 = vld [vmem:[%s499 + $0x570] sm:$0xff]
        %v675 = vld [vmem:[%s499 + $0x578] sm:$0xff]
        %v676 = vld [vmem:[%s499 + $0x580] sm:$0xff]
        %v677 = vld [vmem:[%s499 + $0x588] sm:$0xff]
        %v678 = vld [vmem:[%s499 + $0x590] sm:$0xff]
        %v679 = vld [vmem:[%s499 + $0x598] sm:$0xff]
        %v680 = vld [vmem:[%s499 + $0x5a0] sm:$0xff]
        %v681 = vld [vmem:[%s499 + $0x5a8] sm:$0xff]
        %v682 = vld [vmem:[%s499 + $0x5b0] sm:$0xff]
        %v683 = vld [vmem:[%s499 + $0x5b8] sm:$0xff]
        %v684 = vld [vmem:[%s499 + $0x5c0] sm:$0xff]
        %v685 = vld [vmem:[%s499 + $0x5c8] sm:$0xff]
        %v686 = vld [vmem:[%s499 + $0x5d0] sm:$0xff]
        %v687 = vld [vmem:[%s499 + $0x5d8] sm:$0xff]
        %v688 = vld [vmem:[%s499 + $0x5e0] sm:$0xff]
        %v689 = vld [vmem:[%s499 + $0x5e8] sm:$0xff]
        %v690 = vld [vmem:[%s499 + $0x5f0] sm:$0xff]
        %v691 = vld [vmem:[%s499 + $0x5f8] sm:$0xff]
        %v692 = vld [vmem:[%s499 + $0x600] sm:$0xff]
        %v693 = vld [vmem:[%s499 + $0x608] sm:$0xff]
        %v694 = vld [vmem:[%s499 + $0x610] sm:$0xff]
        %v695 = vld [vmem:[%s499 + $0x618] sm:$0xff]
        %v696 = vld [vmem:[%s499 + $0x620] sm:$0xff]
        %v697 = vld [vmem:[%s499 + $0x628] sm:$0xff]
        %v698 = vld [vmem:[%s499 + $0x630] sm:$0xff]
        %v699 = vld [vmem:[%s499 + $0x638] sm:$0xff]
        %v700 = vld [vmem:[%s499 + $0x640] sm:$0xff]
        %v701 = vld [vmem:[%s499 + $0x648] sm:$0xff]
        %v702 = vld [vmem:[%s499 + $0x650] sm:$0xff]
        %v703 = vld [vmem:[%s499 + $0x658] sm:$0xff]
        %v704 = vld [vmem:[%s499 + $0x660] sm:$0xff]
        %v705 = vld [vmem:[%s499 + $0x668] sm:$0xff]
        %v706 = vld [vmem:[%s499 + $0x670] sm:$0xff]
        %v707 = vld [vmem:[%s499 + $0x678] sm:$0xff]
        %v708 = vld [vmem:[%s499 + $0x680] sm:$0xff]
        %v709 = vld [vmem:[%s499 + $0x688] sm:$0xff]
        %v710 = vld [vmem:[%s499 + $0x690] sm:$0xff]
        %v711 = vld [vmem:[%s499 + $0x698] sm:$0xff]
        %v712 = vld [vmem:[%s499 + $0x6a0] sm:$0xff]
        %v713 = vld [vmem:[%s499 + $0x6a8] sm:$0xff]
        %v714 = vld [vmem:[%s499 + $0x6b0] sm:$0xff]
        %v715 = vld [vmem:[%s499 + $0x6b8] sm:$0xff]
        %v716 = vld [vmem:[%s499 + $0x6c0] sm:$0xff]
        %v717 = vld [vmem:[%s499 + $0x6c8] sm:$0xff]
        %v718 = vld [vmem:[%s499 + $0x6d0] sm:$0xff]
        %v719 = vld [vmem:[%s499 + $0x6d8] sm:$0xff]
        %v720 = vld [vmem:[%s499 + $0x6e0] sm:$0xff]
        %v721 = vld [vmem:[%s499 + $0x6e8] sm:$0xff]
        %v722 = vld [vmem:[%s499 + $0x6f0] sm:$0xff]
        %v723 = vld [vmem:[%s499 + $0x6f8] sm:$0xff]
        %v724 = vld [vmem:[%s499 + $0x700] sm:$0xff]
        %v725 = vld [vmem:[%s499 + $0x708] sm:$0xff]
        %v726 = vld [vmem:[%s499 + $0x710] sm:$0xff]
        %v727 = vld [vmem:[%s499 + $0x718] sm:$0xff]
        %v728 = vld [vmem:[%s499 + $0x720] sm:$0xff]
        %v729 = vld [vmem:[%s499 + $0x728] sm:$0xff]
        %v730 = vld [vmem:[%s499 + $0x730] sm:$0xff]
        %v731 = vld [vmem:[%s499 + $0x738] sm:$0xff]
        %v732 = vld [vmem:[%s499 + $0x740] sm:$0xff]
        %v733 = vld [vmem:[%s499 + $0x748] sm:$0xff]
        %v734 = vld [vmem:[%s499 + $0x750] sm:$0xff]
        %v735 = vld [vmem:[%s499 + $0x758] sm:$0xff]
        %v736 = vld [vmem:[%s499 + $0x760] sm:$0xff]
        %v737 = vld [vmem:[%s499 + $0x768] sm:$0xff]
        %v738 = vld [vmem:[%s499 + $0x770] sm:$0xff]
        %v739 = vld [vmem:[%s499 + $0x778] sm:$0xff]
        %v740 = vld [vmem:[%s499 + $0x780] sm:$0xff]
        %v741 = vld [vmem:[%s499 + $0x788] sm:$0xff]
        %v742 = vld [vmem:[%s499 + $0x790] sm:$0xff]
        %v743 = vld [vmem:[%s499 + $0x798] sm:$0xff]
        %v744 = vld [vmem:[%s499 + $0x7a0] sm:$0xff]
        %v745 = vld [vmem:[%s499 + $0x7a8] sm:$0xff]
        %v746 = vld [vmem:[%s499 + $0x7b0] sm:$0xff]
        %v747 = vld [vmem:[%s499 + $0x7b8] sm:$0xff]
        %v748 = vld [vmem:[%s499 + $0x7c0] sm:$0xff]
        %v749 = vld [vmem:[%s499 + $0x7c8] sm:$0xff]
        %v750 = vld [vmem:[%s499 + $0x7d0] sm:$0xff]
        %v751 = vld [vmem:[%s499 + $0x7d8] sm:$0xff]
        %v752 = vld [vmem:[%s499 + $0x7e0] sm:$0xff]
        %v753 = vld [vmem:[%s499 + $0x7e8] sm:$0xff]
        %v754 = vld [vmem:[%s499 + $0x7f0] sm:$0xff]
        %v755 = vld [vmem:[%s499 + $0x7f8] sm:$0xff]
        %vm768 = vcmask 1046528
        %v769 = vrot.slane %v491, 1
        %v770 = vrot.slane %v231, 1
        %v771 = vsel %vm768, %v769, %v770
        %v772 = vrot.slane %v492, 1
        %v773 = vrot.slane %v232, 1
        %v774 = vsel %vm768, %v772, %v773
        %v775 = vrot.slane %v493, 1
        %v776 = vrot.slane %v233, 1
        %v777 = vsel %vm768, %v775, %v776
        %v778 = vrot.slane %v494, 1
        %v779 = vrot.slane %v234, 1
        %v780 = vsel %vm768, %v778, %v779
        %v781 = vrot.slane %v495, 1
        %v782 = vsel %vm768, %v770, %v781
        %v783 = vrot.slane %v496, 1
        %v784 = vsel %vm768, %v773, %v783
        %v785 = vrot.slane %v497, 1
        %v786 = vsel %vm768, %v776, %v785
        %v787 = vrot.slane %v498, 1
        %v788 = vsel %vm768, %v779, %v787
        %797 = vmatprep.subr.mxu0 %v501
        %798 = vmatpush1.msra.mxu0 %v500
        %799 = vmatprep.subr.mxu0 %v505
        %800 = vmatpush1.msra.mxu0 %v504
        %801 = vmatprep.subr.mxu0 %v509
        %802 = vmatpush1.msra.mxu0 %v508
        %803 = vmatprep.subr.mxu0 %v513
        %804 = vmatpush1.msra.mxu0 %v512
        %805 = vmatprep.subr.mxu0 %v517
        %806 = vmatpush1.msra.mxu0 %v516
        %807 = vmatprep.subr.mxu0 %v521
        %808 = vmatpush1.msra.mxu0 %v520
        %809 = vmatprep.subr.mxu0 %v525
        %810 = vmatpush1.msra.mxu0 %v524
        %811 = vmatprep.subr.mxu0 %v529
        %812 = vmatpush1.msra.mxu0 %v528
        %813 = vmatprep.subr.mxu0 %v533
        %814 = vmatpush1.msra.mxu0 %v532
        %815 = vmatprep.subr.mxu0 %v537
        %816 = vmatpush1.msra.mxu0 %v536
        %817 = vmatprep.subr.mxu0 %v541
        %818 = vmatpush1.msra.mxu0 %v540
        %819 = vmatprep.subr.mxu0 %v545
        %820 = vmatpush1.msra.mxu0 %v544
        %821 = vmatprep.subr.mxu0 %v549
        %822 = vmatpush1.msra.mxu0 %v548
        %823 = vmatprep.subr.mxu0 %v553
        %824 = vmatpush1.msra.mxu0 %v552
        %825 = vmatprep.subr.mxu0 %v557
        %826 = vmatpush1.msra.mxu0 %v556
        %827 = vmatprep.subr.mxu0 %v561
        %828 = vmatpush1.msra.mxu0 %v560
        %829 = vmatprep.subr.mxu0 %v565
        %830 = vmatpush1.msra.mxu0 %v564
        %831 = vmatprep.subr.mxu0 %v569
        %832 = vmatpush1.msra.mxu0 %v568
        %833 = vmatprep.subr.mxu0 %v573
        %834 = vmatpush1.msra.mxu0 %v572
        %835 = vmatprep.subr.mxu0 %v577
        %836 = vmatpush1.msra.mxu0 %v576
        %837 = vmatprep.subr.mxu0 %v581
        %838 = vmatpush1.msra.mxu0 %v580
        %839 = vmatprep.subr.mxu0 %v585
        %840 = vmatpush1.msra.mxu0 %v584
        %841 = vmatprep.subr.mxu0 %v589
        %842 = vmatpush1.msra.mxu0 %v588
        %843 = vmatprep.subr.mxu0 %v593
        %844 = vmatpush1.msra.mxu0 %v592
        %845 = vmatprep.subr.mxu0 %v597
        %846 = vmatpush1.msra.mxu0 %v596
        %847 = vmatprep.subr.mxu0 %v601
        %848 = vmatpush1.msra.mxu0 %v600
        %849 = vmatprep.subr.mxu0 %v605
        %850 = vmatpush1.msra.mxu0 %v604
        %851 = vmatprep.subr.mxu0 %v609
        %852 = vmatpush1.msra.mxu0 %v608
        %853 = vmatprep.subr.mxu0 %v613
        %854 = vmatpush1.msra.mxu0 %v612
        %855 = vmatprep.subr.mxu0 %v617
        %856 = vmatpush1.msra.mxu0 %v616
        %857 = vmatprep.subr.mxu0 %v621
        %858 = vmatpush1.msra.mxu0 %v620
        %859 = vmatprep.subr.mxu0 %v625
        %860 = vmatpush1.msra.mxu0 %v624
        %861 = vmatprep.mubr.f32.mxu0 %v774
        %862 = vmatmul.mubr.f32.gmra.mrb[0].mxu0 %v771
        %v863 = vpop.f32.mrb[0].mxu0
        %v864 = vadd.f32 0.0, %v863
        %v865 = vpop.f32.mrb[0].mxu0
        %v866 = vadd.f32 0.0, %v865
        %867 = vmatprep.mubr.f32.mxu0 %v784
        %868 = vmatmul.mubr.f32.gmra.mrb[0].mxu0 %v782
        %v869 = vpop.f32.mrb[0].mxu0
        %v870 = vadd.f32 0.0, %v869
        %v871 = vpop.f32.mrb[0].mxu0
        %v872 = vadd.f32 0.0, %v871
        %873 = vdwg.mxu0
        %874 = vmatprep.subr.mxu0 %v629
        %875 = vmatpush1.msra.mxu0 %v628
        %876 = vmatprep.subr.mxu0 %v633
        %877 = vmatpush1.msra.mxu0 %v632
        %878 = vmatprep.subr.mxu0 %v637
        %879 = vmatpush1.msra.mxu0 %v636
        %880 = vmatprep.subr.mxu0 %v641
        %881 = vmatpush1.msra.mxu0 %v640
        %882 = vmatprep.subr.mxu0 %v645
        %883 = vmatpush1.msra.mxu0 %v644
        %884 = vmatprep.subr.mxu0 %v649
        %885 = vmatpush1.msra.mxu0 %v648
        %886 = vmatprep.subr.mxu0 %v653
        %887 = vmatpush1.msra.mxu0 %v652
        %888 = vmatprep.subr.mxu0 %v657
        %889 = vmatpush1.msra.mxu0 %v656
        %890 = vmatprep.subr.mxu0 %v661
        %891 = vmatpush1.msra.mxu0 %v660
        %892 = vmatprep.subr.mxu0 %v665
        %893 = vmatpush1.msra.mxu0 %v664
        %894 = vmatprep.subr.mxu0 %v669
        %895 = vmatpush1.msra.mxu0 %v668
        %896 = vmatprep.subr.mxu0 %v673
        %897 = vmatpush1.msra.mxu0 %v672
        %898 = vmatprep.subr.mxu0 %v677
        %899 = vmatpush1.msra.mxu0 %v676
        %900 = vmatprep.subr.mxu0 %v681
        %901 = vmatpush1.msra.mxu0 %v680
        %902 = vmatprep.subr.mxu0 %v685
        %903 = vmatpush1.msra.mxu0 %v684
        %904 = vmatprep.subr.mxu0 %v689
        %905 = vmatpush1.msra.mxu0 %v688
        %906 = vmatprep.subr.mxu0 %v693
        %907 = vmatpush1.msra.mxu0 %v692
        %908 = vmatprep.subr.mxu0 %v697
        %909 = vmatpush1.msra.mxu0 %v696
        %910 = vmatprep.subr.mxu0 %v701
        %911 = vmatpush1.msra.mxu0 %v700
        %912 = vmatprep.subr.mxu0 %v705
        %913 = vmatpush1.msra.mxu0 %v704
        %914 = vmatprep.subr.mxu0 %v709
        %915 = vmatpush1.msra.mxu0 %v708
        %916 = vmatprep.subr.mxu0 %v713
        %917 = vmatpush1.msra.mxu0 %v712
        %918 = vmatprep.subr.mxu0 %v717
        %919 = vmatpush1.msra.mxu0 %v716
        %920 = vmatprep.subr.mxu0 %v721
        %921 = vmatpush1.msra.mxu0 %v720
        %922 = vmatprep.subr.mxu0 %v725
        %923 = vmatpush1.msra.mxu0 %v724
        %924 = vmatprep.subr.mxu0 %v729
        %925 = vmatpush1.msra.mxu0 %v728
        %926 = vmatprep.subr.mxu0 %v733
        %927 = vmatpush1.msra.mxu0 %v732
        %928 = vmatprep.subr.mxu0 %v737
        %929 = vmatpush1.msra.mxu0 %v736
        %930 = vmatprep.subr.mxu0 %v741
        %931 = vmatpush1.msra.mxu0 %v740
        %932 = vmatprep.subr.mxu0 %v745
        %933 = vmatpush1.msra.mxu0 %v744
        %934 = vmatprep.subr.mxu0 %v749
        %935 = vmatpush1.msra.mxu0 %v748
        %936 = vmatprep.subr.mxu0 %v753
        %937 = vmatpush1.msra.mxu0 %v752
        %938 = vmatprep.mubr.f32.mxu0 %v780
        %939 = vmatmul.mubr.f32.gmra.mrb[0].mxu0 %v777
        %v940 = vpop.f32.mrb[0].mxu0
        %v941 = vadd.f32 %v864, %v940
        %v942 = vpop.f32.mrb[0].mxu0
        %v943 = vadd.f32 %v866, %v942
        %944 = vmatprep.mubr.f32.mxu0 %v788
        %945 = vmatmul.mubr.f32.gmra.mrb[0].mxu0 %v786
        %v946 = vpop.f32.mrb[0].mxu0
        %v947 = vadd.f32 %v870, %v946
        %v948 = vpop.f32.mrb[0].mxu0
        %v949 = vadd.f32 %v872, %v948
        %950 = vdwg.mxu0
        %951 = vmatprep.subr.mxu0 %v503
        %952 = vmatpush1.msra.mxu0 %v502
        %953 = vmatprep.subr.mxu0 %v507
        %954 = vmatpush1.msra.mxu0 %v506
        %955 = vmatprep.subr.mxu0 %v511
        %956 = vmatpush1.msra.mxu0 %v510
        %957 = vmatprep.subr.mxu0 %v515
        %958 = vmatpush1.msra.mxu0 %v514
        %959 = vmatprep.subr.mxu0 %v519
        %960 = vmatpush1.msra.mxu0 %v518
        %961 = vmatprep.subr.mxu0 %v523
        %962 = vmatpush1.msra.mxu0 %v522
        %963 = vmatprep.subr.mxu0 %v527
        %964 = vmatpush1.msra.mxu0 %v526
        %965 = vmatprep.subr.mxu0 %v531
        %966 = vmatpush1.msra.mxu0 %v530
        %967 = vmatprep.subr.mxu0 %v535
        %968 = vmatpush1.msra.mxu0 %v534
        %969 = vmatprep.subr.mxu0 %v539
        %970 = vmatpush1.msra.mxu0 %v538
        %971 = vmatprep.subr.mxu0 %v543
        %972 = vmatpush1.msra.mxu0 %v542
        %973 = vmatprep.subr.mxu0 %v547
        %974 = vmatpush1.msra.mxu0 %v546
        %975 = vmatprep.subr.mxu0 %v551
        %976 = vmatpush1.msra.mxu0 %v550
        %977 = vmatprep.subr.mxu0 %v555
        %978 = vmatpush1.msra.mxu0 %v554
        %979 = vmatprep.subr.mxu0 %v559
        %980 = vmatpush1.msra.mxu0 %v558
        %981 = vmatprep.subr.mxu0 %v563
        %982 = vmatpush1.msra.mxu0 %v562
        %983 = vmatprep.subr.mxu0 %v567
        %984 = vmatpush1.msra.mxu0 %v566
        %985 = vmatprep.subr.mxu0 %v571
        %986 = vmatpush1.msra.mxu0 %v570
        %987 = vmatprep.subr.mxu0 %v575
        %988 = vmatpush1.msra.mxu0 %v574
        %989 = vmatprep.subr.mxu0 %v579
        %990 = vmatpush1.msra.mxu0 %v578
        %991 = vmatprep.subr.mxu0 %v583
        %992 = vmatpush1.msra.mxu0 %v582
        %993 = vmatprep.subr.mxu0 %v587
        %994 = vmatpush1.msra.mxu0 %v586
        %995 = vmatprep.subr.mxu0 %v591
        %996 = vmatpush1.msra.mxu0 %v590
        %997 = vmatprep.subr.mxu0 %v595
        %998 = vmatpush1.msra.mxu0 %v594
        %999 = vmatprep.subr.mxu0 %v599
        %1000 = vmatpush1.msra.mxu0 %v598
        %1001 = vmatprep.subr.mxu0 %v603
        %1002 = vmatpush1.msra.mxu0 %v602
        %1003 = vmatprep.subr.mxu0 %v607
        %1004 = vmatpush1.msra.mxu0 %v606
        %1005 = vmatprep.subr.mxu0 %v611
        %1006 = vmatpush1.msra.mxu0 %v610
        %1007 = vmatprep.subr.mxu0 %v615
        %1008 = vmatpush1.msra.mxu0 %v614
        %1009 = vmatprep.subr.mxu0 %v619
        %1010 = vmatpush1.msra.mxu0 %v618
        %1011 = vmatprep.subr.mxu0 %v623
        %1012 = vmatpush1.msra.mxu0 %v622
        %1013 = vmatprep.subr.mxu0 %v627
        %1014 = vmatpush1.msra.mxu0 %v626
        %1015 = vmatprep.mubr.f32.mxu0 %v774
        %1016 = vmatmul.mubr.f32.gmra.mrb[0].mxu0 %v771
        %v1017 = vpop.f32.mrb[0].mxu0
        %v1018 = vadd.f32 0.0, %v1017
        %v1019 = vpop.f32.mrb[0].mxu0
        %v1020 = vadd.f32 0.0, %v1019
        %1021 = vmatprep.mubr.f32.mxu0 %v784
        %1022 = vmatmul.mubr.f32.gmra.mrb[0].mxu0 %v782
        %v1023 = vpop.f32.mrb[0].mxu0
        %v1024 = vadd.f32 0.0, %v1023
        %v1025 = vpop.f32.mrb[0].mxu0
        %v1026 = vadd.f32 0.0, %v1025
        %1027 = vdwg.mxu0
        %1028 = vmatprep.subr.mxu0 %v631
        %1029 = vmatpush1.msra.mxu0 %v630
        %1030 = vmatprep.subr.mxu0 %v635
        %1031 = vmatpush1.msra.mxu0 %v634
        %1032 = vmatprep.subr.mxu0 %v639
        %1033 = vmatpush1.msra.mxu0 %v638
        %1034 = vmatprep.subr.mxu0 %v643
        %1035 = vmatpush1.msra.mxu0 %v642
        %1036 = vmatprep.subr.mxu0 %v647
        %1037 = vmatpush1.msra.mxu0 %v646
        %1038 = vmatprep.subr.mxu0 %v651
        %1039 = vmatpush1.msra.mxu0 %v650
        %1040 = vmatprep.subr.mxu0 %v655
        %1041 = vmatpush1.msra.mxu0 %v654
        %1042 = vmatprep.subr.mxu0 %v659
        %1043 = vmatpush1.msra.mxu0 %v658
        %1044 = vmatprep.subr.mxu0 %v663
        %1045 = vmatpush1.msra.mxu0 %v662
        %1046 = vmatprep.subr.mxu0 %v667
        %1047 = vmatpush1.msra.mxu0 %v666
        %1048 = vmatprep.subr.mxu0 %v671
        %1049 = vmatpush1.msra.mxu0 %v670
        %1050 = vmatprep.subr.mxu0 %v675
        %1051 = vmatpush1.msra.mxu0 %v674
        %1052 = vmatprep.subr.mxu0 %v679
        %1053 = vmatpush1.msra.mxu0 %v678
        %1054 = vmatprep.subr.mxu0 %v683
        %1055 = vmatpush1.msra.mxu0 %v682
        %1056 = vmatprep.subr.mxu0 %v687
        %1057 = vmatpush1.msra.mxu0 %v686
        %1058 = vmatprep.subr.mxu0 %v691
        %1059 = vmatpush1.msra.mxu0 %v690
        %1060 = vmatprep.subr.mxu0 %v695
        %1061 = vmatpush1.msra.mxu0 %v694
        %1062 = vmatprep.subr.mxu0 %v699
        %1063 = vmatpush1.msra.mxu0 %v698
        %1064 = vmatprep.subr.mxu0 %v703
        %1065 = vmatpush1.msra.mxu0 %v702
        %1066 = vmatprep.subr.mxu0 %v707
        %1067 = vmatpush1.msra.mxu0 %v706
        %1068 = vmatprep.subr.mxu0 %v711
        %1069 = vmatpush1.msra.mxu0 %v710
        %1070 = vmatprep.subr.mxu0 %v715
        %1071 = vmatpush1.msra.mxu0 %v714
        %1072 = vmatprep.subr.mxu0 %v719
        %1073 = vmatpush1.msra.mxu0 %v718
        %1074 = vmatprep.subr.mxu0 %v723
        %1075 = vmatpush1.msra.mxu0 %v722
        %1076 = vmatprep.subr.mxu0 %v727
        %1077 = vmatpush1.msra.mxu0 %v726
        %1078 = vmatprep.subr.mxu0 %v731
        %1079 = vmatpush1.msra.mxu0 %v730
        %1080 = vmatprep.subr.mxu0 %v735
        %1081 = vmatpush1.msra.mxu0 %v734
        %1082 = vmatprep.subr.mxu0 %v739
        %1083 = vmatpush1.msra.mxu0 %v738
        %1084 = vmatprep.subr.mxu0 %v743
        %1085 = vmatpush1.msra.mxu0 %v742
        %1086 = vmatprep.subr.mxu0 %v747
        %1087 = vmatpush1.msra.mxu0 %v746
        %1088 = vmatprep.subr.mxu0 %v751
        %1089 = vmatpush1.msra.mxu0 %v750
        %1090 = vmatprep.subr.mxu0 %v755
        %1091 = vmatpush1.msra.mxu0 %v754
        %1092 = vmatprep.mubr.f32.mxu0 %v780
        %1093 = vmatmul.mubr.f32.gmra.mrb[0].mxu0 %v777
        %v1094 = vpop.f32.mrb[0].mxu0
        %v1095 = vadd.f32 %v1018, %v1094
        %v1096 = vpop.f32.mrb[0].mxu0
        %v1097 = vadd.f32 %v1020, %v1096
        %1098 = vmatprep.mubr.f32.mxu0 %v788
        %1099 = vmatmul.mubr.f32.gmra.mrb[0].mxu0 %v786
        %v1100 = vpop.f32.mrb[0].mxu0
        %v1101 = vadd.f32 %v1024, %v1100
        %v1102 = vpop.f32.mrb[0].mxu0
        %v1103 = vadd.f32 %v1026, %v1102
        %1104 = vdwg.mxu0
        %1105 = vmatprep.subr.mxu0 %v236
        %1106 = vmatpush1.msra.mxu0 %v235
        %1107 = vmatprep.subr.mxu0 %v240
        %1108 = vmatpush1.msra.mxu0 %v239
        %1109 = vmatprep.subr.mxu0 %v244
        %1110 = vmatpush1.msra.mxu0 %v243
        %1111 = vmatprep.subr.mxu0 %v248
        %1112 = vmatpush1.msra.mxu0 %v247
        %1113 = vmatprep.subr.mxu0 %v252
        %1114 = vmatpush1.msra.mxu0 %v251
        %1115 = vmatprep.subr.mxu0 %v256
        %1116 = vmatpush1.msra.mxu0 %v255
        %1117 = vmatprep.subr.mxu0 %v260
        %1118 = vmatpush1.msra.mxu0 %v259
        %1119 = vmatprep.subr.mxu0 %v264
        %1120 = vmatpush1.msra.mxu0 %v263
        %1121 = vmatprep.subr.mxu0 %v268
        %1122 = vmatpush1.msra.mxu0 %v267
        %1123 = vmatprep.subr.mxu0 %v272
        %1124 = vmatpush1.msra.mxu0 %v271
        %1125 = vmatprep.subr.mxu0 %v276
        %1126 = vmatpush1.msra.mxu0 %v275
        %1127 = vmatprep.subr.mxu0 %v280
        %1128 = vmatpush1.msra.mxu0 %v279
        %1129 = vmatprep.subr.mxu0 %v284
        %1130 = vmatpush1.msra.mxu0 %v283
        %1131 = vmatprep.subr.mxu0 %v288
        %1132 = vmatpush1.msra.mxu0 %v287
        %1133 = vmatprep.subr.mxu0 %v292
        %1134 = vmatpush1.msra.mxu0 %v291
        %1135 = vmatprep.subr.mxu0 %v296
        %1136 = vmatpush1.msra.mxu0 %v295
        %1137 = vmatprep.subr.mxu0 %v300
        %1138 = vmatpush1.msra.mxu0 %v299
        %1139 = vmatprep.subr.mxu0 %v304
        %1140 = vmatpush1.msra.mxu0 %v303
        %1141 = vmatprep.subr.mxu0 %v308
        %1142 = vmatpush1.msra.mxu0 %v307
        %1143 = vmatprep.subr.mxu0 %v312
        %1144 = vmatpush1.msra.mxu0 %v311
        %1145 = vmatprep.subr.mxu0 %v316
        %1146 = vmatpush1.msra.mxu0 %v315
        %1147 = vmatprep.subr.mxu0 %v320
        %1148 = vmatpush1.msra.mxu0 %v319
        %1149 = vmatprep.subr.mxu0 %v324
        %1150 = vmatpush1.msra.mxu0 %v323
        %1151 = vmatprep.subr.mxu0 %v328
        %1152 = vmatpush1.msra.mxu0 %v327
        %1153 = vmatprep.subr.mxu0 %v332
        %1154 = vmatpush1.msra.mxu0 %v331
        %1155 = vmatprep.subr.mxu0 %v336
        %1156 = vmatpush1.msra.mxu0 %v335
        %1157 = vmatprep.subr.mxu0 %v340
        %1158 = vmatpush1.msra.mxu0 %v339
        %1159 = vmatprep.subr.mxu0 %v344
        %1160 = vmatpush1.msra.mxu0 %v343
        %1161 = vmatprep.subr.mxu0 %v348
        %1162 = vmatpush1.msra.mxu0 %v347
        %1163 = vmatprep.subr.mxu0 %v352
        %1164 = vmatpush1.msra.mxu0 %v351
        %1165 = vmatprep.subr.mxu0 %v356
        %1166 = vmatpush1.msra.mxu0 %v355
        %1167 = vmatprep.subr.mxu0 %v360
        %1168 = vmatpush1.msra.mxu0 %v359
        %1169 = vmatprep.mubr.f32.mxu0 %v228
        %1170 = vmatmul.mubr.f32.gmra.mrb[0].mxu0 %v227
        %v1171 = vpop.f32.mrb[0].mxu0
        %v1172 = vadd.f32 %v941, %v1171
        %v1173 = vpop.f32.mrb[0].mxu0
        %v1174 = vadd.f32 %v943, %v1173
        %1175 = vmatprep.mubr.f32.mxu0 %v232
        %1176 = vmatmul.mubr.f32.gmra.mrb[0].mxu0 %v231
        %v1177 = vpop.f32.mrb[0].mxu0
        %v1178 = vadd.f32 %v947, %v1177
        %v1179 = vpop.f32.mrb[0].mxu0
        %v1180 = vadd.f32 %v949, %v1179
        %1181 = vdwg.mxu0
        %1182 = vmatprep.subr.mxu0 %v364
        %1183 = vmatpush1.msra.mxu0 %v363
        %1184 = vmatprep.subr.mxu0 %v368
        %1185 = vmatpush1.msra.mxu0 %v367
        %1186 = vmatprep.subr.mxu0 %v372
        %1187 = vmatpush1.msra.mxu0 %v371
        %1188 = vmatprep.subr.mxu0 %v376
        %1189 = vmatpush1.msra.mxu0 %v375
        %1190 = vmatprep.subr.mxu0 %v380
        %1191 = vmatpush1.msra.mxu0 %v379
        %1192 = vmatprep.subr.mxu0 %v384
        %1193 = vmatpush1.msra.mxu0 %v383
        %1194 = vmatprep.subr.mxu0 %v388
        %1195 = vmatpush1.msra.mxu0 %v387
        %1196 = vmatprep.subr.mxu0 %v392
        %1197 = vmatpush1.msra.mxu0 %v391
        %1198 = vmatprep.subr.mxu0 %v396
        %1199 = vmatpush1.msra.mxu0 %v395
        %1200 = vmatprep.subr.mxu0 %v400
        %1201 = vmatpush1.msra.mxu0 %v399
        %1202 = vmatprep.subr.mxu0 %v404
        %1203 = vmatpush1.msra.mxu0 %v403
        %1204 = vmatprep.subr.mxu0 %v408
        %1205 = vmatpush1.msra.mxu0 %v407
        %1206 = vmatprep.subr.mxu0 %v412
        %1207 = vmatpush1.msra.mxu0 %v411
        %1208 = vmatprep.subr.mxu0 %v416
        %1209 = vmatpush1.msra.mxu0 %v415
        %1210 = vmatprep.subr.mxu0 %v420
        %1211 = vmatpush1.msra.mxu0 %v419
        %1212 = vmatprep.subr.mxu0 %v424
        %1213 = vmatpush1.msra.mxu0 %v423
        %1214 = vmatprep.subr.mxu0 %v428
        %1215 = vmatpush1.msra.mxu0 %v427
        %1216 = vmatprep.subr.mxu0 %v432
        %1217 = vmatpush1.msra.mxu0 %v431
        %1218 = vmatprep.subr.mxu0 %v436
        %1219 = vmatpush1.msra.mxu0 %v435
        %1220 = vmatprep.subr.mxu0 %v440
        %1221 = vmatpush1.msra.mxu0 %v439
        %1222 = vmatprep.subr.mxu0 %v444
        %1223 = vmatpush1.msra.mxu0 %v443
        %1224 = vmatprep.subr.mxu0 %v448
        %1225 = vmatpush1.msra.mxu0 %v447
        %1226 = vmatprep.subr.mxu0 %v452
        %1227 = vmatpush1.msra.mxu0 %v451
        %1228 = vmatprep.subr.mxu0 %v456
        %1229 = vmatpush1.msra.mxu0 %v455
        %1230 = vmatprep.subr.mxu0 %v460
        %1231 = vmatpush1.msra.mxu0 %v459
        %1232 = vmatprep.subr.mxu0 %v464
        %1233 = vmatpush1.msra.mxu0 %v463
        %1234 = vmatprep.subr.mxu0 %v468
        %1235 = vmatpush1.msra.mxu0 %v467
        %1236 = vmatprep.subr.mxu0 %v472
        %1237 = vmatpush1.msra.mxu0 %v471
        %1238 = vmatprep.subr.mxu0 %v476
        %1239 = vmatpush1.msra.mxu0 %v475
        %1240 = vmatprep.subr.mxu0 %v480
        %1241 = vmatpush1.msra.mxu0 %v479
        %1242 = vmatprep.subr.mxu0 %v484
        %1243 = vmatpush1.msra.mxu0 %v483
        %1244 = vmatprep.subr.mxu0 %v488
        %1245 = vmatpush1.msra.mxu0 %v487
        %1246 = vmatprep.mubr.f32.mxu0 %v230
        %1247 = vmatmul.mubr.f32.gmra.mrb[0].mxu0 %v229
        %v1248 = vpop.f32.mrb[0].mxu0
        %v1249 = vadd.f32 %v1172, %v1248
        %v1250 = vpop.f32.mrb[0].mxu0
        %v1251 = vadd.f32 %v1174, %v1250
        %1252 = vmatprep.mubr.f32.mxu0 %v234
        %1253 = vmatmul.mubr.f32.gmra.mrb[0].mxu0 %v233
        %v1254 = vpop.f32.mrb[0].mxu0
        %v1255 = vadd.f32 %v1178, %v1254
        %v1256 = vpop.f32.mrb[0].mxu0
        %v1257 = vadd.f32 %v1180, %v1256
        %1258 = vdwg.mxu0
        %1259 = vmatprep.subr.mxu0 %v238
        %1260 = vmatpush1.msra.mxu0 %v237
        %1261 = vmatprep.subr.mxu0 %v242
        %1262 = vmatpush1.msra.mxu0 %v241
        %1263 = vmatprep.subr.mxu0 %v246
        %1264 = vmatpush1.msra.mxu0 %v245
        %1265 = vmatprep.subr.mxu0 %v250
        %1266 = vmatpush1.msra.mxu0 %v249
        %1267 = vmatprep.subr.mxu0 %v254
        %1268 = vmatpush1.msra.mxu0 %v253
        %1269 = vmatprep.subr.mxu0 %v258
        %1270 = vmatpush1.msra.mxu0 %v257
        %1271 = vmatprep.subr.mxu0 %v262
        %1272 = vmatpush1.msra.mxu0 %v261
        %1273 = vmatprep.subr.mxu0 %v266
        %1274 = vmatpush1.msra.mxu0 %v265
        %1275 = vmatprep.subr.mxu0 %v270
        %1276 = vmatpush1.msra.mxu0 %v269
        %1277 = vmatprep.subr.mxu0 %v274
        %1278 = vmatpush1.msra.mxu0 %v273
        %1279 = vmatprep.subr.mxu0 %v278
        %1280 = vmatpush1.msra.mxu0 %v277
        %1281 = vmatprep.subr.mxu0 %v282
        %1282 = vmatpush1.msra.mxu0 %v281
        %1283 = vmatprep.subr.mxu0 %v286
        %1284 = vmatpush1.msra.mxu0 %v285
        %1285 = vmatprep.subr.mxu0 %v290
        %1286 = vmatpush1.msra.mxu0 %v289
        %1287 = vmatprep.subr.mxu0 %v294
        %1288 = vmatpush1.msra.mxu0 %v293
        %1289 = vmatprep.subr.mxu0 %v298
        %1290 = vmatpush1.msra.mxu0 %v297
        %1291 = vmatprep.subr.mxu0 %v302
        %1292 = vmatpush1.msra.mxu0 %v301
        %1293 = vmatprep.subr.mxu0 %v306
        %1294 = vmatpush1.msra.mxu0 %v305
        %1295 = vmatprep.subr.mxu0 %v310
        %1296 = vmatpush1.msra.mxu0 %v309
        %1297 = vmatprep.subr.mxu0 %v314
        %1298 = vmatpush1.msra.mxu0 %v313
        %1299 = vmatprep.subr.mxu0 %v318
        %1300 = vmatpush1.msra.mxu0 %v317
        %1301 = vmatprep.subr.mxu0 %v322
        %1302 = vmatpush1.msra.mxu0 %v321
        %1303 = vmatprep.subr.mxu0 %v326
        %1304 = vmatpush1.msra.mxu0 %v325
        %1305 = vmatprep.subr.mxu0 %v330
        %1306 = vmatpush1.msra.mxu0 %v329
        %1307 = vmatprep.subr.mxu0 %v334
        %1308 = vmatpush1.msra.mxu0 %v333
        %1309 = vmatprep.subr.mxu0 %v338
        %1310 = vmatpush1.msra.mxu0 %v337
        %1311 = vmatprep.subr.mxu0 %v342
        %1312 = vmatpush1.msra.mxu0 %v341
        %1313 = vmatprep.subr.mxu0 %v346
        %1314 = vmatpush1.msra.mxu0 %v345
        %1315 = vmatprep.subr.mxu0 %v350
        %1316 = vmatpush1.msra.mxu0 %v349
        %1317 = vmatprep.subr.mxu0 %v354
        %1318 = vmatpush1.msra.mxu0 %v353
        %1319 = vmatprep.subr.mxu0 %v358
        %1320 = vmatpush1.msra.mxu0 %v357
        %1321 = vmatprep.subr.mxu0 %v362
        %1322 = vmatpush1.msra.mxu0 %v361
        %1323 = vmatprep.mubr.f32.mxu0 %v228
        %1324 = vmatmul.mubr.f32.gmra.mrb[0].mxu0 %v227
        %v1325 = vpop.f32.mrb[0].mxu0
        %v1326 = vadd.f32 %v1095, %v1325
        %v1327 = vpop.f32.mrb[0].mxu0
        %v1328 = vadd.f32 %v1097, %v1327
        %1329 = vmatprep.mubr.f32.mxu0 %v232
        %1330 = vmatmul.mubr.f32.gmra.mrb[0].mxu0 %v231
        %v1331 = vpop.f32.mrb[0].mxu0
        %v1332 = vadd.f32 %v1101, %v1331
        %v1333 = vpop.f32.mrb[0].mxu0
        %v1334 = vadd.f32 %v1103, %v1333
        %1335 = vdwg.mxu0
        %1336 = vmatprep.subr.mxu0 %v366
        %1337 = vmatpush1.msra.mxu0 %v365
        %1338 = vmatprep.subr.mxu0 %v370
        %1339 = vmatpush1.msra.mxu0 %v369
        %1340 = vmatprep.subr.mxu0 %v374
        %1341 = vmatpush1.msra.mxu0 %v373
        %1342 = vmatprep.subr.mxu0 %v378
        %1343 = vmatpush1.msra.mxu0 %v377
        %1344 = vmatprep.subr.mxu0 %v382
        %1345 = vmatpush1.msra.mxu0 %v381
        %1346 = vmatprep.subr.mxu0 %v386
        %1347 = vmatpush1.msra.mxu0 %v385
        %1348 = vmatprep.subr.mxu0 %v390
        %1349 = vmatpush1.msra.mxu0 %v389
        %1350 = vmatprep.subr.mxu0 %v394
        %1351 = vmatpush1.msra.mxu0 %v393
        %1352 = vmatprep.subr.mxu0 %v398
        %1353 = vmatpush1.msra.mxu0 %v397
        %1354 = vmatprep.subr.mxu0 %v402
        %1355 = vmatpush1.msra.mxu0 %v401
        %1356 = vmatprep.subr.mxu0 %v406
        %1357 = vmatpush1.msra.mxu0 %v405
        %1358 = vmatprep.subr.mxu0 %v410
        %1359 = vmatpush1.msra.mxu0 %v409
        %1360 = vmatprep.subr.mxu0 %v414
        %1361 = vmatpush1.msra.mxu0 %v413
        %1362 = vmatprep.subr.mxu0 %v418
        %1363 = vmatpush1.msra.mxu0 %v417
        %1364 = vmatprep.subr.mxu0 %v422
        %1365 = vmatpush1.msra.mxu0 %v421
        %1366 = vmatprep.subr.mxu0 %v426
        %1367 = vmatpush1.msra.mxu0 %v425
        %1368 = vmatprep.subr.mxu0 %v430
        %1369 = vmatpush1.msra.mxu0 %v429
        %1370 = vmatprep.subr.mxu0 %v434
        %1371 = vmatpush1.msra.mxu0 %v433
        %1372 = vmatprep.subr.mxu0 %v438
        %1373 = vmatpush1.msra.mxu0 %v437
        %1374 = vmatprep.subr.mxu0 %v442
        %1375 = vmatpush1.msra.mxu0 %v441
        %1376 = vmatprep.subr.mxu0 %v446
        %1377 = vmatpush1.msra.mxu0 %v445
        %1378 = vmatprep.subr.mxu0 %v450
        %1379 = vmatpush1.msra.mxu0 %v449
        %1380 = vmatprep.subr.mxu0 %v454
        %1381 = vmatpush1.msra.mxu0 %v453
        %1382 = vmatprep.subr.mxu0 %v458
        %1383 = vmatpush1.msra.mxu0 %v457
        %1384 = vmatprep.subr.mxu0 %v462
        %1385 = vmatpush1.msra.mxu0 %v461
        %1386 = vmatprep.subr.mxu0 %v466
        %1387 = vmatpush1.msra.mxu0 %v465
        %1388 = vmatprep.subr.mxu0 %v470
        %1389 = vmatpush1.msra.mxu0 %v469
        %1390 = vmatprep.subr.mxu0 %v474
        %1391 = vmatpush1.msra.mxu0 %v473
        %1392 = vmatprep.subr.mxu0 %v478
        %1393 = vmatpush1.msra.mxu0 %v477
        %1394 = vmatprep.subr.mxu0 %v482
        %1395 = vmatpush1.msra.mxu0 %v481
        %1396 = vmatprep.subr.mxu0 %v486
        %1397 = vmatpush1.msra.mxu0 %v485
        %1398 = vmatprep.subr.mxu0 %v490
        %1399 = vmatpush1.msra.mxu0 %v489
        %1400 = vmatprep.mubr.f32.mxu0 %v230
        %1401 = vmatmul.mubr.f32.gmra.mrb[0].mxu0 %v229
        %v1402 = vpop.f32.mrb[0].mxu0
        %v1403 = vadd.f32 %v1326, %v1402
        %v1404 = vpop.f32.mrb[0].mxu0
        %v1405 = vadd.f32 %v1328, %v1404
        %1406 = vmatprep.mubr.f32.mxu0 %v234
        %1407 = vmatmul.mubr.f32.gmra.mrb[0].mxu0 %v233
        %v1408 = vpop.f32.mrb[0].mxu0
        %v1409 = vadd.f32 %v1332, %v1408
        %v1410 = vpop.f32.mrb[0].mxu0
        %v1411 = vadd.f32 %v1334, %v1410
        %1412 = vdwg.mxu0
        %v1413 = vld [vmem:[%s221 + $0x40] sm:$0xff]
        %v1414 = vld [vmem:[%s221 + $0x48] sm:$0xff]
        %v1415 = vld [vmem:[%s221 + $0x50] sm:$0xff]
        %v1416 = vld [vmem:[%s221 + $0x58] sm:$0xff]
        %s1417 = scalar_lea.vmem [#allocation4], 4096
        %v1418 = vld [vmem:[%s1417] sm:$0xff]
        %v1419 = vld [vmem:[%s1417 + $0x8] sm:$0xff]
        %v1420 = vld [vmem:[%s1417 + $0x10] sm:$0xff]
        %v1421 = vld [vmem:[%s1417 + $0x18] sm:$0xff]
        %v1422 = vld [vmem:[%s1417 + $0x20] sm:$0xff]
        %v1423 = vld [vmem:[%s1417 + $0x28] sm:$0xff]
        %v1424 = vld [vmem:[%s1417 + $0x30] sm:$0xff]
        %v1425 = vld [vmem:[%s1417 + $0x38] sm:$0xff]
        %v1426 = vld [vmem:[%s1417 + $0x40] sm:$0xff]
        %v1427 = vld [vmem:[%s1417 + $0x48] sm:$0xff]
        %v1428 = vld [vmem:[%s1417 + $0x50] sm:$0xff]
        %v1429 = vld [vmem:[%s1417 + $0x58] sm:$0xff]
        %v1430 = vld [vmem:[%s1417 + $0x60] sm:$0xff]
        %v1431 = vld [vmem:[%s1417 + $0x68] sm:$0xff]
        %v1432 = vld [vmem:[%s1417 + $0x70] sm:$0xff]
        %v1433 = vld [vmem:[%s1417 + $0x78] sm:$0xff]
        %v1434 = vld [vmem:[%s1417 + $0x80] sm:$0xff]
        %v1435 = vld [vmem:[%s1417 + $0x88] sm:$0xff]
        %v1436 = vld [vmem:[%s1417 + $0x90] sm:$0xff]
        %v1437 = vld [vmem:[%s1417 + $0x98] sm:$0xff]
        %v1438 = vld [vmem:[%s1417 + $0xa0] sm:$0xff]
        %v1439 = vld [vmem:[%s1417 + $0xa8] sm:$0xff]
        %v1440 = vld [vmem:[%s1417 + $0xb0] sm:$0xff]
        %v1441 = vld [vmem:[%s1417 + $0xb8] sm:$0xff]
        %v1442 = vld [vmem:[%s1417 + $0xc0] sm:$0xff]
        %v1443 = vld [vmem:[%s1417 + $0xc8] sm:$0xff]
        %v1444 = vld [vmem:[%s1417 + $0xd0] sm:$0xff]
        %v1445 = vld [vmem:[%s1417 + $0xd8] sm:$0xff]
        %v1446 = vld [vmem:[%s1417 + $0xe0] sm:$0xff]
        %v1447 = vld [vmem:[%s1417 + $0xe8] sm:$0xff]
        %v1448 = vld [vmem:[%s1417 + $0xf0] sm:$0xff]
        %v1449 = vld [vmem:[%s1417 + $0xf8] sm:$0xff]
        %v1450 = vld [vmem:[%s1417 + $0x100] sm:$0xff]
        %v1451 = vld [vmem:[%s1417 + $0x108] sm:$0xff]
        %v1452 = vld [vmem:[%s1417 + $0x110] sm:$0xff]
        %v1453 = vld [vmem:[%s1417 + $0x118] sm:$0xff]
        %v1454 = vld [vmem:[%s1417 + $0x120] sm:$0xff]
        %v1455 = vld [vmem:[%s1417 + $0x128] sm:$0xff]
        %v1456 = vld [vmem:[%s1417 + $0x130] sm:$0xff]
        %v1457 = vld [vmem:[%s1417 + $0x138] sm:$0xff]
        %v1458 = vld [vmem:[%s1417 + $0x140] sm:$0xff]
        %v1459 = vld [vmem:[%s1417 + $0x148] sm:$0xff]
        %v1460 = vld [vmem:[%s1417 + $0x150] sm:$0xff]
        %v1461 = vld [vmem:[%s1417 + $0x158] sm:$0xff]
        %v1462 = vld [vmem:[%s1417 + $0x160] sm:$0xff]
        %v1463 = vld [vmem:[%s1417 + $0x168] sm:$0xff]
        %v1464 = vld [vmem:[%s1417 + $0x170] sm:$0xff]
        %v1465 = vld [vmem:[%s1417 + $0x178] sm:$0xff]
        %v1466 = vld [vmem:[%s1417 + $0x180] sm:$0xff]
        %v1467 = vld [vmem:[%s1417 + $0x188] sm:$0xff]
        %v1468 = vld [vmem:[%s1417 + $0x190] sm:$0xff]
        %v1469 = vld [vmem:[%s1417 + $0x198] sm:$0xff]
        %v1470 = vld [vmem:[%s1417 + $0x1a0] sm:$0xff]
        %v1471 = vld [vmem:[%s1417 + $0x1a8] sm:$0xff]
        %v1472 = vld [vmem:[%s1417 + $0x1b0] sm:$0xff]
        %v1473 = vld [vmem:[%s1417 + $0x1b8] sm:$0xff]
        %v1474 = vld [vmem:[%s1417 + $0x1c0] sm:$0xff]
        %v1475 = vld [vmem:[%s1417 + $0x1c8] sm:$0xff]
        %v1476 = vld [vmem:[%s1417 + $0x1d0] sm:$0xff]
        %v1477 = vld [vmem:[%s1417 + $0x1d8] sm:$0xff]
        %v1478 = vld [vmem:[%s1417 + $0x1e0] sm:$0xff]
        %v1479 = vld [vmem:[%s1417 + $0x1e8] sm:$0xff]
        %v1480 = vld [vmem:[%s1417 + $0x1f0] sm:$0xff]
        %v1481 = vld [vmem:[%s1417 + $0x1f8] sm:$0xff]
        %v1482 = vld [vmem:[%s1417 + $0x200] sm:$0xff]
        %v1483 = vld [vmem:[%s1417 + $0x208] sm:$0xff]
        %v1484 = vld [vmem:[%s1417 + $0x210] sm:$0xff]
        %v1485 = vld [vmem:[%s1417 + $0x218] sm:$0xff]
        %v1486 = vld [vmem:[%s1417 + $0x220] sm:$0xff]
        %v1487 = vld [vmem:[%s1417 + $0x228] sm:$0xff]
        %v1488 = vld [vmem:[%s1417 + $0x230] sm:$0xff]
        %v1489 = vld [vmem:[%s1417 + $0x238] sm:$0xff]
        %v1490 = vld [vmem:[%s1417 + $0x240] sm:$0xff]
        %v1491 = vld [vmem:[%s1417 + $0x248] sm:$0xff]
        %v1492 = vld [vmem:[%s1417 + $0x250] sm:$0xff]
        %v1493 = vld [vmem:[%s1417 + $0x258] sm:$0xff]
        %v1494 = vld [vmem:[%s1417 + $0x260] sm:$0xff]
        %v1495 = vld [vmem:[%s1417 + $0x268] sm:$0xff]
        %v1496 = vld [vmem:[%s1417 + $0x270] sm:$0xff]
        %v1497 = vld [vmem:[%s1417 + $0x278] sm:$0xff]
        %v1498 = vld [vmem:[%s1417 + $0x280] sm:$0xff]
        %v1499 = vld [vmem:[%s1417 + $0x288] sm:$0xff]
        %v1500 = vld [vmem:[%s1417 + $0x290] sm:$0xff]
        %v1501 = vld [vmem:[%s1417 + $0x298] sm:$0xff]
        %v1502 = vld [vmem:[%s1417 + $0x2a0] sm:$0xff]
        %v1503 = vld [vmem:[%s1417 + $0x2a8] sm:$0xff]
        %v1504 = vld [vmem:[%s1417 + $0x2b0] sm:$0xff]
        %v1505 = vld [vmem:[%s1417 + $0x2b8] sm:$0xff]
        %v1506 = vld [vmem:[%s1417 + $0x2c0] sm:$0xff]
        %v1507 = vld [vmem:[%s1417 + $0x2c8] sm:$0xff]
        %v1508 = vld [vmem:[%s1417 + $0x2d0] sm:$0xff]
        %v1509 = vld [vmem:[%s1417 + $0x2d8] sm:$0xff]
        %v1510 = vld [vmem:[%s1417 + $0x2e0] sm:$0xff]
        %v1511 = vld [vmem:[%s1417 + $0x2e8] sm:$0xff]
        %v1512 = vld [vmem:[%s1417 + $0x2f0] sm:$0xff]
        %v1513 = vld [vmem:[%s1417 + $0x2f8] sm:$0xff]
        %v1514 = vld [vmem:[%s1417 + $0x300] sm:$0xff]
        %v1515 = vld [vmem:[%s1417 + $0x308] sm:$0xff]
        %v1516 = vld [vmem:[%s1417 + $0x310] sm:$0xff]
        %v1517 = vld [vmem:[%s1417 + $0x318] sm:$0xff]
        %v1518 = vld [vmem:[%s1417 + $0x320] sm:$0xff]
        %v1519 = vld [vmem:[%s1417 + $0x328] sm:$0xff]
        %v1520 = vld [vmem:[%s1417 + $0x330] sm:$0xff]
        %v1521 = vld [vmem:[%s1417 + $0x338] sm:$0xff]
        %v1522 = vld [vmem:[%s1417 + $0x340] sm:$0xff]
        %v1523 = vld [vmem:[%s1417 + $0x348] sm:$0xff]
        %v1524 = vld [vmem:[%s1417 + $0x350] sm:$0xff]
        %v1525 = vld [vmem:[%s1417 + $0x358] sm:$0xff]
        %v1526 = vld [vmem:[%s1417 + $0x360] sm:$0xff]
        %v1527 = vld [vmem:[%s1417 + $0x368] sm:$0xff]
        %v1528 = vld [vmem:[%s1417 + $0x370] sm:$0xff]
        %v1529 = vld [vmem:[%s1417 + $0x378] sm:$0xff]
        %v1530 = vld [vmem:[%s1417 + $0x380] sm:$0xff]
        %v1531 = vld [vmem:[%s1417 + $0x388] sm:$0xff]
        %v1532 = vld [vmem:[%s1417 + $0x390] sm:$0xff]
        %v1533 = vld [vmem:[%s1417 + $0x398] sm:$0xff]
        %v1534 = vld [vmem:[%s1417 + $0x3a0] sm:$0xff]
        %v1535 = vld [vmem:[%s1417 + $0x3a8] sm:$0xff]
        %v1536 = vld [vmem:[%s1417 + $0x3b0] sm:$0xff]
        %v1537 = vld [vmem:[%s1417 + $0x3b8] sm:$0xff]
        %v1538 = vld [vmem:[%s1417 + $0x3c0] sm:$0xff]
        %v1539 = vld [vmem:[%s1417 + $0x3c8] sm:$0xff]
        %v1540 = vld [vmem:[%s1417 + $0x3d0] sm:$0xff]
        %v1541 = vld [vmem:[%s1417 + $0x3d8] sm:$0xff]
        %v1542 = vld [vmem:[%s1417 + $0x3e0] sm:$0xff]
        %v1543 = vld [vmem:[%s1417 + $0x3e8] sm:$0xff]
        %v1544 = vld [vmem:[%s1417 + $0x3f0] sm:$0xff]
        %v1545 = vld [vmem:[%s1417 + $0x3f8] sm:$0xff]
        %v1546 = vld [vmem:[%s1417 + $0x400] sm:$0xff]
        %v1547 = vld [vmem:[%s1417 + $0x408] sm:$0xff]
        %v1548 = vld [vmem:[%s1417 + $0x410] sm:$0xff]
        %v1549 = vld [vmem:[%s1417 + $0x418] sm:$0xff]
        %v1550 = vld [vmem:[%s1417 + $0x420] sm:$0xff]
        %v1551 = vld [vmem:[%s1417 + $0x428] sm:$0xff]
        %v1552 = vld [vmem:[%s1417 + $0x430] sm:$0xff]
        %v1553 = vld [vmem:[%s1417 + $0x438] sm:$0xff]
        %v1554 = vld [vmem:[%s1417 + $0x440] sm:$0xff]
        %v1555 = vld [vmem:[%s1417 + $0x448] sm:$0xff]
        %v1556 = vld [vmem:[%s1417 + $0x450] sm:$0xff]
        %v1557 = vld [vmem:[%s1417 + $0x458] sm:$0xff]
        %v1558 = vld [vmem:[%s1417 + $0x460] sm:$0xff]
        %v1559 = vld [vmem:[%s1417 + $0x468] sm:$0xff]
        %v1560 = vld [vmem:[%s1417 + $0x470] sm:$0xff]
        %v1561 = vld [vmem:[%s1417 + $0x478] sm:$0xff]
        %v1562 = vld [vmem:[%s1417 + $0x480] sm:$0xff]
        %v1563 = vld [vmem:[%s1417 + $0x488] sm:$0xff]
        %v1564 = vld [vmem:[%s1417 + $0x490] sm:$0xff]
        %v1565 = vld [vmem:[%s1417 + $0x498] sm:$0xff]
        %v1566 = vld [vmem:[%s1417 + $0x4a0] sm:$0xff]
        %v1567 = vld [vmem:[%s1417 + $0x4a8] sm:$0xff]
        %v1568 = vld [vmem:[%s1417 + $0x4b0] sm:$0xff]
        %v1569 = vld [vmem:[%s1417 + $0x4b8] sm:$0xff]
        %v1570 = vld [vmem:[%s1417 + $0x4c0] sm:$0xff]
        %v1571 = vld [vmem:[%s1417 + $0x4c8] sm:$0xff]
        %v1572 = vld [vmem:[%s1417 + $0x4d0] sm:$0xff]
        %v1573 = vld [vmem:[%s1417 + $0x4d8] sm:$0xff]
        %v1574 = vld [vmem:[%s1417 + $0x4e0] sm:$0xff]
        %v1575 = vld [vmem:[%s1417 + $0x4e8] sm:$0xff]
        %v1576 = vld [vmem:[%s1417 + $0x4f0] sm:$0xff]
        %v1577 = vld [vmem:[%s1417 + $0x4f8] sm:$0xff]
        %v1578 = vld [vmem:[%s1417 + $0x500] sm:$0xff]
        %v1579 = vld [vmem:[%s1417 + $0x508] sm:$0xff]
        %v1580 = vld [vmem:[%s1417 + $0x510] sm:$0xff]
        %v1581 = vld [vmem:[%s1417 + $0x518] sm:$0xff]
        %v1582 = vld [vmem:[%s1417 + $0x520] sm:$0xff]
        %v1583 = vld [vmem:[%s1417 + $0x528] sm:$0xff]
        %v1584 = vld [vmem:[%s1417 + $0x530] sm:$0xff]
        %v1585 = vld [vmem:[%s1417 + $0x538] sm:$0xff]
        %v1586 = vld [vmem:[%s1417 + $0x540] sm:$0xff]
        %v1587 = vld [vmem:[%s1417 + $0x548] sm:$0xff]
        %v1588 = vld [vmem:[%s1417 + $0x550] sm:$0xff]
        %v1589 = vld [vmem:[%s1417 + $0x558] sm:$0xff]
        %v1590 = vld [vmem:[%s1417 + $0x560] sm:$0xff]
        %v1591 = vld [vmem:[%s1417 + $0x568] sm:$0xff]
        %v1592 = vld [vmem:[%s1417 + $0x570] sm:$0xff]
        %v1593 = vld [vmem:[%s1417 + $0x578] sm:$0xff]
        %v1594 = vld [vmem:[%s1417 + $0x580] sm:$0xff]
        %v1595 = vld [vmem:[%s1417 + $0x588] sm:$0xff]
        %v1596 = vld [vmem:[%s1417 + $0x590] sm:$0xff]
        %v1597 = vld [vmem:[%s1417 + $0x598] sm:$0xff]
        %v1598 = vld [vmem:[%s1417 + $0x5a0] sm:$0xff]
        %v1599 = vld [vmem:[%s1417 + $0x5a8] sm:$0xff]
        %v1600 = vld [vmem:[%s1417 + $0x5b0] sm:$0xff]
        %v1601 = vld [vmem:[%s1417 + $0x5b8] sm:$0xff]
        %v1602 = vld [vmem:[%s1417 + $0x5c0] sm:$0xff]
        %v1603 = vld [vmem:[%s1417 + $0x5c8] sm:$0xff]
        %v1604 = vld [vmem:[%s1417 + $0x5d0] sm:$0xff]
        %v1605 = vld [vmem:[%s1417 + $0x5d8] sm:$0xff]
        %v1606 = vld [vmem:[%s1417 + $0x5e0] sm:$0xff]
        %v1607 = vld [vmem:[%s1417 + $0x5e8] sm:$0xff]
        %v1608 = vld [vmem:[%s1417 + $0x5f0] sm:$0xff]
        %v1609 = vld [vmem:[%s1417 + $0x5f8] sm:$0xff]
        %v1610 = vld [vmem:[%s1417 + $0x600] sm:$0xff]
        %v1611 = vld [vmem:[%s1417 + $0x608] sm:$0xff]
        %v1612 = vld [vmem:[%s1417 + $0x610] sm:$0xff]
        %v1613 = vld [vmem:[%s1417 + $0x618] sm:$0xff]
        %v1614 = vld [vmem:[%s1417 + $0x620] sm:$0xff]
        %v1615 = vld [vmem:[%s1417 + $0x628] sm:$0xff]
        %v1616 = vld [vmem:[%s1417 + $0x630] sm:$0xff]
        %v1617 = vld [vmem:[%s1417 + $0x638] sm:$0xff]
        %v1618 = vld [vmem:[%s1417 + $0x640] sm:$0xff]
        %v1619 = vld [vmem:[%s1417 + $0x648] sm:$0xff]
        %v1620 = vld [vmem:[%s1417 + $0x650] sm:$0xff]
        %v1621 = vld [vmem:[%s1417 + $0x658] sm:$0xff]
        %v1622 = vld [vmem:[%s1417 + $0x660] sm:$0xff]
        %v1623 = vld [vmem:[%s1417 + $0x668] sm:$0xff]
        %v1624 = vld [vmem:[%s1417 + $0x670] sm:$0xff]
        %v1625 = vld [vmem:[%s1417 + $0x678] sm:$0xff]
        %v1626 = vld [vmem:[%s1417 + $0x680] sm:$0xff]
        %v1627 = vld [vmem:[%s1417 + $0x688] sm:$0xff]
        %v1628 = vld [vmem:[%s1417 + $0x690] sm:$0xff]
        %v1629 = vld [vmem:[%s1417 + $0x698] sm:$0xff]
        %v1630 = vld [vmem:[%s1417 + $0x6a0] sm:$0xff]
        %v1631 = vld [vmem:[%s1417 + $0x6a8] sm:$0xff]
        %v1632 = vld [vmem:[%s1417 + $0x6b0] sm:$0xff]
        %v1633 = vld [vmem:[%s1417 + $0x6b8] sm:$0xff]
        %v1634 = vld [vmem:[%s1417 + $0x6c0] sm:$0xff]
        %v1635 = vld [vmem:[%s1417 + $0x6c8] sm:$0xff]
        %v1636 = vld [vmem:[%s1417 + $0x6d0] sm:$0xff]
        %v1637 = vld [vmem:[%s1417 + $0x6d8] sm:$0xff]
        %v1638 = vld [vmem:[%s1417 + $0x6e0] sm:$0xff]
        %v1639 = vld [vmem:[%s1417 + $0x6e8] sm:$0xff]
        %v1640 = vld [vmem:[%s1417 + $0x6f0] sm:$0xff]
        %v1641 = vld [vmem:[%s1417 + $0x6f8] sm:$0xff]
        %v1642 = vld [vmem:[%s1417 + $0x700] sm:$0xff]
        %v1643 = vld [vmem:[%s1417 + $0x708] sm:$0xff]
        %v1644 = vld [vmem:[%s1417 + $0x710] sm:$0xff]
        %v1645 = vld [vmem:[%s1417 + $0x718] sm:$0xff]
        %v1646 = vld [vmem:[%s1417 + $0x720] sm:$0xff]
        %v1647 = vld [vmem:[%s1417 + $0x728] sm:$0xff]
        %v1648 = vld [vmem:[%s1417 + $0x730] sm:$0xff]
        %v1649 = vld [vmem:[%s1417 + $0x738] sm:$0xff]
        %v1650 = vld [vmem:[%s1417 + $0x740] sm:$0xff]
        %v1651 = vld [vmem:[%s1417 + $0x748] sm:$0xff]
        %v1652 = vld [vmem:[%s1417 + $0x750] sm:$0xff]
        %v1653 = vld [vmem:[%s1417 + $0x758] sm:$0xff]
        %v1654 = vld [vmem:[%s1417 + $0x760] sm:$0xff]
        %v1655 = vld [vmem:[%s1417 + $0x768] sm:$0xff]
        %v1656 = vld [vmem:[%s1417 + $0x770] sm:$0xff]
        %v1657 = vld [vmem:[%s1417 + $0x778] sm:$0xff]
        %v1658 = vld [vmem:[%s1417 + $0x780] sm:$0xff]
        %v1659 = vld [vmem:[%s1417 + $0x788] sm:$0xff]
        %v1660 = vld [vmem:[%s1417 + $0x790] sm:$0xff]
        %v1661 = vld [vmem:[%s1417 + $0x798] sm:$0xff]
        %v1662 = vld [vmem:[%s1417 + $0x7a0] sm:$0xff]
        %v1663 = vld [vmem:[%s1417 + $0x7a8] sm:$0xff]
        %v1664 = vld [vmem:[%s1417 + $0x7b0] sm:$0xff]
        %v1665 = vld [vmem:[%s1417 + $0x7b8] sm:$0xff]
        %v1666 = vld [vmem:[%s1417 + $0x7c0] sm:$0xff]
        %v1667 = vld [vmem:[%s1417 + $0x7c8] sm:$0xff]
        %v1668 = vld [vmem:[%s1417 + $0x7d0] sm:$0xff]
        %v1669 = vld [vmem:[%s1417 + $0x7d8] sm:$0xff]
        %v1670 = vld [vmem:[%s1417 + $0x7e0] sm:$0xff]
        %v1671 = vld [vmem:[%s1417 + $0x7e8] sm:$0xff]
        %v1672 = vld [vmem:[%s1417 + $0x7f0] sm:$0xff]
        %v1673 = vld [vmem:[%s1417 + $0x7f8] sm:$0xff]
        %1674 = vmatprep.subr.mxu0 %v1419
        %1675 = vmatpush1.msra.mxu0 %v1418
        %1676 = vmatprep.subr.mxu0 %v1423
        %1677 = vmatpush1.msra.mxu0 %v1422
        %1678 = vmatprep.subr.mxu0 %v1427
        %1679 = vmatpush1.msra.mxu0 %v1426
        %1680 = vmatprep.subr.mxu0 %v1431
        %1681 = vmatpush1.msra.mxu0 %v1430
        %1682 = vmatprep.subr.mxu0 %v1435
        %1683 = vmatpush1.msra.mxu0 %v1434
        %1684 = vmatprep.subr.mxu0 %v1439
        %1685 = vmatpush1.msra.mxu0 %v1438
        %1686 = vmatprep.subr.mxu0 %v1443
        %1687 = vmatpush1.msra.mxu0 %v1442
        %1688 = vmatprep.subr.mxu0 %v1447
        %1689 = vmatpush1.msra.mxu0 %v1446
        %1690 = vmatprep.subr.mxu0 %v1451
        %1691 = vmatpush1.msra.mxu0 %v1450
        %1692 = vmatprep.subr.mxu0 %v1455
        %1693 = vmatpush1.msra.mxu0 %v1454
        %1694 = vmatprep.subr.mxu0 %v1459
        %1695 = vmatpush1.msra.mxu0 %v1458
        %1696 = vmatprep.subr.mxu0 %v1463
        %1697 = vmatpush1.msra.mxu0 %v1462
        %1698 = vmatprep.subr.mxu0 %v1467
        %1699 = vmatpush1.msra.mxu0 %v1466
        %1700 = vmatprep.subr.mxu0 %v1471
        %1701 = vmatpush1.msra.mxu0 %v1470
        %1702 = vmatprep.subr.mxu0 %v1475
        %1703 = vmatpush1.msra.mxu0 %v1474
        %1704 = vmatprep.subr.mxu0 %v1479
        %1705 = vmatpush1.msra.mxu0 %v1478
        %1706 = vmatprep.subr.mxu0 %v1483
        %1707 = vmatpush1.msra.mxu0 %v1482
        %1708 = vmatprep.subr.mxu0 %v1487
        %1709 = vmatpush1.msra.mxu0 %v1486
        %1710 = vmatprep.subr.mxu0 %v1491
        %1711 = vmatpush1.msra.mxu0 %v1490
        %1712 = vmatprep.subr.mxu0 %v1495
        %1713 = vmatpush1.msra.mxu0 %v1494
        %1714 = vmatprep.subr.mxu0 %v1499
        %1715 = vmatpush1.msra.mxu0 %v1498
        %1716 = vmatprep.subr.mxu0 %v1503
        %1717 = vmatpush1.msra.mxu0 %v1502
        %1718 = vmatprep.subr.mxu0 %v1507
        %1719 = vmatpush1.msra.mxu0 %v1506
        %1720 = vmatprep.subr.mxu0 %v1511
        %1721 = vmatpush1.msra.mxu0 %v1510
        %1722 = vmatprep.subr.mxu0 %v1515
        %1723 = vmatpush1.msra.mxu0 %v1514
        %1724 = vmatprep.subr.mxu0 %v1519
        %1725 = vmatpush1.msra.mxu0 %v1518
        %1726 = vmatprep.subr.mxu0 %v1523
        %1727 = vmatpush1.msra.mxu0 %v1522
        %1728 = vmatprep.subr.mxu0 %v1527
        %1729 = vmatpush1.msra.mxu0 %v1526
        %1730 = vmatprep.subr.mxu0 %v1531
        %1731 = vmatpush1.msra.mxu0 %v1530
        %1732 = vmatprep.subr.mxu0 %v1535
        %1733 = vmatpush1.msra.mxu0 %v1534
        %1734 = vmatprep.subr.mxu0 %v1539
        %1735 = vmatpush1.msra.mxu0 %v1538
        %1736 = vmatprep.subr.mxu0 %v1543
        %1737 = vmatpush1.msra.mxu0 %v1542
        %1738 = vmatprep.mubr.f32.mxu0 %v232
        %1739 = vmatmul.mubr.f32.gmra.mrb[0].mxu0 %v231
        %v1740 = vpop.f32.mrb[0].mxu0
        %v1741 = vadd.f32 0.0, %v1740
        %v1742 = vpop.f32.mrb[0].mxu0
        %v1743 = vadd.f32 0.0, %v1742
        %1744 = vmatprep.mubr.f32.mxu0 %v1414
        %1745 = vmatmul.mubr.f32.gmra.mrb[0].mxu0 %v1413
        %v1746 = vpop.f32.mrb[0].mxu0
        %v1747 = vadd.f32 0.0, %v1746
        %v1748 = vpop.f32.mrb[0].mxu0
        %v1749 = vadd.f32 0.0, %v1748
        %1750 = vdwg.mxu0
        %1751 = vmatprep.subr.mxu0 %v1547
        %1752 = vmatpush1.msra.mxu0 %v1546
        %1753 = vmatprep.subr.mxu0 %v1551
        %1754 = vmatpush1.msra.mxu0 %v1550
        %1755 = vmatprep.subr.mxu0 %v1555
        %1756 = vmatpush1.msra.mxu0 %v1554
        %1757 = vmatprep.subr.mxu0 %v1559
        %1758 = vmatpush1.msra.mxu0 %v1558
        %1759 = vmatprep.subr.mxu0 %v1563
        %1760 = vmatpush1.msra.mxu0 %v1562
        %1761 = vmatprep.subr.mxu0 %v1567
        %1762 = vmatpush1.msra.mxu0 %v1566
        %1763 = vmatprep.subr.mxu0 %v1571
        %1764 = vmatpush1.msra.mxu0 %v1570
        %1765 = vmatprep.subr.mxu0 %v1575
        %1766 = vmatpush1.msra.mxu0 %v1574
        %1767 = vmatprep.subr.mxu0 %v1579
        %1768 = vmatpush1.msra.mxu0 %v1578
        %1769 = vmatprep.subr.mxu0 %v1583
        %1770 = vmatpush1.msra.mxu0 %v1582
        %1771 = vmatprep.subr.mxu0 %v1587
        %1772 = vmatpush1.msra.mxu0 %v1586
        %1773 = vmatprep.subr.mxu0 %v1591
        %1774 = vmatpush1.msra.mxu0 %v1590
        %1775 = vmatprep.subr.mxu0 %v1595
        %1776 = vmatpush1.msra.mxu0 %v1594
        %1777 = vmatprep.subr.mxu0 %v1599
        %1778 = vmatpush1.msra.mxu0 %v1598
        %1779 = vmatprep.subr.mxu0 %v1603
        %1780 = vmatpush1.msra.mxu0 %v1602
        %1781 = vmatprep.subr.mxu0 %v1607
        %1782 = vmatpush1.msra.mxu0 %v1606
        %1783 = vmatprep.subr.mxu0 %v1611
        %1784 = vmatpush1.msra.mxu0 %v1610
        %1785 = vmatprep.subr.mxu0 %v1615
        %1786 = vmatpush1.msra.mxu0 %v1614
        %1787 = vmatprep.subr.mxu0 %v1619
        %1788 = vmatpush1.msra.mxu0 %v1618
        %1789 = vmatprep.subr.mxu0 %v1623
        %1790 = vmatpush1.msra.mxu0 %v1622
        %1791 = vmatprep.subr.mxu0 %v1627
        %1792 = vmatpush1.msra.mxu0 %v1626
        %1793 = vmatprep.subr.mxu0 %v1631
        %1794 = vmatpush1.msra.mxu0 %v1630
        %1795 = vmatprep.subr.mxu0 %v1635
        %1796 = vmatpush1.msra.mxu0 %v1634
        %1797 = vmatprep.subr.mxu0 %v1639
        %1798 = vmatpush1.msra.mxu0 %v1638
        %1799 = vmatprep.subr.mxu0 %v1643
        %1800 = vmatpush1.msra.mxu0 %v1642
        %1801 = vmatprep.subr.mxu0 %v1647
        %1802 = vmatpush1.msra.mxu0 %v1646
        %1803 = vmatprep.subr.mxu0 %v1651
        %1804 = vmatpush1.msra.mxu0 %v1650
        %1805 = vmatprep.subr.mxu0 %v1655
        %1806 = vmatpush1.msra.mxu0 %v1654
        %1807 = vmatprep.subr.mxu0 %v1659
        %1808 = vmatpush1.msra.mxu0 %v1658
        %1809 = vmatprep.subr.mxu0 %v1663
        %1810 = vmatpush1.msra.mxu0 %v1662
        %1811 = vmatprep.subr.mxu0 %v1667
        %1812 = vmatpush1.msra.mxu0 %v1666
        %1813 = vmatprep.subr.mxu0 %v1671
        %1814 = vmatpush1.msra.mxu0 %v1670
        %1815 = vmatprep.mubr.f32.mxu0 %v234
        %1816 = vmatmul.mubr.f32.gmra.mrb[0].mxu0 %v233
        %v1817 = vpop.f32.mrb[0].mxu0
        %v1818 = vadd.f32 %v1741, %v1817
        %v1819 = vpop.f32.mrb[0].mxu0
        %v1820 = vadd.f32 %v1743, %v1819
        %1821 = vmatprep.mubr.f32.mxu0 %v1416
        %1822 = vmatmul.mubr.f32.gmra.mrb[0].mxu0 %v1415
        %v1823 = vpop.f32.mrb[0].mxu0
        %v1824 = vadd.f32 %v1747, %v1823
        %v1825 = vpop.f32.mrb[0].mxu0
        %v1826 = vadd.f32 %v1749, %v1825
        %1827 = vdwg.mxu0
        %1828 = vmatprep.subr.mxu0 %v1421
        %1829 = vmatpush1.msra.mxu0 %v1420
        %1830 = vmatprep.subr.mxu0 %v1425
        %1831 = vmatpush1.msra.mxu0 %v1424
        %1832 = vmatprep.subr.mxu0 %v1429
        %1833 = vmatpush1.msra.mxu0 %v1428
        %1834 = vmatprep.subr.mxu0 %v1433
        %1835 = vmatpush1.msra.mxu0 %v1432
        %1836 = vmatprep.subr.mxu0 %v1437
        %1837 = vmatpush1.msra.mxu0 %v1436
        %1838 = vmatprep.subr.mxu0 %v1441
        %1839 = vmatpush1.msra.mxu0 %v1440
        %1840 = vmatprep.subr.mxu0 %v1445
        %1841 = vmatpush1.msra.mxu0 %v1444
        %1842 = vmatprep.subr.mxu0 %v1449
        %1843 = vmatpush1.msra.mxu0 %v1448
        %1844 = vmatprep.subr.mxu0 %v1453
        %1845 = vmatpush1.msra.mxu0 %v1452
        %1846 = vmatprep.subr.mxu0 %v1457
        %1847 = vmatpush1.msra.mxu0 %v1456
        %1848 = vmatprep.subr.mxu0 %v1461
        %1849 = vmatpush1.msra.mxu0 %v1460
        %1850 = vmatprep.subr.mxu0 %v1465
        %1851 = vmatpush1.msra.mxu0 %v1464
        %1852 = vmatprep.subr.mxu0 %v1469
        %1853 = vmatpush1.msra.mxu0 %v1468
        %1854 = vmatprep.subr.mxu0 %v1473
        %1855 = vmatpush1.msra.mxu0 %v1472
        %1856 = vmatprep.subr.mxu0 %v1477
        %1857 = vmatpush1.msra.mxu0 %v1476
        %1858 = vmatprep.subr.mxu0 %v1481
        %1859 = vmatpush1.msra.mxu0 %v1480
        %1860 = vmatprep.subr.mxu0 %v1485
        %1861 = vmatpush1.msra.mxu0 %v1484
        %1862 = vmatprep.subr.mxu0 %v1489
        %1863 = vmatpush1.msra.mxu0 %v1488
        %1864 = vmatprep.subr.mxu0 %v1493
        %1865 = vmatpush1.msra.mxu0 %v1492
        %1866 = vmatprep.subr.mxu0 %v1497
        %1867 = vmatpush1.msra.mxu0 %v1496
        %1868 = vmatprep.subr.mxu0 %v1501
        %1869 = vmatpush1.msra.mxu0 %v1500
        %1870 = vmatprep.subr.mxu0 %v1505
        %1871 = vmatpush1.msra.mxu0 %v1504
        %1872 = vmatprep.subr.mxu0 %v1509
        %1873 = vmatpush1.msra.mxu0 %v1508
        %1874 = vmatprep.subr.mxu0 %v1513
        %1875 = vmatpush1.msra.mxu0 %v1512
        %1876 = vmatprep.subr.mxu0 %v1517
        %1877 = vmatpush1.msra.mxu0 %v1516
        %1878 = vmatprep.subr.mxu0 %v1521
        %1879 = vmatpush1.msra.mxu0 %v1520
        %1880 = vmatprep.subr.mxu0 %v1525
        %1881 = vmatpush1.msra.mxu0 %v1524
        %1882 = vmatprep.subr.mxu0 %v1529
        %1883 = vmatpush1.msra.mxu0 %v1528
        %1884 = vmatprep.subr.mxu0 %v1533
        %1885 = vmatpush1.msra.mxu0 %v1532
        %1886 = vmatprep.subr.mxu0 %v1537
        %1887 = vmatpush1.msra.mxu0 %v1536
        %1888 = vmatprep.subr.mxu0 %v1541
        %1889 = vmatpush1.msra.mxu0 %v1540
        %1890 = vmatprep.subr.mxu0 %v1545
        %1891 = vmatpush1.msra.mxu0 %v1544
        %1892 = vmatprep.mubr.f32.mxu0 %v232
        %1893 = vmatmul.mubr.f32.gmra.mrb[0].mxu0 %v231
        %v1894 = vpop.f32.mrb[0].mxu0
        %v1895 = vadd.f32 0.0, %v1894
        %v1896 = vpop.f32.mrb[0].mxu0
        %v1897 = vadd.f32 0.0, %v1896
        %1898 = vmatprep.mubr.f32.mxu0 %v1414
        %1899 = vmatmul.mubr.f32.gmra.mrb[0].mxu0 %v1413
        %v1900 = vpop.f32.mrb[0].mxu0
        %v1901 = vadd.f32 0.0, %v1900
        %v1902 = vpop.f32.mrb[0].mxu0
        %v1903 = vadd.f32 0.0, %v1902
        %1904 = vdwg.mxu0
        %1905 = vmatprep.subr.mxu0 %v1549
        %1906 = vmatpush1.msra.mxu0 %v1548
        %1907 = vmatprep.subr.mxu0 %v1553
        %1908 = vmatpush1.msra.mxu0 %v1552
        %1909 = vmatprep.subr.mxu0 %v1557
        %1910 = vmatpush1.msra.mxu0 %v1556
        %1911 = vmatprep.subr.mxu0 %v1561
        %1912 = vmatpush1.msra.mxu0 %v1560
        %1913 = vmatprep.subr.mxu0 %v1565
        %1914 = vmatpush1.msra.mxu0 %v1564
        %1915 = vmatprep.subr.mxu0 %v1569
        %1916 = vmatpush1.msra.mxu0 %v1568
        %1917 = vmatprep.subr.mxu0 %v1573
        %1918 = vmatpush1.msra.mxu0 %v1572
        %1919 = vmatprep.subr.mxu0 %v1577
        %1920 = vmatpush1.msra.mxu0 %v1576
        %1921 = vmatprep.subr.mxu0 %v1581
        %1922 = vmatpush1.msra.mxu0 %v1580
        %1923 = vmatprep.subr.mxu0 %v1585
        %1924 = vmatpush1.msra.mxu0 %v1584
        %1925 = vmatprep.subr.mxu0 %v1589
        %1926 = vmatpush1.msra.mxu0 %v1588
        %1927 = vmatprep.subr.mxu0 %v1593
        %1928 = vmatpush1.msra.mxu0 %v1592
        %1929 = vmatprep.subr.mxu0 %v1597
        %1930 = vmatpush1.msra.mxu0 %v1596
        %1931 = vmatprep.subr.mxu0 %v1601
        %1932 = vmatpush1.msra.mxu0 %v1600
        %1933 = vmatprep.subr.mxu0 %v1605
        %1934 = vmatpush1.msra.mxu0 %v1604
        %1935 = vmatprep.subr.mxu0 %v1609
        %1936 = vmatpush1.msra.mxu0 %v1608
        %1937 = vmatprep.subr.mxu0 %v1613
        %1938 = vmatpush1.msra.mxu0 %v1612
        %1939 = vmatprep.subr.mxu0 %v1617
        %1940 = vmatpush1.msra.mxu0 %v1616
        %1941 = vmatprep.subr.mxu0 %v1621
        %1942 = vmatpush1.msra.mxu0 %v1620
        %1943 = vmatprep.subr.mxu0 %v1625
        %1944 = vmatpush1.msra.mxu0 %v1624
        %1945 = vmatprep.subr.mxu0 %v1629
        %1946 = vmatpush1.msra.mxu0 %v1628
        %1947 = vmatprep.subr.mxu0 %v1633
        %1948 = vmatpush1.msra.mxu0 %v1632
        %1949 = vmatprep.subr.mxu0 %v1637
        %1950 = vmatpush1.msra.mxu0 %v1636
        %1951 = vmatprep.subr.mxu0 %v1641
        %1952 = vmatpush1.msra.mxu0 %v1640
        %1953 = vmatprep.subr.mxu0 %v1645
        %1954 = vmatpush1.msra.mxu0 %v1644
        %1955 = vmatprep.subr.mxu0 %v1649
        %1956 = vmatpush1.msra.mxu0 %v1648
        %1957 = vmatprep.subr.mxu0 %v1653
        %1958 = vmatpush1.msra.mxu0 %v1652
        %1959 = vmatprep.subr.mxu0 %v1657
        %1960 = vmatpush1.msra.mxu0 %v1656
        %1961 = vmatprep.subr.mxu0 %v1661
        %1962 = vmatpush1.msra.mxu0 %v1660
        %1963 = vmatprep.subr.mxu0 %v1665
        %1964 = vmatpush1.msra.mxu0 %v1664
        %1965 = vmatprep.subr.mxu0 %v1669
        %1966 = vmatpush1.msra.mxu0 %v1668
        %1967 = vmatprep.subr.mxu0 %v1673
        %1968 = vmatpush1.msra.mxu0 %v1672
        %1969 = vmatprep.mubr.f32.mxu0 %v234
        %1970 = vmatmul.mubr.f32.gmra.mrb[0].mxu0 %v233
        %v1971 = vpop.f32.mrb[0].mxu0
        %v1972 = vadd.f32 %v1895, %v1971
        %v1973 = vpop.f32.mrb[0].mxu0
        %v1974 = vadd.f32 %v1897, %v1973
        %1975 = vmatprep.mubr.f32.mxu0 %v1416
        %1976 = vmatmul.mubr.f32.gmra.mrb[0].mxu0 %v1415
        %v1977 = vpop.f32.mrb[0].mxu0
        %v1978 = vadd.f32 %v1901, %v1977
        %v1979 = vpop.f32.mrb[0].mxu0
        %v1980 = vadd.f32 %v1903, %v1979
        %1981 = vdwg.mxu0
        %v1982 = vadd.f32 %v1249, %v1818
        %v1983 = vadd.f32 %v1251, %v1820
        %v1984 = vadd.f32 %v1403, %v1972
        %v1985 = vadd.f32 %v1405, %v1974
        %v1986 = vadd.f32 %v1255, %v1824
        %v1987 = vadd.f32 %v1257, %v1826
        %v1988 = vadd.f32 %v1409, %v1978
        %v1989 = vadd.f32 %v1411, %v1980
        %v1990 = vld [vmem:[%s221 + $0x20] sm:$0xfe]
        %v1991 = vld [vmem:[%s221 + $0x28] sm:$0xfe]
        %v1992 = vld [vmem:[%s221 + $0x30] sm:$0xfe]
        %v1993 = vld [vmem:[%s221 + $0x38] sm:$0xfe]
        %v1994 = vld [vmem:[%s221 + $0x40] sm:$0xff]
        %v1995 = vld [vmem:[%s221 + $0x48] sm:$0xff]
        %v1996 = vld [vmem:[%s221 + $0x50] sm:$0xff]
        %v1997 = vld [vmem:[%s221 + $0x58] sm:$0xff]
        %v1998 = vld [vmem:[%s221 + $0x60] sm:$0x1]
        %v1999 = vld [vmem:[%s221 + $0x68] sm:$0x1]
        %v2000 = vld [vmem:[%s221 + $0x70] sm:$0x1]
        %v2001 = vld [vmem:[%s221 + $0x78] sm:$0x1]
        %s2002 = scalar_lea.vmem [#allocation4], 6144
        %v2003 = vld [vmem:[%s2002] sm:$0xff]
        %v2004 = vld [vmem:[%s2002 + $0x8] sm:$0xff]
        %v2005 = vld [vmem:[%s2002 + $0x10] sm:$0xff]
        %v2006 = vld [vmem:[%s2002 + $0x18] sm:$0xff]
        %v2007 = vld [vmem:[%s2002 + $0x20] sm:$0xff]
        %v2008 = vld [vmem:[%s2002 + $0x28] sm:$0xff]
        %v2009 = vld [vmem:[%s2002 + $0x30] sm:$0xff]
        %v2010 = vld [vmem:[%s2002 + $0x38] sm:$0xff]
        %v2011 = vld [vmem:[%s2002 + $0x40] sm:$0xff]
        %v2012 = vld [vmem:[%s2002 + $0x48] sm:$0xff]
        %v2013 = vld [vmem:[%s2002 + $0x50] sm:$0xff]
        %v2014 = vld [vmem:[%s2002 + $0x58] sm:$0xff]
        %v2015 = vld [vmem:[%s2002 + $0x60] sm:$0xff]
        %v2016 = vld [vmem:[%s2002 + $0x68] sm:$0xff]
        %v2017 = vld [vmem:[%s2002 + $0x70] sm:$0xff]
        %v2018 = vld [vmem:[%s2002 + $0x78] sm:$0xff]
        %v2019 = vld [vmem:[%s2002 + $0x80] sm:$0xff]
        %v2020 = vld [vmem:[%s2002 + $0x88] sm:$0xff]
        %v2021 = vld [vmem:[%s2002 + $0x90] sm:$0xff]
        %v2022 = vld [vmem:[%s2002 + $0x98] sm:$0xff]
        %v2023 = vld [vmem:[%s2002 + $0xa0] sm:$0xff]
        %v2024 = vld [vmem:[%s2002 + $0xa8] sm:$0xff]
        %v2025 = vld [vmem:[%s2002 + $0xb0] sm:$0xff]
        %v2026 = vld [vmem:[%s2002 + $0xb8] sm:$0xff]
        %v2027 = vld [vmem:[%s2002 + $0xc0] sm:$0xff]
        %v2028 = vld [vmem:[%s2002 + $0xc8] sm:$0xff]
        %v2029 = vld [vmem:[%s2002 + $0xd0] sm:$0xff]
        %v2030 = vld [vmem:[%s2002 + $0xd8] sm:$0xff]
        %v2031 = vld [vmem:[%s2002 + $0xe0] sm:$0xff]
        %v2032 = vld [vmem:[%s2002 + $0xe8] sm:$0xff]
        %v2033 = vld [vmem:[%s2002 + $0xf0] sm:$0xff]
        %v2034 = vld [vmem:[%s2002 + $0xf8] sm:$0xff]
        %v2035 = vld [vmem:[%s2002 + $0x100] sm:$0xff]
        %v2036 = vld [vmem:[%s2002 + $0x108] sm:$0xff]
        %v2037 = vld [vmem:[%s2002 + $0x110] sm:$0xff]
        %v2038 = vld [vmem:[%s2002 + $0x118] sm:$0xff]
        %v2039 = vld [vmem:[%s2002 + $0x120] sm:$0xff]
        %v2040 = vld [vmem:[%s2002 + $0x128] sm:$0xff]
        %v2041 = vld [vmem:[%s2002 + $0x130] sm:$0xff]
        %v2042 = vld [vmem:[%s2002 + $0x138] sm:$0xff]
        %v2043 = vld [vmem:[%s2002 + $0x140] sm:$0xff]
        %v2044 = vld [vmem:[%s2002 + $0x148] sm:$0xff]
        %v2045 = vld [vmem:[%s2002 + $0x150] sm:$0xff]
        %v2046 = vld [vmem:[%s2002 + $0x158] sm:$0xff]
        %v2047 = vld [vmem:[%s2002 + $0x160] sm:$0xff]
        %v2048 = vld [vmem:[%s2002 + $0x168] sm:$0xff]
        %v2049 = vld [vmem:[%s2002 + $0x170] sm:$0xff]
        %v2050 = vld [vmem:[%s2002 + $0x178] sm:$0xff]
        %v2051 = vld [vmem:[%s2002 + $0x180] sm:$0xff]
        %v2052 = vld [vmem:[%s2002 + $0x188] sm:$0xff]
        %v2053 = vld [vmem:[%s2002 + $0x190] sm:$0xff]
        %v2054 = vld [vmem:[%s2002 + $0x198] sm:$0xff]
        %v2055 = vld [vmem:[%s2002 + $0x1a0] sm:$0xff]
        %v2056 = vld [vmem:[%s2002 + $0x1a8] sm:$0xff]
        %v2057 = vld [vmem:[%s2002 + $0x1b0] sm:$0xff]
        %v2058 = vld [vmem:[%s2002 + $0x1b8] sm:$0xff]
        %v2059 = vld [vmem:[%s2002 + $0x1c0] sm:$0xff]
        %v2060 = vld [vmem:[%s2002 + $0x1c8] sm:$0xff]
        %v2061 = vld [vmem:[%s2002 + $0x1d0] sm:$0xff]
        %v2062 = vld [vmem:[%s2002 + $0x1d8] sm:$0xff]
        %v2063 = vld [vmem:[%s2002 + $0x1e0] sm:$0xff]
        %v2064 = vld [vmem:[%s2002 + $0x1e8] sm:$0xff]
        %v2065 = vld [vmem:[%s2002 + $0x1f0] sm:$0xff]
        %v2066 = vld [vmem:[%s2002 + $0x1f8] sm:$0xff]
        %v2067 = vld [vmem:[%s2002 + $0x200] sm:$0xff]
        %v2068 = vld [vmem:[%s2002 + $0x208] sm:$0xff]
        %v2069 = vld [vmem:[%s2002 + $0x210] sm:$0xff]
        %v2070 = vld [vmem:[%s2002 + $0x218] sm:$0xff]
        %v2071 = vld [vmem:[%s2002 + $0x220] sm:$0xff]
        %v2072 = vld [vmem:[%s2002 + $0x228] sm:$0xff]
        %v2073 = vld [vmem:[%s2002 + $0x230] sm:$0xff]
        %v2074 = vld [vmem:[%s2002 + $0x238] sm:$0xff]
        %v2075 = vld [vmem:[%s2002 + $0x240] sm:$0xff]
        %v2076 = vld [vmem:[%s2002 + $0x248] sm:$0xff]
        %v2077 = vld [vmem:[%s2002 + $0x250] sm:$0xff]
        %v2078 = vld [vmem:[%s2002 + $0x258] sm:$0xff]
        %v2079 = vld [vmem:[%s2002 + $0x260] sm:$0xff]
        %v2080 = vld [vmem:[%s2002 + $0x268] sm:$0xff]
        %v2081 = vld [vmem:[%s2002 + $0x270] sm:$0xff]
        %v2082 = vld [vmem:[%s2002 + $0x278] sm:$0xff]
        %v2083 = vld [vmem:[%s2002 + $0x280] sm:$0xff]
        %v2084 = vld [vmem:[%s2002 + $0x288] sm:$0xff]
        %v2085 = vld [vmem:[%s2002 + $0x290] sm:$0xff]
        %v2086 = vld [vmem:[%s2002 + $0x298] sm:$0xff]
        %v2087 = vld [vmem:[%s2002 + $0x2a0] sm:$0xff]
        %v2088 = vld [vmem:[%s2002 + $0x2a8] sm:$0xff]
        %v2089 = vld [vmem:[%s2002 + $0x2b0] sm:$0xff]
        %v2090 = vld [vmem:[%s2002 + $0x2b8] sm:$0xff]
        %v2091 = vld [vmem:[%s2002 + $0x2c0] sm:$0xff]
        %v2092 = vld [vmem:[%s2002 + $0x2c8] sm:$0xff]
        %v2093 = vld [vmem:[%s2002 + $0x2d0] sm:$0xff]
        %v2094 = vld [vmem:[%s2002 + $0x2d8] sm:$0xff]
        %v2095 = vld [vmem:[%s2002 + $0x2e0] sm:$0xff]
        %v2096 = vld [vmem:[%s2002 + $0x2e8] sm:$0xff]
        %v2097 = vld [vmem:[%s2002 + $0x2f0] sm:$0xff]
        %v2098 = vld [vmem:[%s2002 + $0x2f8] sm:$0xff]
        %v2099 = vld [vmem:[%s2002 + $0x300] sm:$0xff]
        %v2100 = vld [vmem:[%s2002 + $0x308] sm:$0xff]
        %v2101 = vld [vmem:[%s2002 + $0x310] sm:$0xff]
        %v2102 = vld [vmem:[%s2002 + $0x318] sm:$0xff]
        %v2103 = vld [vmem:[%s2002 + $0x320] sm:$0xff]
        %v2104 = vld [vmem:[%s2002 + $0x328] sm:$0xff]
        %v2105 = vld [vmem:[%s2002 + $0x330] sm:$0xff]
        %v2106 = vld [vmem:[%s2002 + $0x338] sm:$0xff]
        %v2107 = vld [vmem:[%s2002 + $0x340] sm:$0xff]
        %v2108 = vld [vmem:[%s2002 + $0x348] sm:$0xff]
        %v2109 = vld [vmem:[%s2002 + $0x350] sm:$0xff]
        %v2110 = vld [vmem:[%s2002 + $0x358] sm:$0xff]
        %v2111 = vld [vmem:[%s2002 + $0x360] sm:$0xff]
        %v2112 = vld [vmem:[%s2002 + $0x368] sm:$0xff]
        %v2113 = vld [vmem:[%s2002 + $0x370] sm:$0xff]
        %v2114 = vld [vmem:[%s2002 + $0x378] sm:$0xff]
        %v2115 = vld [vmem:[%s2002 + $0x380] sm:$0xff]
        %v2116 = vld [vmem:[%s2002 + $0x388] sm:$0xff]
        %v2117 = vld [vmem:[%s2002 + $0x390] sm:$0xff]
        %v2118 = vld [vmem:[%s2002 + $0x398] sm:$0xff]
        %v2119 = vld [vmem:[%s2002 + $0x3a0] sm:$0xff]
        %v2120 = vld [vmem:[%s2002 + $0x3a8] sm:$0xff]
        %v2121 = vld [vmem:[%s2002 + $0x3b0] sm:$0xff]
        %v2122 = vld [vmem:[%s2002 + $0x3b8] sm:$0xff]
        %v2123 = vld [vmem:[%s2002 + $0x3c0] sm:$0xff]
        %v2124 = vld [vmem:[%s2002 + $0x3c8] sm:$0xff]
        %v2125 = vld [vmem:[%s2002 + $0x3d0] sm:$0xff]
        %v2126 = vld [vmem:[%s2002 + $0x3d8] sm:$0xff]
        %v2127 = vld [vmem:[%s2002 + $0x3e0] sm:$0xff]
        %v2128 = vld [vmem:[%s2002 + $0x3e8] sm:$0xff]
        %v2129 = vld [vmem:[%s2002 + $0x3f0] sm:$0xff]
        %v2130 = vld [vmem:[%s2002 + $0x3f8] sm:$0xff]
        %v2131 = vld [vmem:[%s2002 + $0x400] sm:$0xff]
        %v2132 = vld [vmem:[%s2002 + $0x408] sm:$0xff]
        %v2133 = vld [vmem:[%s2002 + $0x410] sm:$0xff]
        %v2134 = vld [vmem:[%s2002 + $0x418] sm:$0xff]
        %v2135 = vld [vmem:[%s2002 + $0x420] sm:$0xff]
        %v2136 = vld [vmem:[%s2002 + $0x428] sm:$0xff]
        %v2137 = vld [vmem:[%s2002 + $0x430] sm:$0xff]
        %v2138 = vld [vmem:[%s2002 + $0x438] sm:$0xff]
        %v2139 = vld [vmem:[%s2002 + $0x440] sm:$0xff]
        %v2140 = vld [vmem:[%s2002 + $0x448] sm:$0xff]
        %v2141 = vld [vmem:[%s2002 + $0x450] sm:$0xff]
        %v2142 = vld [vmem:[%s2002 + $0x458] sm:$0xff]
        %v2143 = vld [vmem:[%s2002 + $0x460] sm:$0xff]
        %v2144 = vld [vmem:[%s2002 + $0x468] sm:$0xff]
        %v2145 = vld [vmem:[%s2002 + $0x470] sm:$0xff]
        %v2146 = vld [vmem:[%s2002 + $0x478] sm:$0xff]
        %v2147 = vld [vmem:[%s2002 + $0x480] sm:$0xff]
        %v2148 = vld [vmem:[%s2002 + $0x488] sm:$0xff]
        %v2149 = vld [vmem:[%s2002 + $0x490] sm:$0xff]
        %v2150 = vld [vmem:[%s2002 + $0x498] sm:$0xff]
        %v2151 = vld [vmem:[%s2002 + $0x4a0] sm:$0xff]
        %v2152 = vld [vmem:[%s2002 + $0x4a8] sm:$0xff]
        %v2153 = vld [vmem:[%s2002 + $0x4b0] sm:$0xff]
        %v2154 = vld [vmem:[%s2002 + $0x4b8] sm:$0xff]
        %v2155 = vld [vmem:[%s2002 + $0x4c0] sm:$0xff]
        %v2156 = vld [vmem:[%s2002 + $0x4c8] sm:$0xff]
        %v2157 = vld [vmem:[%s2002 + $0x4d0] sm:$0xff]
        %v2158 = vld [vmem:[%s2002 + $0x4d8] sm:$0xff]
        %v2159 = vld [vmem:[%s2002 + $0x4e0] sm:$0xff]
        %v2160 = vld [vmem:[%s2002 + $0x4e8] sm:$0xff]
        %v2161 = vld [vmem:[%s2002 + $0x4f0] sm:$0xff]
        %v2162 = vld [vmem:[%s2002 + $0x4f8] sm:$0xff]
        %v2163 = vld [vmem:[%s2002 + $0x500] sm:$0xff]
        %v2164 = vld [vmem:[%s2002 + $0x508] sm:$0xff]
        %v2165 = vld [vmem:[%s2002 + $0x510] sm:$0xff]
        %v2166 = vld [vmem:[%s2002 + $0x518] sm:$0xff]
        %v2167 = vld [vmem:[%s2002 + $0x520] sm:$0xff]
        %v2168 = vld [vmem:[%s2002 + $0x528] sm:$0xff]
        %v2169 = vld [vmem:[%s2002 + $0x530] sm:$0xff]
        %v2170 = vld [vmem:[%s2002 + $0x538] sm:$0xff]
        %v2171 = vld [vmem:[%s2002 + $0x540] sm:$0xff]
        %v2172 = vld [vmem:[%s2002 + $0x548] sm:$0xff]
        %v2173 = vld [vmem:[%s2002 + $0x550] sm:$0xff]
        %v2174 = vld [vmem:[%s2002 + $0x558] sm:$0xff]
        %v2175 = vld [vmem:[%s2002 + $0x560] sm:$0xff]
        %v2176 = vld [vmem:[%s2002 + $0x568] sm:$0xff]
        %v2177 = vld [vmem:[%s2002 + $0x570] sm:$0xff]
        %v2178 = vld [vmem:[%s2002 + $0x578] sm:$0xff]
        %v2179 = vld [vmem:[%s2002 + $0x580] sm:$0xff]
        %v2180 = vld [vmem:[%s2002 + $0x588] sm:$0xff]
        %v2181 = vld [vmem:[%s2002 + $0x590] sm:$0xff]
        %v2182 = vld [vmem:[%s2002 + $0x598] sm:$0xff]
        %v2183 = vld [vmem:[%s2002 + $0x5a0] sm:$0xff]
        %v2184 = vld [vmem:[%s2002 + $0x5a8] sm:$0xff]
        %v2185 = vld [vmem:[%s2002 + $0x5b0] sm:$0xff]
        %v2186 = vld [vmem:[%s2002 + $0x5b8] sm:$0xff]
        %v2187 = vld [vmem:[%s2002 + $0x5c0] sm:$0xff]
        %v2188 = vld [vmem:[%s2002 + $0x5c8] sm:$0xff]
        %v2189 = vld [vmem:[%s2002 + $0x5d0] sm:$0xff]
        %v2190 = vld [vmem:[%s2002 + $0x5d8] sm:$0xff]
        %v2191 = vld [vmem:[%s2002 + $0x5e0] sm:$0xff]
        %v2192 = vld [vmem:[%s2002 + $0x5e8] sm:$0xff]
        %v2193 = vld [vmem:[%s2002 + $0x5f0] sm:$0xff]
        %v2194 = vld [vmem:[%s2002 + $0x5f8] sm:$0xff]
        %v2195 = vld [vmem:[%s2002 + $0x600] sm:$0xff]
        %v2196 = vld [vmem:[%s2002 + $0x608] sm:$0xff]
        %v2197 = vld [vmem:[%s2002 + $0x610] sm:$0xff]
        %v2198 = vld [vmem:[%s2002 + $0x618] sm:$0xff]
        %v2199 = vld [vmem:[%s2002 + $0x620] sm:$0xff]
        %v2200 = vld [vmem:[%s2002 + $0x628] sm:$0xff]
        %v2201 = vld [vmem:[%s2002 + $0x630] sm:$0xff]
        %v2202 = vld [vmem:[%s2002 + $0x638] sm:$0xff]
        %v2203 = vld [vmem:[%s2002 + $0x640] sm:$0xff]
        %v2204 = vld [vmem:[%s2002 + $0x648] sm:$0xff]
        %v2205 = vld [vmem:[%s2002 + $0x650] sm:$0xff]
        %v2206 = vld [vmem:[%s2002 + $0x658] sm:$0xff]
        %v2207 = vld [vmem:[%s2002 + $0x660] sm:$0xff]
        %v2208 = vld [vmem:[%s2002 + $0x668] sm:$0xff]
        %v2209 = vld [vmem:[%s2002 + $0x670] sm:$0xff]
        %v2210 = vld [vmem:[%s2002 + $0x678] sm:$0xff]
        %v2211 = vld [vmem:[%s2002 + $0x680] sm:$0xff]
        %v2212 = vld [vmem:[%s2002 + $0x688] sm:$0xff]
        %v2213 = vld [vmem:[%s2002 + $0x690] sm:$0xff]
        %v2214 = vld [vmem:[%s2002 + $0x698] sm:$0xff]
        %v2215 = vld [vmem:[%s2002 + $0x6a0] sm:$0xff]
        %v2216 = vld [vmem:[%s2002 + $0x6a8] sm:$0xff]
        %v2217 = vld [vmem:[%s2002 + $0x6b0] sm:$0xff]
        %v2218 = vld [vmem:[%s2002 + $0x6b8] sm:$0xff]
        %v2219 = vld [vmem:[%s2002 + $0x6c0] sm:$0xff]
        %v2220 = vld [vmem:[%s2002 + $0x6c8] sm:$0xff]
        %v2221 = vld [vmem:[%s2002 + $0x6d0] sm:$0xff]
        %v2222 = vld [vmem:[%s2002 + $0x6d8] sm:$0xff]
        %v2223 = vld [vmem:[%s2002 + $0x6e0] sm:$0xff]
        %v2224 = vld [vmem:[%s2002 + $0x6e8] sm:$0xff]
        %v2225 = vld [vmem:[%s2002 + $0x6f0] sm:$0xff]
        %v2226 = vld [vmem:[%s2002 + $0x6f8] sm:$0xff]
        %v2227 = vld [vmem:[%s2002 + $0x700] sm:$0xff]
        %v2228 = vld [vmem:[%s2002 + $0x708] sm:$0xff]
        %v2229 = vld [vmem:[%s2002 + $0x710] sm:$0xff]
        %v2230 = vld [vmem:[%s2002 + $0x718] sm:$0xff]
        %v2231 = vld [vmem:[%s2002 + $0x720] sm:$0xff]
        %v2232 = vld [vmem:[%s2002 + $0x728] sm:$0xff]
        %v2233 = vld [vmem:[%s2002 + $0x730] sm:$0xff]
        %v2234 = vld [vmem:[%s2002 + $0x738] sm:$0xff]
        %v2235 = vld [vmem:[%s2002 + $0x740] sm:$0xff]
        %v2236 = vld [vmem:[%s2002 + $0x748] sm:$0xff]
        %v2237 = vld [vmem:[%s2002 + $0x750] sm:$0xff]
        %v2238 = vld [vmem:[%s2002 + $0x758] sm:$0xff]
        %v2239 = vld [vmem:[%s2002 + $0x760] sm:$0xff]
        %v2240 = vld [vmem:[%s2002 + $0x768] sm:$0xff]
        %v2241 = vld [vmem:[%s2002 + $0x770] sm:$0xff]
        %v2242 = vld [vmem:[%s2002 + $0x778] sm:$0xff]
        %v2243 = vld [vmem:[%s2002 + $0x780] sm:$0xff]
        %v2244 = vld [vmem:[%s2002 + $0x788] sm:$0xff]
        %v2245 = vld [vmem:[%s2002 + $0x790] sm:$0xff]
        %v2246 = vld [vmem:[%s2002 + $0x798] sm:$0xff]
        %v2247 = vld [vmem:[%s2002 + $0x7a0] sm:$0xff]
        %v2248 = vld [vmem:[%s2002 + $0x7a8] sm:$0xff]
        %v2249 = vld [vmem:[%s2002 + $0x7b0] sm:$0xff]
        %v2250 = vld [vmem:[%s2002 + $0x7b8] sm:$0xff]
        %v2251 = vld [vmem:[%s2002 + $0x7c0] sm:$0xff]
        %v2252 = vld [vmem:[%s2002 + $0x7c8] sm:$0xff]
        %v2253 = vld [vmem:[%s2002 + $0x7d0] sm:$0xff]
        %v2254 = vld [vmem:[%s2002 + $0x7d8] sm:$0xff]
        %v2255 = vld [vmem:[%s2002 + $0x7e0] sm:$0xff]
        %v2256 = vld [vmem:[%s2002 + $0x7e8] sm:$0xff]
        %v2257 = vld [vmem:[%s2002 + $0x7f0] sm:$0xff]
        %v2258 = vld [vmem:[%s2002 + $0x7f8] sm:$0xff]
        %v2271 = vrot.slane %v1990, 1
        %v2272 = vrot.slane %v1994, 1
        %v2273 = vsel %vm768, %v2271, %v2272
        %v2274 = vrot.slane %v1991, 1
        %v2275 = vrot.slane %v1995, 1
        %v2276 = vsel %vm768, %v2274, %v2275
        %v2277 = vrot.slane %v1992, 1
        %v2278 = vrot.slane %v1996, 1
        %v2279 = vsel %vm768, %v2277, %v2278
        %v2280 = vrot.slane %v1993, 1
        %v2281 = vrot.slane %v1997, 1
        %v2282 = vsel %vm768, %v2280, %v2281
        %v2283 = vrot.slane %v1998, 1
        %v2284 = vsel %vm768, %v2272, %v2283
        %v2285 = vrot.slane %v1999, 1
        %v2286 = vsel %vm768, %v2275, %v2285
        %v2287 = vrot.slane %v2000, 1
        %v2288 = vsel %vm768, %v2278, %v2287
        %v2289 = vrot.slane %v2001, 1
        %v2290 = vsel %vm768, %v2281, %v2289
        %2299 = vmatprep.subr.mxu0 %v2004
        %2300 = vmatpush1.msra.mxu0 %v2003
        %2301 = vmatprep.subr.mxu0 %v2008
        %2302 = vmatpush1.msra.mxu0 %v2007
        %2303 = vmatprep.subr.mxu0 %v2012
        %2304 = vmatpush1.msra.mxu0 %v2011
        %2305 = vmatprep.subr.mxu0 %v2016
        %2306 = vmatpush1.msra.mxu0 %v2015
        %2307 = vmatprep.subr.mxu0 %v2020
        %2308 = vmatpush1.msra.mxu0 %v2019
        %2309 = vmatprep.subr.mxu0 %v2024
        %2310 = vmatpush1.msra.mxu0 %v2023
        %2311 = vmatprep.subr.mxu0 %v2028
        %2312 = vmatpush1.msra.mxu0 %v2027
        %2313 = vmatprep.subr.mxu0 %v2032
        %2314 = vmatpush1.msra.mxu0 %v2031
        %2315 = vmatprep.subr.mxu0 %v2036
        %2316 = vmatpush1.msra.mxu0 %v2035
        %2317 = vmatprep.subr.mxu0 %v2040
        %2318 = vmatpush1.msra.mxu0 %v2039
        %2319 = vmatprep.subr.mxu0 %v2044
        %2320 = vmatpush1.msra.mxu0 %v2043
        %2321 = vmatprep.subr.mxu0 %v2048
        %2322 = vmatpush1.msra.mxu0 %v2047
        %2323 = vmatprep.subr.mxu0 %v2052
        %2324 = vmatpush1.msra.mxu0 %v2051
        %2325 = vmatprep.subr.mxu0 %v2056
        %2326 = vmatpush1.msra.mxu0 %v2055
        %2327 = vmatprep.subr.mxu0 %v2060
        %2328 = vmatpush1.msra.mxu0 %v2059
        %2329 = vmatprep.subr.mxu0 %v2064
        %2330 = vmatpush1.msra.mxu0 %v2063
        %2331 = vmatprep.subr.mxu0 %v2068
        %2332 = vmatpush1.msra.mxu0 %v2067
        %2333 = vmatprep.subr.mxu0 %v2072
        %2334 = vmatpush1.msra.mxu0 %v2071
        %2335 = vmatprep.subr.mxu0 %v2076
        %2336 = vmatpush1.msra.mxu0 %v2075
        %2337 = vmatprep.subr.mxu0 %v2080
        %2338 = vmatpush1.msra.mxu0 %v2079
        %2339 = vmatprep.subr.mxu0 %v2084
        %2340 = vmatpush1.msra.mxu0 %v2083
        %2341 = vmatprep.subr.mxu0 %v2088
        %2342 = vmatpush1.msra.mxu0 %v2087
        %2343 = vmatprep.subr.mxu0 %v2092
        %2344 = vmatpush1.msra.mxu0 %v2091
        %2345 = vmatprep.subr.mxu0 %v2096
        %2346 = vmatpush1.msra.mxu0 %v2095
        %2347 = vmatprep.subr.mxu0 %v2100
        %2348 = vmatpush1.msra.mxu0 %v2099
        %2349 = vmatprep.subr.mxu0 %v2104
        %2350 = vmatpush1.msra.mxu0 %v2103
        %2351 = vmatprep.subr.mxu0 %v2108
        %2352 = vmatpush1.msra.mxu0 %v2107
        %2353 = vmatprep.subr.mxu0 %v2112
        %2354 = vmatpush1.msra.mxu0 %v2111
        %2355 = vmatprep.subr.mxu0 %v2116
        %2356 = vmatpush1.msra.mxu0 %v2115
        %2357 = vmatprep.subr.mxu0 %v2120
        %2358 = vmatpush1.msra.mxu0 %v2119
        %2359 = vmatprep.subr.mxu0 %v2124
        %2360 = vmatpush1.msra.mxu0 %v2123
        %2361 = vmatprep.subr.mxu0 %v2128
        %2362 = vmatpush1.msra.mxu0 %v2127
        %2363 = vmatprep.mubr.f32.mxu0 %v2276
        %2364 = vmatmul.mubr.f32.gmra.mrb[0].mxu0 %v2273
        %v2365 = vpop.f32.mrb[0].mxu0
        %v2366 = vadd.f32 0.0, %v2365
        %v2367 = vpop.f32.mrb[0].mxu0
        %v2368 = vadd.f32 0.0, %v2367
        %2369 = vmatprep.mubr.f32.mxu0 %v2286
        %2370 = vmatmul.mubr.f32.gmra.mrb[0].mxu0 %v2284
        %v2371 = vpop.f32.mrb[0].mxu0
        %v2372 = vadd.f32 0.0, %v2371
        %v2373 = vpop.f32.mrb[0].mxu0
        %v2374 = vadd.f32 0.0, %v2373
        %2375 = vdwg.mxu0
        %2376 = vmatprep.subr.mxu0 %v2132
        %2377 = vmatpush1.msra.mxu0 %v2131
        %2378 = vmatprep.subr.mxu0 %v2136
        %2379 = vmatpush1.msra.mxu0 %v2135
        %2380 = vmatprep.subr.mxu0 %v2140
        %2381 = vmatpush1.msra.mxu0 %v2139
        %2382 = vmatprep.subr.mxu0 %v2144
        %2383 = vmatpush1.msra.mxu0 %v2143
        %2384 = vmatprep.subr.mxu0 %v2148
        %2385 = vmatpush1.msra.mxu0 %v2147
        %2386 = vmatprep.subr.mxu0 %v2152
        %2387 = vmatpush1.msra.mxu0 %v2151
        %2388 = vmatprep.subr.mxu0 %v2156
        %2389 = vmatpush1.msra.mxu0 %v2155
        %2390 = vmatprep.subr.mxu0 %v2160
        %2391 = vmatpush1.msra.mxu0 %v2159
        %2392 = vmatprep.subr.mxu0 %v2164
        %2393 = vmatpush1.msra.mxu0 %v2163
        %2394 = vmatprep.subr.mxu0 %v2168
        %2395 = vmatpush1.msra.mxu0 %v2167
        %2396 = vmatprep.subr.mxu0 %v2172
        %2397 = vmatpush1.msra.mxu0 %v2171
        %2398 = vmatprep.subr.mxu0 %v2176
        %2399 = vmatpush1.msra.mxu0 %v2175
        %2400 = vmatprep.subr.mxu0 %v2180
        %2401 = vmatpush1.msra.mxu0 %v2179
        %2402 = vmatprep.subr.mxu0 %v2184
        %2403 = vmatpush1.msra.mxu0 %v2183
        %2404 = vmatprep.subr.mxu0 %v2188
        %2405 = vmatpush1.msra.mxu0 %v2187
        %2406 = vmatprep.subr.mxu0 %v2192
        %2407 = vmatpush1.msra.mxu0 %v2191
        %2408 = vmatprep.subr.mxu0 %v2196
        %2409 = vmatpush1.msra.mxu0 %v2195
        %2410 = vmatprep.subr.mxu0 %v2200
        %2411 = vmatpush1.msra.mxu0 %v2199
        %2412 = vmatprep.subr.mxu0 %v2204
        %2413 = vmatpush1.msra.mxu0 %v2203
        %2414 = vmatprep.subr.mxu0 %v2208
        %2415 = vmatpush1.msra.mxu0 %v2207
        %2416 = vmatprep.subr.mxu0 %v2212
        %2417 = vmatpush1.msra.mxu0 %v2211
        %2418 = vmatprep.subr.mxu0 %v2216
        %2419 = vmatpush1.msra.mxu0 %v2215
        %2420 = vmatprep.subr.mxu0 %v2220
        %2421 = vmatpush1.msra.mxu0 %v2219
        %2422 = vmatprep.subr.mxu0 %v2224
        %2423 = vmatpush1.msra.mxu0 %v2223
        %2424 = vmatprep.subr.mxu0 %v2228
        %2425 = vmatpush1.msra.mxu0 %v2227
        %2426 = vmatprep.subr.mxu0 %v2232
        %2427 = vmatpush1.msra.mxu0 %v2231
        %2428 = vmatprep.subr.mxu0 %v2236
        %2429 = vmatpush1.msra.mxu0 %v2235
        %2430 = vmatprep.subr.mxu0 %v2240
        %2431 = vmatpush1.msra.mxu0 %v2239
        %2432 = vmatprep.subr.mxu0 %v2244
        %2433 = vmatpush1.msra.mxu0 %v2243
        %2434 = vmatprep.subr.mxu0 %v2248
        %2435 = vmatpush1.msra.mxu0 %v2247
        %2436 = vmatprep.subr.mxu0 %v2252
        %2437 = vmatpush1.msra.mxu0 %v2251
        %2438 = vmatprep.subr.mxu0 %v2256
        %2439 = vmatpush1.msra.mxu0 %v2255
        %2440 = vmatprep.mubr.f32.mxu0 %v2282
        %2441 = vmatmul.mubr.f32.gmra.mrb[0].mxu0 %v2279
        %v2442 = vpop.f32.mrb[0].mxu0
        %v2443 = vadd.f32 %v2366, %v2442
        %v2444 = vpop.f32.mrb[0].mxu0
        %v2445 = vadd.f32 %v2368, %v2444
        %2446 = vmatprep.mubr.f32.mxu0 %v2290
        %2447 = vmatmul.mubr.f32.gmra.mrb[0].mxu0 %v2288
        %v2448 = vpop.f32.mrb[0].mxu0
        %v2449 = vadd.f32 %v2372, %v2448
        %v2450 = vpop.f32.mrb[0].mxu0
        %v2451 = vadd.f32 %v2374, %v2450
        %2452 = vdwg.mxu0
        %2453 = vmatprep.subr.mxu0 %v2006
        %2454 = vmatpush1.msra.mxu0 %v2005
        %2455 = vmatprep.subr.mxu0 %v2010
        %2456 = vmatpush1.msra.mxu0 %v2009
        %2457 = vmatprep.subr.mxu0 %v2014
        %2458 = vmatpush1.msra.mxu0 %v2013
        %2459 = vmatprep.subr.mxu0 %v2018
        %2460 = vmatpush1.msra.mxu0 %v2017
        %2461 = vmatprep.subr.mxu0 %v2022
        %2462 = vmatpush1.msra.mxu0 %v2021
        %2463 = vmatprep.subr.mxu0 %v2026
        %2464 = vmatpush1.msra.mxu0 %v2025
        %2465 = vmatprep.subr.mxu0 %v2030
        %2466 = vmatpush1.msra.mxu0 %v2029
        %2467 = vmatprep.subr.mxu0 %v2034
        %2468 = vmatpush1.msra.mxu0 %v2033
        %2469 = vmatprep.subr.mxu0 %v2038
        %2470 = vmatpush1.msra.mxu0 %v2037
        %2471 = vmatprep.subr.mxu0 %v2042
        %2472 = vmatpush1.msra.mxu0 %v2041
        %2473 = vmatprep.subr.mxu0 %v2046
        %2474 = vmatpush1.msra.mxu0 %v2045
        %2475 = vmatprep.subr.mxu0 %v2050
        %2476 = vmatpush1.msra.mxu0 %v2049
        %2477 = vmatprep.subr.mxu0 %v2054
        %2478 = vmatpush1.msra.mxu0 %v2053
        %2479 = vmatprep.subr.mxu0 %v2058
        %2480 = vmatpush1.msra.mxu0 %v2057
        %2481 = vmatprep.subr.mxu0 %v2062
        %2482 = vmatpush1.msra.mxu0 %v2061
        %2483 = vmatprep.subr.mxu0 %v2066
        %2484 = vmatpush1.msra.mxu0 %v2065
        %2485 = vmatprep.subr.mxu0 %v2070
        %2486 = vmatpush1.msra.mxu0 %v2069
        %2487 = vmatprep.subr.mxu0 %v2074
        %2488 = vmatpush1.msra.mxu0 %v2073
        %2489 = vmatprep.subr.mxu0 %v2078
        %2490 = vmatpush1.msra.mxu0 %v2077
        %2491 = vmatprep.subr.mxu0 %v2082
        %2492 = vmatpush1.msra.mxu0 %v2081
        %2493 = vmatprep.subr.mxu0 %v2086
        %2494 = vmatpush1.msra.mxu0 %v2085
        %2495 = vmatprep.subr.mxu0 %v2090
        %2496 = vmatpush1.msra.mxu0 %v2089
        %2497 = vmatprep.subr.mxu0 %v2094
        %2498 = vmatpush1.msra.mxu0 %v2093
        %2499 = vmatprep.subr.mxu0 %v2098
        %2500 = vmatpush1.msra.mxu0 %v2097
        %2501 = vmatprep.subr.mxu0 %v2102
        %2502 = vmatpush1.msra.mxu0 %v2101
        %2503 = vmatprep.subr.mxu0 %v2106
        %2504 = vmatpush1.msra.mxu0 %v2105
        %2505 = vmatprep.subr.mxu0 %v2110
        %2506 = vmatpush1.msra.mxu0 %v2109
        %2507 = vmatprep.subr.mxu0 %v2114
        %2508 = vmatpush1.msra.mxu0 %v2113
        %2509 = vmatprep.subr.mxu0 %v2118
        %2510 = vmatpush1.msra.mxu0 %v2117
        %2511 = vmatprep.subr.mxu0 %v2122
        %2512 = vmatpush1.msra.mxu0 %v2121
        %2513 = vmatprep.subr.mxu0 %v2126
        %2514 = vmatpush1.msra.mxu0 %v2125
        %2515 = vmatprep.subr.mxu0 %v2130
        %2516 = vmatpush1.msra.mxu0 %v2129
        %2517 = vmatprep.mubr.f32.mxu0 %v2276
        %2518 = vmatmul.mubr.f32.gmra.mrb[0].mxu0 %v2273
        %v2519 = vpop.f32.mrb[0].mxu0
        %v2520 = vadd.f32 0.0, %v2519
        %v2521 = vpop.f32.mrb[0].mxu0
        %v2522 = vadd.f32 0.0, %v2521
        %2523 = vmatprep.mubr.f32.mxu0 %v2286
        %2524 = vmatmul.mubr.f32.gmra.mrb[0].mxu0 %v2284
        %v2525 = vpop.f32.mrb[0].mxu0
        %v2526 = vadd.f32 0.0, %v2525
        %v2527 = vpop.f32.mrb[0].mxu0
        %v2528 = vadd.f32 0.0, %v2527
        %2529 = vdwg.mxu0
        %2530 = vmatprep.subr.mxu0 %v2134
        %2531 = vmatpush1.msra.mxu0 %v2133
        %2532 = vmatprep.subr.mxu0 %v2138
        %2533 = vmatpush1.msra.mxu0 %v2137
        %2534 = vmatprep.subr.mxu0 %v2142
        %2535 = vmatpush1.msra.mxu0 %v2141
        %2536 = vmatprep.subr.mxu0 %v2146
        %2537 = vmatpush1.msra.mxu0 %v2145
        %2538 = vmatprep.subr.mxu0 %v2150
        %2539 = vmatpush1.msra.mxu0 %v2149
        %2540 = vmatprep.subr.mxu0 %v2154
        %2541 = vmatpush1.msra.mxu0 %v2153
        %2542 = vmatprep.subr.mxu0 %v2158
        %2543 = vmatpush1.msra.mxu0 %v2157
        %2544 = vmatprep.subr.mxu0 %v2162
        %2545 = vmatpush1.msra.mxu0 %v2161
        %2546 = vmatprep.subr.mxu0 %v2166
        %2547 = vmatpush1.msra.mxu0 %v2165
        %2548 = vmatprep.subr.mxu0 %v2170
        %2549 = vmatpush1.msra.mxu0 %v2169
        %2550 = vmatprep.subr.mxu0 %v2174
        %2551 = vmatpush1.msra.mxu0 %v2173
        %2552 = vmatprep.subr.mxu0 %v2178
        %2553 = vmatpush1.msra.mxu0 %v2177
        %2554 = vmatprep.subr.mxu0 %v2182
        %2555 = vmatpush1.msra.mxu0 %v2181
        %2556 = vmatprep.subr.mxu0 %v2186
        %2557 = vmatpush1.msra.mxu0 %v2185
        %2558 = vmatprep.subr.mxu0 %v2190
        %2559 = vmatpush1.msra.mxu0 %v2189
        %2560 = vmatprep.subr.mxu0 %v2194
        %2561 = vmatpush1.msra.mxu0 %v2193
        %2562 = vmatprep.subr.mxu0 %v2198
        %2563 = vmatpush1.msra.mxu0 %v2197
        %2564 = vmatprep.subr.mxu0 %v2202
        %2565 = vmatpush1.msra.mxu0 %v2201
        %2566 = vmatprep.subr.mxu0 %v2206
        %2567 = vmatpush1.msra.mxu0 %v2205
        %2568 = vmatprep.subr.mxu0 %v2210
        %2569 = vmatpush1.msra.mxu0 %v2209
        %2570 = vmatprep.subr.mxu0 %v2214
        %2571 = vmatpush1.msra.mxu0 %v2213
        %2572 = vmatprep.subr.mxu0 %v2218
        %2573 = vmatpush1.msra.mxu0 %v2217
        %2574 = vmatprep.subr.mxu0 %v2222
        %2575 = vmatpush1.msra.mxu0 %v2221
        %2576 = vmatprep.subr.mxu0 %v2226
        %2577 = vmatpush1.msra.mxu0 %v2225
        %2578 = vmatprep.subr.mxu0 %v2230
        %2579 = vmatpush1.msra.mxu0 %v2229
        %2580 = vmatprep.subr.mxu0 %v2234
        %2581 = vmatpush1.msra.mxu0 %v2233
        %2582 = vmatprep.subr.mxu0 %v2238
        %2583 = vmatpush1.msra.mxu0 %v2237
        %2584 = vmatprep.subr.mxu0 %v2242
        %2585 = vmatpush1.msra.mxu0 %v2241
        %2586 = vmatprep.subr.mxu0 %v2246
        %2587 = vmatpush1.msra.mxu0 %v2245
        %2588 = vmatprep.subr.mxu0 %v2250
        %2589 = vmatpush1.msra.mxu0 %v2249
        %2590 = vmatprep.subr.mxu0 %v2254
        %2591 = vmatpush1.msra.mxu0 %v2253
        %2592 = vmatprep.subr.mxu0 %v2258
        %2593 = vmatpush1.msra.mxu0 %v2257
        %2594 = vmatprep.mubr.f32.mxu0 %v2282
        %2595 = vmatmul.mubr.f32.gmra.mrb[0].mxu0 %v2279
        %v2596 = vpop.f32.mrb[0].mxu0
        %v2597 = vadd.f32 %v2520, %v2596
        %v2598 = vpop.f32.mrb[0].mxu0
        %v2599 = vadd.f32 %v2522, %v2598
        %2600 = vmatprep.mubr.f32.mxu0 %v2290
        %2601 = vmatmul.mubr.f32.gmra.mrb[0].mxu0 %v2288
        %v2602 = vpop.f32.mrb[0].mxu0
        %v2603 = vadd.f32 %v2526, %v2602
        %v2604 = vpop.f32.mrb[0].mxu0
        %v2605 = vadd.f32 %v2528, %v2604
        %2606 = vdwg.mxu0
        %v2607 = vadd.f32 %v1982, %v2443
        %v2608 = vadd.f32 %v1983, %v2445
        %v2609 = vadd.f32 %v1984, %v2597
        %v2610 = vadd.f32 %v1985, %v2599
        %v2611 = vadd.f32 %v1986, %v2449
        %v2612 = vadd.f32 %v1987, %v2451
        %v2613 = vadd.f32 %v1988, %v2603
        %v2614 = vadd.f32 %v1989, %v2605
        %v2615 = vld [vmem:[#allocation7] sm:$0xf]
        %v2617 = vlaneseq
        %v2618 = vshrl.u32 %v2617, 7
        %v2619 = vsub.s32 0, %v2618
        %v2620 = vrot.slane %v2615, %v2619
        %v2621 = vlaneseq
        %v2622 = vshrl.u32 %v2621, 7
        %v2623 = vsub.s32 1, %v2622
        %v2624 = vrot.slane %v2615, %v2623
        %v2625 = vlaneseq
        %v2626 = vshrl.u32 %v2625, 7
        %v2627 = vsub.s32 2, %v2626
        %v2628 = vrot.slane %v2615, %v2627
        %v2629 = vlaneseq
        %v2630 = vshrl.u32 %v2629, 7
        %v2631 = vsub.s32 3, %v2630
        %v2632 = vrot.slane %v2615, %v2631
        %v2637 = vadd.f32 %v2607, %v2620
        %v2638 = vadd.f32 %v2608, %v2624
        %v2639 = vadd.f32 %v2609, %v2628
        %v2640 = vadd.f32 %v2610, %v2632
        %v2641 = vadd.f32 %v2611, %v2620
        %v2642 = vadd.f32 %v2612, %v2624
        %v2643 = vadd.f32 %v2613, %v2628
        %v2644 = vadd.f32 %v2614, %v2632
        %v2645 = vmax.f32 %v2637, 0.0
        %v2646 = vmax.f32 %v2638, 0.0
        %v2647 = vmax.f32 %v2639, 0.0
        %v2648 = vmax.f32 %v2640, 0.0
        %v2649 = vmax.f32 %v2641, 0.0
        %v2650 = vmax.f32 %v2642, 0.0
        %v2651 = vmax.f32 %v2643, 0.0
        %v2652 = vmax.f32 %v2644, 0.0
        %2653 = vst [vmem:[%s164] sm:$0xff] %v2645
        %2654 = vst [vmem:[%s164 + $0x8] sm:$0xff] %v2646
        %2655 = vst [vmem:[%s164 + $0x10] sm:$0xff] %v2647
        %2656 = vst [vmem:[%s164 + $0x18] sm:$0xff] %v2648
        %2657 = vst [vmem:[%s164 + $0x20] sm:$0xff] %v2649
        %2658 = vst [vmem:[%s164 + $0x28] sm:$0xff] %v2650
        %2659 = vst [vmem:[%s164 + $0x30] sm:$0xff] %v2651
        %2660 = vst [vmem:[%s164 + $0x38] sm:$0xff] %v2652
        %s2661 = sand.u32 %s83, 1
        %s2662 = scalar_lea.sflag [#allocation6], %s2661
        %s2663 = sand.u32 %s83, 1
        %s2664 = smul.addr %s2663, 64
        %s2665 = scalar_lea.vmem [#allocation9], %s2664
        // Predicated region
        $region53: #{tpu_custom_call.1} parent=27 // pred_check
          %p2666 = pneg %p93
        $region54: #{tpu_custom_call.1} parent=27 // pred_check_branch
          %2668 = sbr.rel (%p2666) target = $region56
        $region55: #{tpu_custom_call.1} parent=27 // pred_region
          %s2669 = smul.u32 2, %s24
          %s2671 = ssub.s32 1024, 1024
          %2672 = vsyncadd %s2662, %s2671
          %s2673 = smul.addr %s2669, 4
          %s2674 = smul.addr %s23, 8
          %s2675 = sadd.s32 %s2673, %s2674
          %s2676 = smul.addr %s2675, 128
          %s2677 = scalar_lea.hbm %s3, %s2676
          %s2678 = sshll.u32 %s2665, 4
          %s2679 = int_to_ptr.vmem [resolvable:$true] %s2678
          %2684 = dma.vmem_to_hbm [thread:$0]  %s2679, 1024, %s2677, %s2662, 512, 512, 32
        $region56: #{tpu_custom_call.1} parent=27 // pred_fallthru
          _
      $region28: #{tpu_custom_call.1} parent=5 // pred_fallthru
        _
      %p2685 = scmp.le.s32.totalorder 2, %s14
      // Predicated region
      $region57: #{tpu_custom_call.1} parent=5 // pred_check
        %p2686 = pneg %p2685
      $region58: #{tpu_custom_call.1} parent=5 // pred_check_branch
        %2688 = sbr.rel (%p2686) target = $region60
      $region59: #{tpu_custom_call.1} parent=5 // pred_region
        %s2689 = ssub.s32 %s14, 2
        // Predicated region
        $region61: #{tpu_custom_call.1} parent=59 // pred_check
          %p2690 = pneg %p99
        $region62: #{tpu_custom_call.1} parent=59 // pred_check_branch
          %2692 = sbr.rel (%p2690) target = $region64
        $region63: #{tpu_custom_call.1} parent=59 // pred_region
          %s2693 = sand.u32 %s84, 1
          %s2694 = scalar_lea.sflag [#allocation6], %s2693
          %s2695 = sand.u32 %s84, 1
          %s2696 = smul.addr %s2695, 64
          %s2697 = scalar_lea.vmem [#allocation9], %s2696
          %2698 = dma.done %s2694, 1024
        $region64: #{tpu_custom_call.1} parent=59 // pred_fallthru
          _
      $region60: #{tpu_custom_call.1} parent=5 // pred_fallthru
        _
    $region6: #{tpu_custom_call.1} parent=1 // loop_footer
      %s18 = sadd.s32 1, %s14
    $region7: #{tpu_custom_call.1} parent=1 // loop_footer_branch
      %13 = sbr.rel target = $region3
    $region8: #{tpu_custom_call.1} parent=1 // loop_exit
      _
    %2699 = vsyncpa [#allocation5], 1
    %s2700 = scalar_lea.sflag [#allocation5], 1
    %2701 = vsyncpa %s2700, 1
    %2702 = vsyncpa [#allocation8], 1
    %2703 = vsyncpa [#allocation6], 1
    %s2704 = scalar_lea.sflag [#allocation6], 1
    %2705 = vsyncpa %s2704, 1
  %2706 = vsyncmov [#allocation3]
  %s2707 = vpop.sfrf %2706
  %p2708 = scmp.eq.s32.totalorder %s2707, 0
  %p2709 = pneg %p2708
  %2711 = shalt.err (%p2709)
  %s2712 = scalar_lea.sflag [#allocation3], 1
  %2713 = vsyncmov %s2712
  %s2714 = vpop.sfrf %2713
  %p2715 = scmp.eq.s32.totalorder %s2714, 0
  %p2716 = pneg %p2715
  %2718 = shalt.err (%p2716)

</llo_original>
